<compile_context>
chip_gen: v7x
topology: tpu7x:2x2x1
jax: 0.10.0
libtpu: 0.0.40
codegen_flags: <defaults>
</compile_context>

<pallas_src>
import functools
import math

import jax
import jax.numpy as jnp
import numpy as np
from jax.experimental import pallas as pl
from jax.experimental.pallas import tpu as pltpu


def conv_layer_kernel(idx_ref, vertsT_ref, featT_ref, w_supT_ref, b_sup_ref,
                      w_cenT_ref, b_cen_ref, sdirT_ref, sum_matT_ref, out_ref,
                      *, V, N):
    """One batch element per grid step.  All tensors have V on the lane axis.

    idx_ref    : (N, V)        int32  neighbor indices
    vertsT_ref : (3, V)        f32
    featT_ref  : (C_in, V)     f32
    w_supT_ref : (SC, C_in)    f32    support weight block, transposed
    b_sup_ref  : (SC, 1)       f32
    w_cenT_ref : (C_out, C_in) f32    center weight block, transposed
    b_cen_ref  : (C_out, 1)    f32
    sdirT_ref  : (SC, 3)       f32    F.normalize(directions, dim=0).T
    sum_matT_ref:(C_out, SC)   f32    block-identity (sum over supports as matmul)
    out_ref    : (C_out, V)    f32
    """
    vertsT = vertsT_ref[...]                                         # (3, V)
    featT = featT_ref[...]                                           # (C_in, V)
    idx_all = idx_ref[...]                                           # (N, V) int32
    sdirT = sdirT_ref[...]                                           # (SC, 3)

    # --- feature projections: separate support / center matmuls (sublane-aligned) ---
    feat_supT = jnp.dot(w_supT_ref[...], featT,
                        preferred_element_type=jnp.float32) + b_sup_ref[...]   # (SC, V)
    feat_cenT = jnp.dot(w_cenT_ref[...], featT,
                        preferred_element_type=jnp.float32) + b_cen_ref[...]   # (C_out, V)

    # one-hot row iota hoisted out of the neighbor loop
    row_iota = jax.lax.broadcasted_iota(jnp.int32, (V, V), 0)        # (V, V)

    # --- loop over neighbors with a (SC, V) running-max accumulator ---
    m = None
    for n in range(N):
        idx_n = idx_all[n:n + 1, :]                                  # (1, V)
        # onehotT[u, v] = 1.0 iff u == neighbor_index[v] for this n
        onehotT = (row_iota == idx_n).astype(jnp.float32)            # (V, V)

        # gathers via MXU: columns of X picked at neighbor indices
        nbrT = jnp.dot(vertsT, onehotT,
                       preferred_element_type=jnp.float32)           # (3, V)
        fgT = jnp.dot(feat_supT, onehotT,
                      preferred_element_type=jnp.float32)            # (SC, V)

        # neighbor direction + F.normalize(dim=-1), lane-dense, rsqrt on the EUP
        d = nbrT - vertsT                                            # (3, V)
        norm2 = d[0:1] * d[0:1] + d[1:2] * d[1:2] + d[2:3] * d[2:3]  # (1, V)
        inv_norm = jax.lax.rsqrt(jnp.maximum(norm2, 1e-24))          # (1, V)

        # theta = relu(d_unit . support_dir): K=3 matmul, then scale by inv_norm
        proj = jnp.dot(sdirT, d, preferred_element_type=jnp.float32)  # (SC, V)
        theta = jnp.maximum(proj, 0.0) * inv_norm                     # inv_norm > 0

        act = theta * fgT                                             # (SC, V)
        m = act if m is None else jnp.maximum(m, act)

    # --- sum over supports as a block-identity matmul (rides the MXU slot) ---
    actT = jnp.dot(sum_matT_ref[...], m,
                   preferred_element_type=jnp.float32)                # (C_out, V)
    out_ref[...] = feat_cenT + actT


def conv_layer_forward(neighbor_index, vertices, feature_map,
                       weights, bias, directions, out_channel, support_num):
    bs, V, N = neighbor_index.shape
    C_in = feature_map.shape[-1]
    S, C_out = support_num, out_channel
    SC = S * C_out

    # Host-side layout plumbing (no compute hoisting beyond the constant params):
    #  - F.normalize(directions, dim=0), transposed
    #  - weight/bias split into [center | support] blocks, transposed
    #  - block-identity matrix for the sum-over-supports
    #  - activations/indices transposed so V is the lane axis in-kernel
    sdir = directions / jnp.maximum(
        jnp.sqrt(jnp.sum(directions * directions, axis=0, keepdims=True)), 1e-12)
    sdirT = jnp.transpose(sdir).astype(jnp.float32)                        # (SC, 3)
    w_supT = jnp.transpose(weights[:, C_out:]).astype(jnp.float32)         # (SC, C_in)
    b_sup = bias[C_out:].reshape(SC, 1).astype(jnp.float32)                # (SC, 1)
    w_cenT = jnp.transpose(weights[:, :C_out]).astype(jnp.float32)         # (C_out, C_in)
    b_cen = bias[:C_out].reshape(C_out, 1).astype(jnp.float32)             # (C_out, 1)
    sum_matT = jnp.tile(jnp.eye(C_out, dtype=jnp.float32), (1, S))         # (C_out, SC)

    idxT = jnp.transpose(neighbor_index, (0, 2, 1)).astype(jnp.int32)      # (bs, N, V)
    vertsT = jnp.transpose(vertices, (0, 2, 1)).astype(jnp.float32)        # (bs, 3, V)
    featT = jnp.transpose(feature_map, (0, 2, 1)).astype(jnp.float32)      # (bs, C_in, V)

    kernel = functools.partial(conv_layer_kernel, V=V, N=N)

    # Advisory cost estimate so XLA schedules around the custom call.
    flops_per_b = (2 * V * C_in * (SC + C_out)                 # projections
                   + N * (2 * V * V * (SC + 3)                 # one-hot gathers
                          + 2 * 3 * SC * V                     # theta matmul
                          + 6 * SC * V)                        # elementwise
                   + 2 * C_out * SC * V)                       # support sum
    bytes_per_b = 4 * (N * V + 3 * V + C_in * V + C_out * V)
    bytes_const = 4 * (SC * C_in + SC + C_out * C_in + C_out + SC * 3 + C_out * SC)
    cost = pl.CostEstimate(flops=bs * flops_per_b,
                           transcendentals=bs * N * V,
                           bytes_accessed=bs * bytes_per_b + bytes_const)

    outT = pl.pallas_call(
        kernel,
        out_shape=jax.ShapeDtypeStruct((bs, C_out, V), jnp.float32),
        grid=(bs,),
        in_specs=[
            pl.BlockSpec((None, N, V), lambda b: (b, 0, 0)),       # neighbor idx
            pl.BlockSpec((None, 3, V), lambda b: (b, 0, 0)),       # vertices^T
            pl.BlockSpec((None, C_in, V), lambda b: (b, 0, 0)),    # feature_map^T
            pl.BlockSpec((SC, C_in), lambda b: (0, 0)),            # support weights^T
            pl.BlockSpec((SC, 1), lambda b: (0, 0)),               # support bias
            pl.BlockSpec((C_out, C_in), lambda b: (0, 0)),         # center weights^T
            pl.BlockSpec((C_out, 1), lambda b: (0, 0)),            # center bias
            pl.BlockSpec((SC, 3), lambda b: (0, 0)),               # support dirs^T (normed)
            pl.BlockSpec((C_out, SC), lambda b: (0, 0)),           # block-identity sum matrix
        ],
        out_specs=pl.BlockSpec((None, C_out, V), lambda b: (b, 0, 0)),
        compiler_params=pltpu.CompilerParams(
            dimension_semantics=("parallel",),        # no cross-batch carry
            vmem_limit_bytes=48 * 1024 * 1024),       # explicit budget (v7x: 64 MiB phys)
        cost_estimate=cost,
    )(idxT, vertsT, featT, w_supT, b_sup, w_cenT, b_cen, sdirT, sum_matT)

    return jnp.transpose(outT, (0, 2, 1))             # (bs, V, C_out)


def reference(neighbor_index, vertices, feature_map, weights, bias, directions,
              out_channel, support_num):
    bs, V, N = neighbor_index.shape
    C_out, S = out_channel, support_num
    b_idx = jnp.arange(bs)[:, None, None]
    neighbors = vertices[b_idx, neighbor_index]                          # (bs,V,N,3)
    d = neighbors - vertices[:, :, None, :]
    d = d / jnp.maximum(jnp.linalg.norm(d, axis=-1, keepdims=True), 1e-12)
    sdir = directions / jnp.maximum(
        jnp.linalg.norm(directions, axis=0, keepdims=True), 1e-12)
    theta = jnp.maximum(d @ sdir, 0.0)                                   # (bs,V,N,S*C_out)
    feat_out = feature_map @ weights + bias
    fc = feat_out[..., :C_out]
    fs = feat_out[..., C_out:]
    fsg = fs[b_idx, neighbor_index]                                      # (bs,V,N,S*C_out)
    act = (theta * fsg).reshape(bs, V, N, S, C_out)
    act = jnp.sum(jnp.max(act, axis=2), axis=2)
    return fc + act


if __name__ == "__main__":
    bs, V, N = 2, 16, 8
    C_in, C_out, S = 4, 8, 3

    key = jax.random.PRNGKey(0)
    k1, k2, k3, k4, k5, k6 = jax.random.split(key, 6)
    stdv = 1.0 / math.sqrt(C_out * (S + 1))

    # deterministic parameter init, shapes per Conv_layer.__init__
    weights = jax.random.uniform(k1, (C_in, (S + 1) * C_out), jnp.float32, -stdv, stdv)
    bias = jax.random.uniform(k2, ((S + 1) * C_out,), jnp.float32, -stdv, stdv)
    directions = jax.random.uniform(k3, (3, S * C_out), jnp.float32, -stdv, stdv)

    vertices = jax.random.normal(k4, (bs, V, 3), jnp.float32)
    feature_map = jax.random.normal(k5, (bs, V, C_in), jnp.float32)
    neighbor_index = jax.random.randint(k6, (bs, V, N), 0, V)

    out = conv_layer_forward(neighbor_index, vertices, feature_map,
                             weights, bias, directions, C_out, S)
    out = jax.block_until_ready(out)

    ref = reference(neighbor_index, vertices, feature_map,
                    weights, bias, directions, C_out, S)
    assert out.shape == (bs, V, C_out)
    np.testing.assert_allclose(np.asarray(out), np.asarray(ref), rtol=2e-4, atol=2e-5)
    print("KERNEL_OK")
</pallas_src>

<mosaic_0001>
module attributes {stable_mosaic.version = 11 : i64} {
  func.func @conv_layer_kernel(%arg0: i32, %arg1: memref<1x8x16xi32, #tpu.memory_space<vmem>>, %arg2: memref<1x3x16xf32, #tpu.memory_space<vmem>>, %arg3: memref<1x4x16xf32, #tpu.memory_space<vmem>>, %arg4: memref<24x4xf32, #tpu.memory_space<vmem>>, %arg5: memref<24x1xf32, #tpu.memory_space<vmem>>, %arg6: memref<8x4xf32, #tpu.memory_space<vmem>>, %arg7: memref<8x1xf32, #tpu.memory_space<vmem>>, %arg8: memref<24x3xf32, #tpu.memory_space<vmem>>, %arg9: memref<8x24xf32, #tpu.memory_space<vmem>>, %arg10: memref<1x8x16xf32, #tpu.memory_space<vmem>>) attributes {dimension_semantics = [#tpu.dimension_semantics<parallel>], iteration_bounds = array<i64: 2>, scalar_prefetch = 0 : i64, scratch_operands = 0 : i64, tpu.core_type = #tpu.core_type<tc>, window_params = [{transform_indices = @transform_0, window_bounds = array<i64: 1, 8, 16>}, {transform_indices = @transform_1, window_bounds = array<i64: 1, 3, 16>}, {transform_indices = @transform_2, window_bounds = array<i64: 1, 4, 16>}, {pipeline_mode = #tpu.pipeline_mode<synchronous>, transform_indices = @transform_3, window_bounds = array<i64: 24, 4>}, {pipeline_mode = #tpu.pipeline_mode<synchronous>, transform_indices = @transform_4, window_bounds = array<i64: 24, 1>}, {pipeline_mode = #tpu.pipeline_mode<synchronous>, transform_indices = @transform_5, window_bounds = array<i64: 8, 4>}, {pipeline_mode = #tpu.pipeline_mode<synchronous>, transform_indices = @transform_6, window_bounds = array<i64: 8, 1>}, {pipeline_mode = #tpu.pipeline_mode<synchronous>, transform_indices = @transform_7, window_bounds = array<i64: 24, 3>}, {pipeline_mode = #tpu.pipeline_mode<synchronous>, transform_indices = @transform_8, window_bounds = array<i64: 8, 24>}, {transform_indices = @transform_9, window_bounds = array<i64: 1, 8, 16>}]} {
    %c0 = arith.constant 0 : index
    %c0_0 = arith.constant 0 : index
    %c0_1 = arith.constant 0 : index
    %0 = vector.load %arg2[%c0, %c0_0, %c0_1] : memref<1x3x16xf32, #tpu.memory_space<vmem>>, vector<1x3x16xf32>
    %1 = vector.shape_cast %0 : vector<1x3x16xf32> to vector<3x16xf32>
    %c0_2 = arith.constant 0 : index
    %c0_3 = arith.constant 0 : index
    %c0_4 = arith.constant 0 : index
    %2 = vector.load %arg3[%c0_2, %c0_3, %c0_4] : memref<1x4x16xf32, #tpu.memory_space<vmem>>, vector<1x4x16xf32>
    %3 = vector.shape_cast %2 : vector<1x4x16xf32> to vector<4x16xf32>
    %c0_5 = arith.constant 0 : index
    %c0_6 = arith.constant 0 : index
    %c0_7 = arith.constant 0 : index
    %4 = vector.load %arg1[%c0_5, %c0_6, %c0_7] : memref<1x8x16xi32, #tpu.memory_space<vmem>>, vector<1x8x16xi32>
    %5 = vector.shape_cast %4 : vector<1x8x16xi32> to vector<8x16xi32>
    %c0_8 = arith.constant 0 : index
    %c0_9 = arith.constant 0 : index
    %6 = vector.load %arg8[%c0_8, %c0_9] : memref<24x3xf32, #tpu.memory_space<vmem>>, vector<24x3xf32>
    %c0_10 = arith.constant 0 : index
    %c0_11 = arith.constant 0 : index
    %7 = vector.load %arg4[%c0_10, %c0_11] : memref<24x4xf32, #tpu.memory_space<vmem>>, vector<24x4xf32>
    %cst = arith.constant dense<0.000000e+00> : vector<24x16xf32>
    %8 = tpu.matmul %7, %3, %cst {dimension_numbers = #tpu.dot_dimension_numbers<[1], [0], [0], [1], [0, 0, 1, 1], [], []>} : vector<24x4xf32>, vector<4x16xf32>, vector<24x16xf32> -> vector<24x16xf32>
    %c0_12 = arith.constant 0 : index
    %c0_13 = arith.constant 0 : index
    %9 = vector.load %arg5[%c0_12, %c0_13] : memref<24x1xf32, #tpu.memory_space<vmem>>, vector<24x1xf32>
    %10 = vector.broadcast %9 : vector<24x1xf32> to vector<24x16xf32>
    %11 = arith.addf %8, %10 : vector<24x16xf32>
    %c0_14 = arith.constant 0 : index
    %c0_15 = arith.constant 0 : index
    %12 = vector.load %arg6[%c0_14, %c0_15] : memref<8x4xf32, #tpu.memory_space<vmem>>, vector<8x4xf32>
    %cst_16 = arith.constant dense<0.000000e+00> : vector<8x16xf32>
    %13 = tpu.matmul %12, %3, %cst_16 {dimension_numbers = #tpu.dot_dimension_numbers<[1], [0], [0], [1], [0, 0, 1, 1], [], []>} : vector<8x4xf32>, vector<4x16xf32>, vector<8x16xf32> -> vector<8x16xf32>
    %c0_17 = arith.constant 0 : index
    %c0_18 = arith.constant 0 : index
    %14 = vector.load %arg7[%c0_17, %c0_18] : memref<8x1xf32, #tpu.memory_space<vmem>>, vector<8x1xf32>
    %15 = vector.broadcast %14 : vector<8x1xf32> to vector<8x16xf32>
    %16 = arith.addf %13, %15 : vector<8x16xf32>
    %17 = tpu.iota {dimensions = array<i32: 0>} : vector<16x16xi32>
    %18 = vector.extract_strided_slice %5 {offsets = [0, 0], sizes = [1, 16], strides = [1, 1]} : vector<8x16xi32> to vector<1x16xi32>
    %19 = vector.broadcast %18 : vector<1x16xi32> to vector<16x16xi32>
    %20 = arith.cmpi eq, %17, %19 : vector<16x16xi32>
    %21 = arith.extui %20 : vector<16x16xi1> to vector<16x16xi32>
    %22 = arith.sitofp %21 : vector<16x16xi32> to vector<16x16xf32>
    %cst_19 = arith.constant dense<0.000000e+00> : vector<3x16xf32>
    %23 = tpu.matmul %1, %22, %cst_19 {dimension_numbers = #tpu.dot_dimension_numbers<[1], [0], [0], [1], [0, 0, 1, 1], [], []>} : vector<3x16xf32>, vector<16x16xf32>, vector<3x16xf32> -> vector<3x16xf32>
    %cst_20 = arith.constant dense<0.000000e+00> : vector<24x16xf32>
    %24 = tpu.matmul %11, %22, %cst_20 {dimension_numbers = #tpu.dot_dimension_numbers<[1], [0], [0], [1], [0, 0, 1, 1], [], []>} : vector<24x16xf32>, vector<16x16xf32>, vector<24x16xf32> -> vector<24x16xf32>
    %25 = arith.subf %23, %1 : vector<3x16xf32>
    %26 = vector.extract_strided_slice %25 {offsets = [0, 0], sizes = [1, 16], strides = [1, 1]} : vector<3x16xf32> to vector<1x16xf32>
    %27 = vector.extract_strided_slice %25 {offsets = [0, 0], sizes = [1, 16], strides = [1, 1]} : vector<3x16xf32> to vector<1x16xf32>
    %28 = arith.mulf %26, %27 : vector<1x16xf32>
    %29 = vector.extract_strided_slice %25 {offsets = [1, 0], sizes = [1, 16], strides = [1, 1]} : vector<3x16xf32> to vector<1x16xf32>
    %30 = vector.extract_strided_slice %25 {offsets = [1, 0], sizes = [1, 16], strides = [1, 1]} : vector<3x16xf32> to vector<1x16xf32>
    %31 = arith.mulf %29, %30 : vector<1x16xf32>
    %32 = arith.addf %28, %31 : vector<1x16xf32>
    %33 = vector.extract_strided_slice %25 {offsets = [2, 0], sizes = [1, 16], strides = [1, 1]} : vector<3x16xf32> to vector<1x16xf32>
    %34 = vector.extract_strided_slice %25 {offsets = [2, 0], sizes = [1, 16], strides = [1, 1]} : vector<3x16xf32> to vector<1x16xf32>
    %35 = arith.mulf %33, %34 : vector<1x16xf32>
    %36 = arith.addf %32, %35 : vector<1x16xf32>
    %cst_21 = arith.constant 1.000000e-24 : f32
    %37 = vector.broadcast %cst_21 : f32 to vector<1x16xf32>
    %38 = arith.maximumf %36, %37 : vector<1x16xf32>
    %39 = math.rsqrt %38 : vector<1x16xf32>
    %cst_22 = arith.constant dense<0.000000e+00> : vector<24x16xf32>
    %40 = tpu.matmul %6, %25, %cst_22 {dimension_numbers = #tpu.dot_dimension_numbers<[1], [0], [0], [1], [0, 0, 1, 1], [], []>} : vector<24x3xf32>, vector<3x16xf32>, vector<24x16xf32> -> vector<24x16xf32>
    %cst_23 = arith.constant 0.000000e+00 : f32
    %41 = vector.broadcast %cst_23 : f32 to vector<24x16xf32>
    %42 = arith.maximumf %40, %41 : vector<24x16xf32>
    %43 = vector.broadcast %39 : vector<1x16xf32> to vector<24x16xf32>
    %44 = arith.mulf %42, %43 : vector<24x16xf32>
    %45 = arith.mulf %44, %24 : vector<24x16xf32>
    %46 = vector.extract_strided_slice %5 {offsets = [1, 0], sizes = [1, 16], strides = [1, 1]} : vector<8x16xi32> to vector<1x16xi32>
    %47 = vector.broadcast %46 : vector<1x16xi32> to vector<16x16xi32>
    %48 = arith.cmpi eq, %17, %47 : vector<16x16xi32>
    %49 = arith.extui %48 : vector<16x16xi1> to vector<16x16xi32>
    %50 = arith.sitofp %49 : vector<16x16xi32> to vector<16x16xf32>
    %cst_24 = arith.constant dense<0.000000e+00> : vector<3x16xf32>
    %51 = tpu.matmul %1, %50, %cst_24 {dimension_numbers = #tpu.dot_dimension_numbers<[1], [0], [0], [1], [0, 0, 1, 1], [], []>} : vector<3x16xf32>, vector<16x16xf32>, vector<3x16xf32> -> vector<3x16xf32>
    %cst_25 = arith.constant dense<0.000000e+00> : vector<24x16xf32>
    %52 = tpu.matmul %11, %50, %cst_25 {dimension_numbers = #tpu.dot_dimension_numbers<[1], [0], [0], [1], [0, 0, 1, 1], [], []>} : vector<24x16xf32>, vector<16x16xf32>, vector<24x16xf32> -> vector<24x16xf32>
    %53 = arith.subf %51, %1 : vector<3x16xf32>
    %54 = vector.extract_strided_slice %53 {offsets = [0, 0], sizes = [1, 16], strides = [1, 1]} : vector<3x16xf32> to vector<1x16xf32>
    %55 = vector.extract_strided_slice %53 {offsets = [0, 0], sizes = [1, 16], strides = [1, 1]} : vector<3x16xf32> to vector<1x16xf32>
    %56 = arith.mulf %54, %55 : vector<1x16xf32>
    %57 = vector.extract_strided_slice %53 {offsets = [1, 0], sizes = [1, 16], strides = [1, 1]} : vector<3x16xf32> to vector<1x16xf32>
    %58 = vector.extract_strided_slice %53 {offsets = [1, 0], sizes = [1, 16], strides = [1, 1]} : vector<3x16xf32> to vector<1x16xf32>
    %59 = arith.mulf %57, %58 : vector<1x16xf32>
    %60 = arith.addf %56, %59 : vector<1x16xf32>
    %61 = vector.extract_strided_slice %53 {offsets = [2, 0], sizes = [1, 16], strides = [1, 1]} : vector<3x16xf32> to vector<1x16xf32>
    %62 = vector.extract_strided_slice %53 {offsets = [2, 0], sizes = [1, 16], strides = [1, 1]} : vector<3x16xf32> to vector<1x16xf32>
    %63 = arith.mulf %61, %62 : vector<1x16xf32>
    %64 = arith.addf %60, %63 : vector<1x16xf32>
    %cst_26 = arith.constant 1.000000e-24 : f32
    %65 = vector.broadcast %cst_26 : f32 to vector<1x16xf32>
    %66 = arith.maximumf %64, %65 : vector<1x16xf32>
    %67 = math.rsqrt %66 : vector<1x16xf32>
    %cst_27 = arith.constant dense<0.000000e+00> : vector<24x16xf32>
    %68 = tpu.matmul %6, %53, %cst_27 {dimension_numbers = #tpu.dot_dimension_numbers<[1], [0], [0], [1], [0, 0, 1, 1], [], []>} : vector<24x3xf32>, vector<3x16xf32>, vector<24x16xf32> -> vector<24x16xf32>
    %cst_28 = arith.constant 0.000000e+00 : f32
    %69 = vector.broadcast %cst_28 : f32 to vector<24x16xf32>
    %70 = arith.maximumf %68, %69 : vector<24x16xf32>
    %71 = vector.broadcast %67 : vector<1x16xf32> to vector<24x16xf32>
    %72 = arith.mulf %70, %71 : vector<24x16xf32>
    %73 = arith.mulf %72, %52 : vector<24x16xf32>
    %74 = arith.maximumf %45, %73 : vector<24x16xf32>
    %75 = vector.extract_strided_slice %5 {offsets = [2, 0], sizes = [1, 16], strides = [1, 1]} : vector<8x16xi32> to vector<1x16xi32>
    %76 = vector.broadcast %75 : vector<1x16xi32> to vector<16x16xi32>
    %77 = arith.cmpi eq, %17, %76 : vector<16x16xi32>
    %78 = arith.extui %77 : vector<16x16xi1> to vector<16x16xi32>
    %79 = arith.sitofp %78 : vector<16x16xi32> to vector<16x16xf32>
    %cst_29 = arith.constant dense<0.000000e+00> : vector<3x16xf32>
    %80 = tpu.matmul %1, %79, %cst_29 {dimension_numbers = #tpu.dot_dimension_numbers<[1], [0], [0], [1], [0, 0, 1, 1], [], []>} : vector<3x16xf32>, vector<16x16xf32>, vector<3x16xf32> -> vector<3x16xf32>
    %cst_30 = arith.constant dense<0.000000e+00> : vector<24x16xf32>
    %81 = tpu.matmul %11, %79, %cst_30 {dimension_numbers = #tpu.dot_dimension_numbers<[1], [0], [0], [1], [0, 0, 1, 1], [], []>} : vector<24x16xf32>, vector<16x16xf32>, vector<24x16xf32> -> vector<24x16xf32>
    %82 = arith.subf %80, %1 : vector<3x16xf32>
    %83 = vector.extract_strided_slice %82 {offsets = [0, 0], sizes = [1, 16], strides = [1, 1]} : vector<3x16xf32> to vector<1x16xf32>
    %84 = vector.extract_strided_slice %82 {offsets = [0, 0], sizes = [1, 16], strides = [1, 1]} : vector<3x16xf32> to vector<1x16xf32>
    %85 = arith.mulf %83, %84 : vector<1x16xf32>
    %86 = vector.extract_strided_slice %82 {offsets = [1, 0], sizes = [1, 16], strides = [1, 1]} : vector<3x16xf32> to vector<1x16xf32>
    %87 = vector.extract_strided_slice %82 {offsets = [1, 0], sizes = [1, 16], strides = [1, 1]} : vector<3x16xf32> to vector<1x16xf32>
    %88 = arith.mulf %86, %87 : vector<1x16xf32>
    %89 = arith.addf %85, %88 : vector<1x16xf32>
    %90 = vector.extract_strided_slice %82 {offsets = [2, 0], sizes = [1, 16], strides = [1, 1]} : vector<3x16xf32> to vector<1x16xf32>
    %91 = vector.extract_strided_slice %82 {offsets = [2, 0], sizes = [1, 16], strides = [1, 1]} : vector<3x16xf32> to vector<1x16xf32>
    %92 = arith.mulf %90, %91 : vector<1x16xf32>
    %93 = arith.addf %89, %92 : vector<1x16xf32>
    %cst_31 = arith.constant 1.000000e-24 : f32
    %94 = vector.broadcast %cst_31 : f32 to vector<1x16xf32>
    %95 = arith.maximumf %93, %94 : vector<1x16xf32>
    %96 = math.rsqrt %95 : vector<1x16xf32>
    %cst_32 = arith.constant dense<0.000000e+00> : vector<24x16xf32>
    %97 = tpu.matmul %6, %82, %cst_32 {dimension_numbers = #tpu.dot_dimension_numbers<[1], [0], [0], [1], [0, 0, 1, 1], [], []>} : vector<24x3xf32>, vector<3x16xf32>, vector<24x16xf32> -> vector<24x16xf32>
    %cst_33 = arith.constant 0.000000e+00 : f32
    %98 = vector.broadcast %cst_33 : f32 to vector<24x16xf32>
    %99 = arith.maximumf %97, %98 : vector<24x16xf32>
    %100 = vector.broadcast %96 : vector<1x16xf32> to vector<24x16xf32>
    %101 = arith.mulf %99, %100 : vector<24x16xf32>
    %102 = arith.mulf %101, %81 : vector<24x16xf32>
    %103 = arith.maximumf %74, %102 : vector<24x16xf32>
    %104 = vector.extract_strided_slice %5 {offsets = [3, 0], sizes = [1, 16], strides = [1, 1]} : vector<8x16xi32> to vector<1x16xi32>
    %105 = vector.broadcast %104 : vector<1x16xi32> to vector<16x16xi32>
    %106 = arith.cmpi eq, %17, %105 : vector<16x16xi32>
    %107 = arith.extui %106 : vector<16x16xi1> to vector<16x16xi32>
    %108 = arith.sitofp %107 : vector<16x16xi32> to vector<16x16xf32>
    %cst_34 = arith.constant dense<0.000000e+00> : vector<3x16xf32>
    %109 = tpu.matmul %1, %108, %cst_34 {dimension_numbers = #tpu.dot_dimension_numbers<[1], [0], [0], [1], [0, 0, 1, 1], [], []>} : vector<3x16xf32>, vector<16x16xf32>, vector<3x16xf32> -> vector<3x16xf32>
    %cst_35 = arith.constant dense<0.000000e+00> : vector<24x16xf32>
    %110 = tpu.matmul %11, %108, %cst_35 {dimension_numbers = #tpu.dot_dimension_numbers<[1], [0], [0], [1], [0, 0, 1, 1], [], []>} : vector<24x16xf32>, vector<16x16xf32>, vector<24x16xf32> -> vector<24x16xf32>
    %111 = arith.subf %109, %1 : vector<3x16xf32>
    %112 = vector.extract_strided_slice %111 {offsets = [0, 0], sizes = [1, 16], strides = [1, 1]} : vector<3x16xf32> to vector<1x16xf32>
    %113 = vector.extract_strided_slice %111 {offsets = [0, 0], sizes = [1, 16], strides = [1, 1]} : vector<3x16xf32> to vector<1x16xf32>
    %114 = arith.mulf %112, %113 : vector<1x16xf32>
    %115 = vector.extract_strided_slice %111 {offsets = [1, 0], sizes = [1, 16], strides = [1, 1]} : vector<3x16xf32> to vector<1x16xf32>
    %116 = vector.extract_strided_slice %111 {offsets = [1, 0], sizes = [1, 16], strides = [1, 1]} : vector<3x16xf32> to vector<1x16xf32>
    %117 = arith.mulf %115, %116 : vector<1x16xf32>
    %118 = arith.addf %114, %117 : vector<1x16xf32>
    %119 = vector.extract_strided_slice %111 {offsets = [2, 0], sizes = [1, 16], strides = [1, 1]} : vector<3x16xf32> to vector<1x16xf32>
    %120 = vector.extract_strided_slice %111 {offsets = [2, 0], sizes = [1, 16], strides = [1, 1]} : vector<3x16xf32> to vector<1x16xf32>
    %121 = arith.mulf %119, %120 : vector<1x16xf32>
    %122 = arith.addf %118, %121 : vector<1x16xf32>
    %cst_36 = arith.constant 1.000000e-24 : f32
    %123 = vector.broadcast %cst_36 : f32 to vector<1x16xf32>
    %124 = arith.maximumf %122, %123 : vector<1x16xf32>
    %125 = math.rsqrt %124 : vector<1x16xf32>
    %cst_37 = arith.constant dense<0.000000e+00> : vector<24x16xf32>
    %126 = tpu.matmul %6, %111, %cst_37 {dimension_numbers = #tpu.dot_dimension_numbers<[1], [0], [0], [1], [0, 0, 1, 1], [], []>} : vector<24x3xf32>, vector<3x16xf32>, vector<24x16xf32> -> vector<24x16xf32>
    %cst_38 = arith.constant 0.000000e+00 : f32
    %127 = vector.broadcast %cst_38 : f32 to vector<24x16xf32>
    %128 = arith.maximumf %126, %127 : vector<24x16xf32>
    %129 = vector.broadcast %125 : vector<1x16xf32> to vector<24x16xf32>
    %130 = arith.mulf %128, %129 : vector<24x16xf32>
    %131 = arith.mulf %130, %110 : vector<24x16xf32>
    %132 = arith.maximumf %103, %131 : vector<24x16xf32>
    %133 = vector.extract_strided_slice %5 {offsets = [4, 0], sizes = [1, 16], strides = [1, 1]} : vector<8x16xi32> to vector<1x16xi32>
    %134 = vector.broadcast %133 : vector<1x16xi32> to vector<16x16xi32>
    %135 = arith.cmpi eq, %17, %134 : vector<16x16xi32>
    %136 = arith.extui %135 : vector<16x16xi1> to vector<16x16xi32>
    %137 = arith.sitofp %136 : vector<16x16xi32> to vector<16x16xf32>
    %cst_39 = arith.constant dense<0.000000e+00> : vector<3x16xf32>
    %138 = tpu.matmul %1, %137, %cst_39 {dimension_numbers = #tpu.dot_dimension_numbers<[1], [0], [0], [1], [0, 0, 1, 1], [], []>} : vector<3x16xf32>, vector<16x16xf32>, vector<3x16xf32> -> vector<3x16xf32>
    %cst_40 = arith.constant dense<0.000000e+00> : vector<24x16xf32>
    %139 = tpu.matmul %11, %137, %cst_40 {dimension_numbers = #tpu.dot_dimension_numbers<[1], [0], [0], [1], [0, 0, 1, 1], [], []>} : vector<24x16xf32>, vector<16x16xf32>, vector<24x16xf32> -> vector<24x16xf32>
    %140 = arith.subf %138, %1 : vector<3x16xf32>
    %141 = vector.extract_strided_slice %140 {offsets = [0, 0], sizes = [1, 16], strides = [1, 1]} : vector<3x16xf32> to vector<1x16xf32>
    %142 = vector.extract_strided_slice %140 {offsets = [0, 0], sizes = [1, 16], strides = [1, 1]} : vector<3x16xf32> to vector<1x16xf32>
    %143 = arith.mulf %141, %142 : vector<1x16xf32>
    %144 = vector.extract_strided_slice %140 {offsets = [1, 0], sizes = [1, 16], strides = [1, 1]} : vector<3x16xf32> to vector<1x16xf32>
    %145 = vector.extract_strided_slice %140 {offsets = [1, 0], sizes = [1, 16], strides = [1, 1]} : vector<3x16xf32> to vector<1x16xf32>
    %146 = arith.mulf %144, %145 : vector<1x16xf32>
    %147 = arith.addf %143, %146 : vector<1x16xf32>
    %148 = vector.extract_strided_slice %140 {offsets = [2, 0], sizes = [1, 16], strides = [1, 1]} : vector<3x16xf32> to vector<1x16xf32>
    %149 = vector.extract_strided_slice %140 {offsets = [2, 0], sizes = [1, 16], strides = [1, 1]} : vector<3x16xf32> to vector<1x16xf32>
    %150 = arith.mulf %148, %149 : vector<1x16xf32>
    %151 = arith.addf %147, %150 : vector<1x16xf32>
    %cst_41 = arith.constant 1.000000e-24 : f32
    %152 = vector.broadcast %cst_41 : f32 to vector<1x16xf32>
    %153 = arith.maximumf %151, %152 : vector<1x16xf32>
    %154 = math.rsqrt %153 : vector<1x16xf32>
    %cst_42 = arith.constant dense<0.000000e+00> : vector<24x16xf32>
    %155 = tpu.matmul %6, %140, %cst_42 {dimension_numbers = #tpu.dot_dimension_numbers<[1], [0], [0], [1], [0, 0, 1, 1], [], []>} : vector<24x3xf32>, vector<3x16xf32>, vector<24x16xf32> -> vector<24x16xf32>
    %cst_43 = arith.constant 0.000000e+00 : f32
    %156 = vector.broadcast %cst_43 : f32 to vector<24x16xf32>
    %157 = arith.maximumf %155, %156 : vector<24x16xf32>
    %158 = vector.broadcast %154 : vector<1x16xf32> to vector<24x16xf32>
    %159 = arith.mulf %157, %158 : vector<24x16xf32>
    %160 = arith.mulf %159, %139 : vector<24x16xf32>
    %161 = arith.maximumf %132, %160 : vector<24x16xf32>
    %162 = vector.extract_strided_slice %5 {offsets = [5, 0], sizes = [1, 16], strides = [1, 1]} : vector<8x16xi32> to vector<1x16xi32>
    %163 = vector.broadcast %162 : vector<1x16xi32> to vector<16x16xi32>
    %164 = arith.cmpi eq, %17, %163 : vector<16x16xi32>
    %165 = arith.extui %164 : vector<16x16xi1> to vector<16x16xi32>
    %166 = arith.sitofp %165 : vector<16x16xi32> to vector<16x16xf32>
    %cst_44 = arith.constant dense<0.000000e+00> : vector<3x16xf32>
    %167 = tpu.matmul %1, %166, %cst_44 {dimension_numbers = #tpu.dot_dimension_numbers<[1], [0], [0], [1], [0, 0, 1, 1], [], []>} : vector<3x16xf32>, vector<16x16xf32>, vector<3x16xf32> -> vector<3x16xf32>
    %cst_45 = arith.constant dense<0.000000e+00> : vector<24x16xf32>
    %168 = tpu.matmul %11, %166, %cst_45 {dimension_numbers = #tpu.dot_dimension_numbers<[1], [0], [0], [1], [0, 0, 1, 1], [], []>} : vector<24x16xf32>, vector<16x16xf32>, vector<24x16xf32> -> vector<24x16xf32>
    %169 = arith.subf %167, %1 : vector<3x16xf32>
    %170 = vector.extract_strided_slice %169 {offsets = [0, 0], sizes = [1, 16], strides = [1, 1]} : vector<3x16xf32> to vector<1x16xf32>
    %171 = vector.extract_strided_slice %169 {offsets = [0, 0], sizes = [1, 16], strides = [1, 1]} : vector<3x16xf32> to vector<1x16xf32>
    %172 = arith.mulf %170, %171 : vector<1x16xf32>
    %173 = vector.extract_strided_slice %169 {offsets = [1, 0], sizes = [1, 16], strides = [1, 1]} : vector<3x16xf32> to vector<1x16xf32>
    %174 = vector.extract_strided_slice %169 {offsets = [1, 0], sizes = [1, 16], strides = [1, 1]} : vector<3x16xf32> to vector<1x16xf32>
    %175 = arith.mulf %173, %174 : vector<1x16xf32>
    %176 = arith.addf %172, %175 : vector<1x16xf32>
    %177 = vector.extract_strided_slice %169 {offsets = [2, 0], sizes = [1, 16], strides = [1, 1]} : vector<3x16xf32> to vector<1x16xf32>
    %178 = vector.extract_strided_slice %169 {offsets = [2, 0], sizes = [1, 16], strides = [1, 1]} : vector<3x16xf32> to vector<1x16xf32>
    %179 = arith.mulf %177, %178 : vector<1x16xf32>
    %180 = arith.addf %176, %179 : vector<1x16xf32>
    %cst_46 = arith.constant 1.000000e-24 : f32
    %181 = vector.broadcast %cst_46 : f32 to vector<1x16xf32>
    %182 = arith.maximumf %180, %181 : vector<1x16xf32>
    %183 = math.rsqrt %182 : vector<1x16xf32>
    %cst_47 = arith.constant dense<0.000000e+00> : vector<24x16xf32>
    %184 = tpu.matmul %6, %169, %cst_47 {dimension_numbers = #tpu.dot_dimension_numbers<[1], [0], [0], [1], [0, 0, 1, 1], [], []>} : vector<24x3xf32>, vector<3x16xf32>, vector<24x16xf32> -> vector<24x16xf32>
    %cst_48 = arith.constant 0.000000e+00 : f32
    %185 = vector.broadcast %cst_48 : f32 to vector<24x16xf32>
    %186 = arith.maximumf %184, %185 : vector<24x16xf32>
    %187 = vector.broadcast %183 : vector<1x16xf32> to vector<24x16xf32>
    %188 = arith.mulf %186, %187 : vector<24x16xf32>
    %189 = arith.mulf %188, %168 : vector<24x16xf32>
    %190 = arith.maximumf %161, %189 : vector<24x16xf32>
    %191 = vector.extract_strided_slice %5 {offsets = [6, 0], sizes = [1, 16], strides = [1, 1]} : vector<8x16xi32> to vector<1x16xi32>
    %192 = vector.broadcast %191 : vector<1x16xi32> to vector<16x16xi32>
    %193 = arith.cmpi eq, %17, %192 : vector<16x16xi32>
    %194 = arith.extui %193 : vector<16x16xi1> to vector<16x16xi32>
    %195 = arith.sitofp %194 : vector<16x16xi32> to vector<16x16xf32>
    %cst_49 = arith.constant dense<0.000000e+00> : vector<3x16xf32>
    %196 = tpu.matmul %1, %195, %cst_49 {dimension_numbers = #tpu.dot_dimension_numbers<[1], [0], [0], [1], [0, 0, 1, 1], [], []>} : vector<3x16xf32>, vector<16x16xf32>, vector<3x16xf32> -> vector<3x16xf32>
    %cst_50 = arith.constant dense<0.000000e+00> : vector<24x16xf32>
    %197 = tpu.matmul %11, %195, %cst_50 {dimension_numbers = #tpu.dot_dimension_numbers<[1], [0], [0], [1], [0, 0, 1, 1], [], []>} : vector<24x16xf32>, vector<16x16xf32>, vector<24x16xf32> -> vector<24x16xf32>
    %198 = arith.subf %196, %1 : vector<3x16xf32>
    %199 = vector.extract_strided_slice %198 {offsets = [0, 0], sizes = [1, 16], strides = [1, 1]} : vector<3x16xf32> to vector<1x16xf32>
    %200 = vector.extract_strided_slice %198 {offsets = [0, 0], sizes = [1, 16], strides = [1, 1]} : vector<3x16xf32> to vector<1x16xf32>
    %201 = arith.mulf %199, %200 : vector<1x16xf32>
    %202 = vector.extract_strided_slice %198 {offsets = [1, 0], sizes = [1, 16], strides = [1, 1]} : vector<3x16xf32> to vector<1x16xf32>
    %203 = vector.extract_strided_slice %198 {offsets = [1, 0], sizes = [1, 16], strides = [1, 1]} : vector<3x16xf32> to vector<1x16xf32>
    %204 = arith.mulf %202, %203 : vector<1x16xf32>
    %205 = arith.addf %201, %204 : vector<1x16xf32>
    %206 = vector.extract_strided_slice %198 {offsets = [2, 0], sizes = [1, 16], strides = [1, 1]} : vector<3x16xf32> to vector<1x16xf32>
    %207 = vector.extract_strided_slice %198 {offsets = [2, 0], sizes = [1, 16], strides = [1, 1]} : vector<3x16xf32> to vector<1x16xf32>
    %208 = arith.mulf %206, %207 : vector<1x16xf32>
    %209 = arith.addf %205, %208 : vector<1x16xf32>
    %cst_51 = arith.constant 1.000000e-24 : f32
    %210 = vector.broadcast %cst_51 : f32 to vector<1x16xf32>
    %211 = arith.maximumf %209, %210 : vector<1x16xf32>
    %212 = math.rsqrt %211 : vector<1x16xf32>
    %cst_52 = arith.constant dense<0.000000e+00> : vector<24x16xf32>
    %213 = tpu.matmul %6, %198, %cst_52 {dimension_numbers = #tpu.dot_dimension_numbers<[1], [0], [0], [1], [0, 0, 1, 1], [], []>} : vector<24x3xf32>, vector<3x16xf32>, vector<24x16xf32> -> vector<24x16xf32>
    %cst_53 = arith.constant 0.000000e+00 : f32
    %214 = vector.broadcast %cst_53 : f32 to vector<24x16xf32>
    %215 = arith.maximumf %213, %214 : vector<24x16xf32>
    %216 = vector.broadcast %212 : vector<1x16xf32> to vector<24x16xf32>
    %217 = arith.mulf %215, %216 : vector<24x16xf32>
    %218 = arith.mulf %217, %197 : vector<24x16xf32>
    %219 = arith.maximumf %190, %218 : vector<24x16xf32>
    %220 = vector.extract_strided_slice %5 {offsets = [7, 0], sizes = [1, 16], strides = [1, 1]} : vector<8x16xi32> to vector<1x16xi32>
    %221 = vector.broadcast %220 : vector<1x16xi32> to vector<16x16xi32>
    %222 = arith.cmpi eq, %17, %221 : vector<16x16xi32>
    %223 = arith.extui %222 : vector<16x16xi1> to vector<16x16xi32>
    %224 = arith.sitofp %223 : vector<16x16xi32> to vector<16x16xf32>
    %cst_54 = arith.constant dense<0.000000e+00> : vector<3x16xf32>
    %225 = tpu.matmul %1, %224, %cst_54 {dimension_numbers = #tpu.dot_dimension_numbers<[1], [0], [0], [1], [0, 0, 1, 1], [], []>} : vector<3x16xf32>, vector<16x16xf32>, vector<3x16xf32> -> vector<3x16xf32>
    %cst_55 = arith.constant dense<0.000000e+00> : vector<24x16xf32>
    %226 = tpu.matmul %11, %224, %cst_55 {dimension_numbers = #tpu.dot_dimension_numbers<[1], [0], [0], [1], [0, 0, 1, 1], [], []>} : vector<24x16xf32>, vector<16x16xf32>, vector<24x16xf32> -> vector<24x16xf32>
    %227 = arith.subf %225, %1 : vector<3x16xf32>
    %228 = vector.extract_strided_slice %227 {offsets = [0, 0], sizes = [1, 16], strides = [1, 1]} : vector<3x16xf32> to vector<1x16xf32>
    %229 = vector.extract_strided_slice %227 {offsets = [0, 0], sizes = [1, 16], strides = [1, 1]} : vector<3x16xf32> to vector<1x16xf32>
    %230 = arith.mulf %228, %229 : vector<1x16xf32>
    %231 = vector.extract_strided_slice %227 {offsets = [1, 0], sizes = [1, 16], strides = [1, 1]} : vector<3x16xf32> to vector<1x16xf32>
    %232 = vector.extract_strided_slice %227 {offsets = [1, 0], sizes = [1, 16], strides = [1, 1]} : vector<3x16xf32> to vector<1x16xf32>
    %233 = arith.mulf %231, %232 : vector<1x16xf32>
    %234 = arith.addf %230, %233 : vector<1x16xf32>
    %235 = vector.extract_strided_slice %227 {offsets = [2, 0], sizes = [1, 16], strides = [1, 1]} : vector<3x16xf32> to vector<1x16xf32>
    %236 = vector.extract_strided_slice %227 {offsets = [2, 0], sizes = [1, 16], strides = [1, 1]} : vector<3x16xf32> to vector<1x16xf32>
    %237 = arith.mulf %235, %236 : vector<1x16xf32>
    %238 = arith.addf %234, %237 : vector<1x16xf32>
    %cst_56 = arith.constant 1.000000e-24 : f32
    %239 = vector.broadcast %cst_56 : f32 to vector<1x16xf32>
    %240 = arith.maximumf %238, %239 : vector<1x16xf32>
    %241 = math.rsqrt %240 : vector<1x16xf32>
    %cst_57 = arith.constant dense<0.000000e+00> : vector<24x16xf32>
    %242 = tpu.matmul %6, %227, %cst_57 {dimension_numbers = #tpu.dot_dimension_numbers<[1], [0], [0], [1], [0, 0, 1, 1], [], []>} : vector<24x3xf32>, vector<3x16xf32>, vector<24x16xf32> -> vector<24x16xf32>
    %cst_58 = arith.constant 0.000000e+00 : f32
    %243 = vector.broadcast %cst_58 : f32 to vector<24x16xf32>
    %244 = arith.maximumf %242, %243 : vector<24x16xf32>
    %245 = vector.broadcast %241 : vector<1x16xf32> to vector<24x16xf32>
    %246 = arith.mulf %244, %245 : vector<24x16xf32>
    %247 = arith.mulf %246, %226 : vector<24x16xf32>
    %248 = arith.maximumf %219, %247 : vector<24x16xf32>
    %c0_59 = arith.constant 0 : index
    %c0_60 = arith.constant 0 : index
    %249 = vector.load %arg9[%c0_59, %c0_60] : memref<8x24xf32, #tpu.memory_space<vmem>>, vector<8x24xf32>
    %cst_61 = arith.constant dense<0.000000e+00> : vector<8x16xf32>
    %250 = tpu.matmul %249, %248, %cst_61 {dimension_numbers = #tpu.dot_dimension_numbers<[1], [0], [0], [1], [0, 0, 1, 1], [], []>} : vector<8x24xf32>, vector<24x16xf32>, vector<8x16xf32> -> vector<8x16xf32>
    %251 = arith.addf %16, %250 : vector<8x16xf32>
    %c0_62 = arith.constant 0 : index
    %c0_63 = arith.constant 0 : index
    %c0_64 = arith.constant 0 : index
    %252 = vector.load %arg10[%c0_62, %c0_63, %c0_64] : memref<1x8x16xf32, #tpu.memory_space<vmem>>, vector<1x8x16xf32>
    %253 = vector.shape_cast %252 : vector<1x8x16xf32> to vector<8x16xf32>
    %254 = vector.shape_cast %251 : vector<8x16xf32> to vector<1x8x16xf32>
    tpu.vector_store %arg10[%c0_62, %c0_63, %c0_64], %254 {strides = array<i32>} : memref<1x8x16xf32, #tpu.memory_space<vmem>>, vector<1x8x16xf32>,
    return
  }
  func.func @transform_0(%arg0: i32) -> (i32, i32, i32) {
    %c0_i32 = arith.constant 0 : i32
    %c0_i32_0 = arith.constant 0 : i32
    %c0_i32_1 = arith.constant 0 : i32
    return %arg0, %c0_i32, %c0_i32_0 : i32, i32, i32
  }
  func.func @transform_1(%arg0: i32) -> (i32, i32, i32) {
    %c0_i32 = arith.constant 0 : i32
    %c0_i32_0 = arith.constant 0 : i32
    %c0_i32_1 = arith.constant 0 : i32
    return %arg0, %c0_i32, %c0_i32_0 : i32, i32, i32
  }
  func.func @transform_2(%arg0: i32) -> (i32, i32, i32) {
    %c0_i32 = arith.constant 0 : i32
    %c0_i32_0 = arith.constant 0 : i32
    %c0_i32_1 = arith.constant 0 : i32
    return %arg0, %c0_i32, %c0_i32_0 : i32, i32, i32
  }
  func.func @transform_3(%arg0: i32) -> (i32, i32) {
    %c0_i32 = arith.constant 0 : i32
    %c0_i32_0 = arith.constant 0 : i32
    %c0_i32_1 = arith.constant 0 : i32
    return %c0_i32, %c0_i32_0 : i32, i32
  }
  func.func @transform_4(%arg0: i32) -> (i32, i32) {
    %c0_i32 = arith.constant 0 : i32
    %c0_i32_0 = arith.constant 0 : i32
    %c0_i32_1 = arith.constant 0 : i32
    return %c0_i32, %c0_i32_0 : i32, i32
  }
  func.func @transform_5(%arg0: i32) -> (i32, i32) {
    %c0_i32 = arith.constant 0 : i32
    %c0_i32_0 = arith.constant 0 : i32
    %c0_i32_1 = arith.constant 0 : i32
    return %c0_i32, %c0_i32_0 : i32, i32
  }
  func.func @transform_6(%arg0: i32) -> (i32, i32) {
    %c0_i32 = arith.constant 0 : i32
    %c0_i32_0 = arith.constant 0 : i32
    %c0_i32_1 = arith.constant 0 : i32
    return %c0_i32, %c0_i32_0 : i32, i32
  }
  func.func @transform_7(%arg0: i32) -> (i32, i32) {
    %c0_i32 = arith.constant 0 : i32
    %c0_i32_0 = arith.constant 0 : i32
    %c0_i32_1 = arith.constant 0 : i32
    return %c0_i32, %c0_i32_0 : i32, i32
  }
  func.func @transform_8(%arg0: i32) -> (i32, i32) {
    %c0_i32 = arith.constant 0 : i32
    %c0_i32_0 = arith.constant 0 : i32
    %c0_i32_1 = arith.constant 0 : i32
    return %c0_i32, %c0_i32_0 : i32, i32
  }
  func.func @transform_9(%arg0: i32) -> (i32, i32, i32) {
    %c0_i32 = arith.constant 0 : i32
    %c0_i32_0 = arith.constant 0 : i32
    %c0_i32_1 = arith.constant 0 : i32
    return %arg0, %c0_i32, %c0_i32_0 : i32, i32, i32
  }
}

</mosaic_0001>

<llo_original>
// kernel: tpu_custom_call.1
$region0: #{tpu_custom_call.1}
  #allocation0 [shape = 'u32[]', space=smem, size = 0x4, offset = 0x4, fixed_abs, tag = 'smem constant byte address 0x4 - core index']
  #allocation1 [shape = 'u32[144,128]{1,0:T(1,128)}', space=vmem, size = 0x12000, scoped, tag = 'internal scratch']
  %s0 = inlined_call_operand.vmem [shape: s32[2,8,16], index: 0, kind: input, shape index: {}]
  %s1 = inlined_call_operand.vmem [shape: f32[2,3,16], index: 1, kind: input, shape index: {}]
  %s2 = inlined_call_operand.vmem [shape: f32[2,4,16], index: 2, kind: input, shape index: {}]
  %s3 = inlined_call_operand.vmem [shape: f32[24,4], index: 3, kind: input, shape index: {}]
  %s4 = inlined_call_operand.vmem [shape: f32[24,1], index: 4, kind: input, shape index: {}]
  %s5 = inlined_call_operand.vmem [shape: f32[8,4], index: 5, kind: input, shape index: {}]
  %s6 = inlined_call_operand.vmem [shape: f32[8,1], index: 6, kind: input, shape index: {}]
  %s7 = inlined_call_operand.vmem [shape: f32[24,3], index: 7, kind: input, shape index: {}]
  %s8 = inlined_call_operand.vmem [shape: f32[8,24], index: 8, kind: input, shape index: {}]
  %s9 = inlined_call_operand.hbm [shape: f32[2,8,16], index: 9, kind: output, shape index: {}]
  %s10 = sld [smem:[#allocation0]]
  $region69: #{tpu_custom_call.1} parent=0
    _
  %s12 = ssub.s32 1, %s10
  %s13 = scalar_select 0, %s12, %s10
  $region1: #{tpu_custom_call.1} parent=0
    #allocation2 [shape = 'u8[8192]{0}', space=vmem, size = 0x2000, scoped, tag = 'output window, operand 0']
    #allocation3 [shape = 's32[2]{0}', space=sflag, size = 0x8, scoped, tag = 'scoped memory for tpu_custom_call.1']
    %14 = vsyncpa [#allocation3], 0
    %s15 = scalar_lea.sflag [#allocation3], 1
    %16 = vsyncpa %s15, 0
    loop: start=0, step=1, limit=4
    $region2: #{tpu_custom_call.1} parent=1 // loop_pre_header
      _
    $region3: #{tpu_custom_call.1} parent=1 // loop_header
      %s18 = sphi 0, %s22
      %p19 = scmp.ge.s32.totalorder %s18, 4
      %s28 = sphi 0, %s30
      %s31 = sphi 0, %s28
      %s32 = sphi 0, %s31
      %s48 = sphi 0, %s32
      %s54 = sphi 0, %s56
      %s57 = sphi 0, %s54
      %s58 = sphi 0, %s57
      %s74 = sphi 0, %s58
      %s80 = sphi 0, %s82
      %s83 = sphi 0, %s80
      %s84 = sphi 0, %s83
      %s100 = sphi 0, %s84
      %s104 = sphi 0, %s104
      %s106 = sphi 0, %s104
      %s107 = sphi 0, %s106
      %s121 = sphi 0, %s107
      %s125 = sphi 0, %s125
      %s127 = sphi 0, %s125
      %s128 = sphi 0, %s127
      %s142 = sphi 0, %s128
      %s146 = sphi 0, %s146
      %s148 = sphi 0, %s146
      %s149 = sphi 0, %s148
      %s163 = sphi 0, %s149
      %s167 = sphi 0, %s167
      %s169 = sphi 0, %s167
      %s170 = sphi 0, %s169
      %s184 = sphi 0, %s170
      %s188 = sphi 0, %s188
      %s190 = sphi 0, %s188
      %s191 = sphi 0, %s190
      %s205 = sphi 0, %s191
      %s209 = sphi 0, %s209
      %s211 = sphi 0, %s209
      %s212 = sphi 0, %s211
      %s226 = sphi 0, %s212
      %s232 = sphi 0, %s234
      %s235 = sphi 0, %s232
      %s236 = sphi 0, %s235
      %s252 = sphi 0, %s236
    $region4: #{tpu_custom_call.1} parent=1 // loop_header_branch
      %21 = sbr.rel (%p19) target = $region8
    $region5: #{tpu_custom_call.1} parent=1 // loop_body
      %s23 = ssub.s32 %s18, 1
      %s24 = ssub.s32 %s18, 2
      %s25 = sadd.s32 %s18, 1
      %s26 = ssub.s32 %s18, %s25
      %p27 = scmp.eq.s32.totalorder %s26, 0
      %s29 = sadd.s32 %s28, 1
      %s30 = scalar_select %p27, %s28, %s29
      %p33 = pneg %p27
      %p34 = scmp.eq.s32.totalorder %s18, 1
      %p35 = por %p33, %p34
      %p36 = scmp.ne.s32.totalorder %s28, %s31
      %p37 = scmp.eq.s32.totalorder %s18, 0
      %p38 = por %p36, %p37
      %p39 = scmp.ne.s32.totalorder %s28, %s31
      %p40 = scmp.eq.s32.totalorder %s23, 1
      %p41 = por %p39, %p40
      %p42 = scmp.ne.s32.totalorder %s31, %s32
      %p43 = scmp.eq.s32.totalorder %s23, 0
      %p44 = por %p42, %p43
      %p45 = scmp.ne.s32.totalorder %s31, %s32
      %p46 = scmp.eq.s32.totalorder %s24, 1
      %p47 = por %p45, %p46
      %p49 = scmp.ne.s32.totalorder %s32, %s48
      %p50 = scmp.eq.s32.totalorder %s24, 0
      %p51 = por %p49, %p50
      %s52 = ssub.s32 %s18, %s25
      %p53 = scmp.eq.s32.totalorder %s52, 0
      %s55 = sadd.s32 %s54, 1
      %s56 = scalar_select %p53, %s54, %s55
      %p59 = pneg %p53
      %p60 = scmp.eq.s32.totalorder %s18, 1
      %p61 = por %p59, %p60
      %p62 = scmp.ne.s32.totalorder %s54, %s57
      %p63 = scmp.eq.s32.totalorder %s18, 0
      %p64 = por %p62, %p63
      %p65 = scmp.ne.s32.totalorder %s54, %s57
      %p66 = scmp.eq.s32.totalorder %s23, 1
      %p67 = por %p65, %p66
      %p68 = scmp.ne.s32.totalorder %s57, %s58
      %p69 = scmp.eq.s32.totalorder %s23, 0
      %p70 = por %p68, %p69
      %p71 = scmp.ne.s32.totalorder %s57, %s58
      %p72 = scmp.eq.s32.totalorder %s24, 1
      %p73 = por %p71, %p72
      %p75 = scmp.ne.s32.totalorder %s58, %s74
      %p76 = scmp.eq.s32.totalorder %s24, 0
      %p77 = por %p75, %p76
      %s78 = ssub.s32 %s18, %s25
      %p79 = scmp.eq.s32.totalorder %s78, 0
      %s81 = sadd.s32 %s80, 1
      %s82 = scalar_select %p79, %s80, %s81
      %p85 = pneg %p79
      %p86 = scmp.eq.s32.totalorder %s18, 1
      %p87 = por %p85, %p86
      %p88 = scmp.ne.s32.totalorder %s80, %s83
      %p89 = scmp.eq.s32.totalorder %s18, 0
      %p90 = por %p88, %p89
      %p91 = scmp.ne.s32.totalorder %s80, %s83
      %p92 = scmp.eq.s32.totalorder %s23, 1
      %p93 = por %p91, %p92
      %p94 = scmp.ne.s32.totalorder %s83, %s84
      %p95 = scmp.eq.s32.totalorder %s23, 0
      %p96 = por %p94, %p95
      %p97 = scmp.ne.s32.totalorder %s83, %s84
      %p98 = scmp.eq.s32.totalorder %s24, 1
      %p99 = por %p97, %p98
      %p101 = scmp.ne.s32.totalorder %s84, %s100
      %p102 = scmp.eq.s32.totalorder %s24, 0
      %p103 = por %p101, %p102
      %s105 = sadd.s32 %s104, 1
      %p108 = scmp.eq.s32.totalorder %s18, 1
      %p109 = scmp.ne.s32.totalorder %s104, %s106
      %p110 = scmp.eq.s32.totalorder %s18, 0
      %p111 = por %p109, %p110
      %p112 = scmp.ne.s32.totalorder %s104, %s106
      %p113 = scmp.eq.s32.totalorder %s23, 1
      %p114 = por %p112, %p113
      %p115 = scmp.ne.s32.totalorder %s106, %s107
      %p116 = scmp.eq.s32.totalorder %s23, 0
      %p117 = por %p115, %p116
      %p118 = scmp.ne.s32.totalorder %s106, %s107
      %p119 = scmp.eq.s32.totalorder %s24, 1
      %p120 = por %p118, %p119
      %p122 = scmp.ne.s32.totalorder %s107, %s121
      %p123 = scmp.eq.s32.totalorder %s24, 0
      %p124 = por %p122, %p123
      %s126 = sadd.s32 %s125, 1
      %p129 = scmp.eq.s32.totalorder %s18, 1
      %p130 = scmp.ne.s32.totalorder %s125, %s127
      %p131 = scmp.eq.s32.totalorder %s18, 0
      %p132 = por %p130, %p131
      %p133 = scmp.ne.s32.totalorder %s125, %s127
      %p134 = scmp.eq.s32.totalorder %s23, 1
      %p135 = por %p133, %p134
      %p136 = scmp.ne.s32.totalorder %s127, %s128
      %p137 = scmp.eq.s32.totalorder %s23, 0
      %p138 = por %p136, %p137
      %p139 = scmp.ne.s32.totalorder %s127, %s128
      %p140 = scmp.eq.s32.totalorder %s24, 1
      %p141 = por %p139, %p140
      %p143 = scmp.ne.s32.totalorder %s128, %s142
      %p144 = scmp.eq.s32.totalorder %s24, 0
      %p145 = por %p143, %p144
      %s147 = sadd.s32 %s146, 1
      %p150 = scmp.eq.s32.totalorder %s18, 1
      %p151 = scmp.ne.s32.totalorder %s146, %s148
      %p152 = scmp.eq.s32.totalorder %s18, 0
      %p153 = por %p151, %p152
      %p154 = scmp.ne.s32.totalorder %s146, %s148
      %p155 = scmp.eq.s32.totalorder %s23, 1
      %p156 = por %p154, %p155
      %p157 = scmp.ne.s32.totalorder %s148, %s149
      %p158 = scmp.eq.s32.totalorder %s23, 0
      %p159 = por %p157, %p158
      %p160 = scmp.ne.s32.totalorder %s148, %s149
      %p161 = scmp.eq.s32.totalorder %s24, 1
      %p162 = por %p160, %p161
      %p164 = scmp.ne.s32.totalorder %s149, %s163
      %p165 = scmp.eq.s32.totalorder %s24, 0
      %p166 = por %p164, %p165
      %s168 = sadd.s32 %s167, 1
      %p171 = scmp.eq.s32.totalorder %s18, 1
      %p172 = scmp.ne.s32.totalorder %s167, %s169
      %p173 = scmp.eq.s32.totalorder %s18, 0
      %p174 = por %p172, %p173
      %p175 = scmp.ne.s32.totalorder %s167, %s169
      %p176 = scmp.eq.s32.totalorder %s23, 1
      %p177 = por %p175, %p176
      %p178 = scmp.ne.s32.totalorder %s169, %s170
      %p179 = scmp.eq.s32.totalorder %s23, 0
      %p180 = por %p178, %p179
      %p181 = scmp.ne.s32.totalorder %s169, %s170
      %p182 = scmp.eq.s32.totalorder %s24, 1
      %p183 = por %p181, %p182
      %p185 = scmp.ne.s32.totalorder %s170, %s184
      %p186 = scmp.eq.s32.totalorder %s24, 0
      %p187 = por %p185, %p186
      %s189 = sadd.s32 %s188, 1
      %p192 = scmp.eq.s32.totalorder %s18, 1
      %p193 = scmp.ne.s32.totalorder %s188, %s190
      %p194 = scmp.eq.s32.totalorder %s18, 0
      %p195 = por %p193, %p194
      %p196 = scmp.ne.s32.totalorder %s188, %s190
      %p197 = scmp.eq.s32.totalorder %s23, 1
      %p198 = por %p196, %p197
      %p199 = scmp.ne.s32.totalorder %s190, %s191
      %p200 = scmp.eq.s32.totalorder %s23, 0
      %p201 = por %p199, %p200
      %p202 = scmp.ne.s32.totalorder %s190, %s191
      %p203 = scmp.eq.s32.totalorder %s24, 1
      %p204 = por %p202, %p203
      %p206 = scmp.ne.s32.totalorder %s191, %s205
      %p207 = scmp.eq.s32.totalorder %s24, 0
      %p208 = por %p206, %p207
      %s210 = sadd.s32 %s209, 1
      %p213 = scmp.eq.s32.totalorder %s18, 1
      %p214 = scmp.ne.s32.totalorder %s209, %s211
      %p215 = scmp.eq.s32.totalorder %s18, 0
      %p216 = por %p214, %p215
      %p217 = scmp.ne.s32.totalorder %s209, %s211
      %p218 = scmp.eq.s32.totalorder %s23, 1
      %p219 = por %p217, %p218
      %p220 = scmp.ne.s32.totalorder %s211, %s212
      %p221 = scmp.eq.s32.totalorder %s23, 0
      %p222 = por %p220, %p221
      %p223 = scmp.ne.s32.totalorder %s211, %s212
      %p224 = scmp.eq.s32.totalorder %s24, 1
      %p225 = por %p223, %p224
      %p227 = scmp.ne.s32.totalorder %s212, %s226
      %p228 = scmp.eq.s32.totalorder %s24, 0
      %p229 = por %p227, %p228
      %s230 = ssub.s32 %s18, %s25
      %p231 = scmp.eq.s32.totalorder %s230, 0
      %s233 = sadd.s32 %s232, 1
      %s234 = scalar_select %p231, %s232, %s233
      %p237 = pneg %p231
      %p238 = scmp.eq.s32.totalorder %s18, 1
      %p239 = por %p237, %p238
      %p240 = scmp.ne.s32.totalorder %s232, %s235
      %p241 = scmp.eq.s32.totalorder %s18, 0
      %p242 = por %p240, %p241
      %p243 = scmp.ne.s32.totalorder %s232, %s235
      %p244 = scmp.eq.s32.totalorder %s23, 1
      %p245 = por %p243, %p244
      %p246 = scmp.ne.s32.totalorder %s235, %s236
      %p247 = scmp.eq.s32.totalorder %s23, 0
      %p248 = por %p246, %p247
      %p249 = scmp.ne.s32.totalorder %s235, %s236
      %p250 = scmp.eq.s32.totalorder %s24, 1
      %p251 = por %p249, %p250
      %p253 = scmp.ne.s32.totalorder %s236, %s252
      %p254 = scmp.eq.s32.totalorder %s24, 0
      %p255 = por %p253, %p254
      %p256 = scmp.le.s32.totalorder 1, %s18
      %p257 = scmp.lt.s32.totalorder %s18, 3
      %p258 = pnand %p256, %p257
      %p259 = pneg %p258
      // Predicated region
      $region9: #{tpu_custom_call.1} parent=5 // pred_check
        _
      $region10: #{tpu_custom_call.1} parent=5 // pred_check_branch
        %261 = sbr.rel (%p258) target = $region12
      $region11: #{tpu_custom_call.1} parent=5 // pred_region
        %s262 = ssub.s32 %s18, 1
        // Predicated region
        $region13: #{tpu_custom_call.1} parent=11 // pred_check
          %p263 = pneg %p117
        $region14: #{tpu_custom_call.1} parent=11 // pred_check_branch
          %265 = sbr.rel (%p263) target = $region16
        $region15: #{tpu_custom_call.1} parent=11 // pred_region
          _
        $region16: #{tpu_custom_call.1} parent=11 // pred_fallthru
          _
        // Predicated region
        $region17: #{tpu_custom_call.1} parent=11 // pred_check
          %p266 = pneg %p138
        $region18: #{tpu_custom_call.1} parent=11 // pred_check_branch
          %268 = sbr.rel (%p266) target = $region20
        $region19: #{tpu_custom_call.1} parent=11 // pred_region
          _
        $region20: #{tpu_custom_call.1} parent=11 // pred_fallthru
          _
        // Predicated region
        $region21: #{tpu_custom_call.1} parent=11 // pred_check
          %p269 = pneg %p159
        $region22: #{tpu_custom_call.1} parent=11 // pred_check_branch
          %271 = sbr.rel (%p269) target = $region24
        $region23: #{tpu_custom_call.1} parent=11 // pred_region
          _
        $region24: #{tpu_custom_call.1} parent=11 // pred_fallthru
          _
        // Predicated region
        $region25: #{tpu_custom_call.1} parent=11 // pred_check
          %p272 = pneg %p180
        $region26: #{tpu_custom_call.1} parent=11 // pred_check_branch
          %274 = sbr.rel (%p272) target = $region28
        $region27: #{tpu_custom_call.1} parent=11 // pred_region
          _
        $region28: #{tpu_custom_call.1} parent=11 // pred_fallthru
          _
        // Predicated region
        $region29: #{tpu_custom_call.1} parent=11 // pred_check
          %p275 = pneg %p201
        $region30: #{tpu_custom_call.1} parent=11 // pred_check_branch
          %277 = sbr.rel (%p275) target = $region32
        $region31: #{tpu_custom_call.1} parent=11 // pred_region
          _
        $region32: #{tpu_custom_call.1} parent=11 // pred_fallthru
          _
        // Predicated region
        $region33: #{tpu_custom_call.1} parent=11 // pred_check
          %p278 = pneg %p222
        $region34: #{tpu_custom_call.1} parent=11 // pred_check_branch
          %280 = sbr.rel (%p278) target = $region36
        $region35: #{tpu_custom_call.1} parent=11 // pred_region
          _
        $region36: #{tpu_custom_call.1} parent=11 // pred_fallthru
          _
      $region12: #{tpu_custom_call.1} parent=5 // pred_fallthru
        _
      %p281 = scmp.lt.s32.totalorder %s18, 2
      // Predicated region
      $region37: #{tpu_custom_call.1} parent=5 // pred_check
        %p282 = pneg %p281
      $region38: #{tpu_custom_call.1} parent=5 // pred_check_branch
        %284 = sbr.rel (%p282) target = $region40
      $region39: #{tpu_custom_call.1} parent=5 // pred_region
        // Predicated region
        $region41: #{tpu_custom_call.1} parent=39 // pred_check
          %p285 = pneg %p38
        $region42: #{tpu_custom_call.1} parent=39 // pred_check_branch
          %287 = sbr.rel (%p285) target = $region44
        $region43: #{tpu_custom_call.1} parent=39 // pred_region
          %p288 = scmp.lt.s32.totalorder %s18, 1
          %s289 = scalar_select %p288, %s18, 1
          %s290 = smul.addr %s289, 8
          %s291 = scalar_lea.vmem %s0, %s290
        $region44: #{tpu_custom_call.1} parent=39 // pred_fallthru
          _
        // Predicated region
        $region45: #{tpu_custom_call.1} parent=39 // pred_check
          %p292 = pneg %p64
        $region46: #{tpu_custom_call.1} parent=39 // pred_check_branch
          %294 = sbr.rel (%p292) target = $region48
        $region47: #{tpu_custom_call.1} parent=39 // pred_region
          %p295 = scmp.lt.s32.totalorder %s18, 1
          %s296 = scalar_select %p295, %s18, 1
          %s297 = smul.addr %s296, 4
          %s298 = scalar_lea.vmem %s1, %s297
        $region48: #{tpu_custom_call.1} parent=39 // pred_fallthru
          _
        // Predicated region
        $region49: #{tpu_custom_call.1} parent=39 // pred_check
          %p299 = pneg %p90
        $region50: #{tpu_custom_call.1} parent=39 // pred_check_branch
          %301 = sbr.rel (%p299) target = $region52
        $region51: #{tpu_custom_call.1} parent=39 // pred_region
          %p302 = scmp.lt.s32.totalorder %s18, 1
          %s303 = scalar_select %p302, %s18, 1
          %s304 = smul.addr %s303, 4
          %s305 = scalar_lea.vmem %s2, %s304
        $region52: #{tpu_custom_call.1} parent=39 // pred_fallthru
          _
      $region40: #{tpu_custom_call.1} parent=5 // pred_fallthru
        _
      %p306 = scmp.le.s32.totalorder 1, %s18
      %p307 = scmp.lt.s32.totalorder %s18, 3
      %p308 = pnand %p306, %p307
      %p309 = pneg %p308
      // Predicated region
      $region53: #{tpu_custom_call.1} parent=5 // pred_check
        _
      $region54: #{tpu_custom_call.1} parent=5 // pred_check_branch
        %311 = sbr.rel (%p308) target = $region56
      $region55: #{tpu_custom_call.1} parent=5 // pred_region
        %s312 = ssub.s32 %s18, 1
        %p313 = scmp.lt.s32.totalorder %s23, 1
        %s314 = scalar_select %p313, %s23, 1
        %s315 = smul.addr %s314, 8
        %s316 = scalar_lea.vmem %s0, %s315
        %p317 = pneg %p44
        %p318 = pneg %p41
        %p319 = scmp.lt.s32.totalorder %s23, 1
        %s320 = scalar_select %p319, %s23, 1
        %s321 = smul.addr %s320, 4
        %s322 = scalar_lea.vmem %s1, %s321
        %p323 = pneg %p70
        %p324 = pneg %p67
        %p325 = scmp.lt.s32.totalorder %s23, 1
        %s326 = scalar_select %p325, %s23, 1
        %s327 = smul.addr %s326, 4
        %s328 = scalar_lea.vmem %s2, %s327
        %p329 = pneg %p96
        %p330 = pneg %p93
        %p331 = pneg %p117
        %p332 = pneg %p114
        %p333 = pneg %p138
        %p334 = pneg %p135
        %p335 = pneg %p159
        %p336 = pneg %p156
        %p337 = pneg %p180
        %p338 = pneg %p177
        %p339 = pneg %p201
        %p340 = pneg %p198
        %p341 = pneg %p222
        %p342 = pneg %p219
        %p343 = pneg %p248
        %p344 = pneg %p245
        %s345 = sand.u32 %s235, 1
        %s346 = scalar_lea.sflag [#allocation3], %s345
        %s347 = sand.u32 %s235, 1
        %s348 = smul.addr %s347, 8
        %s349 = scalar_lea.vmem [#allocation2], %s348
        %p350 = scmp.lt.s32.totalorder %s23, 1
        %s351 = scalar_select %p350, %s23, 1
        %s352 = smul.addr %s351, 8
        %s353 = scalar_lea.vmem %s0, %s352
        %p354 = scmp.lt.s32.totalorder %s23, 1
        %s355 = scalar_select %p354, %s23, 1
        %s356 = smul.addr %s355, 4
        %s357 = scalar_lea.vmem %s1, %s356
        %p358 = scmp.lt.s32.totalorder %s23, 1
        %s359 = scalar_select %p358, %s23, 1
        %s360 = smul.addr %s359, 4
        %s361 = scalar_lea.vmem %s2, %s360
        %v362 = vld [vmem:[%s357] sm:$0x7]
        %v363 = vld [vmem:[%s361] sm:$0xf]
        %v364 = vld [vmem:[%s353] sm:$0xff]
        %v365 = vld [vmem:[%s7] sm:$0xff]
        %v366 = vld [vmem:[%s7 + $0x8] sm:$0xff]
        %v367 = vld [vmem:[%s7 + $0x10] sm:$0xff]
        %v368 = vld [vmem:[%s3] sm:$0xff]
        %v369 = vld [vmem:[%s3 + $0x8] sm:$0xff]
        %v370 = vld [vmem:[%s3 + $0x10] sm:$0xff]
        %v371 = vld [vmem:[%s4] sm:$0xff]
        %v372 = vld [vmem:[%s4 + $0x8] sm:$0xff]
        %v373 = vld [vmem:[%s4 + $0x10] sm:$0xff]
        %375 = vset.pattern.permute.xlu0 0
        %376 = vperm.xlu0 %375, %v371
        %v377 = vpop.permute.xlu0 %376
        %380 = vset.pattern.permute.xlu0 0
        %381 = vperm.xlu0 %380, %v372
        %v382 = vpop.permute.xlu0 %381
        %385 = vset.pattern.permute.xlu0 0
        %386 = vperm.xlu0 %385, %v373
        %v387 = vpop.permute.xlu0 %386
        %vm389 = vcmask 31744
        %v391 = vsel %vm389, %v368, 0
        %v394 = vsel %vm389, %v369, 0
        %v397 = vsel %vm389, %v370, 0
        %vm399 = vcmask 1043456
        %v401 = vsel %vm399, %v363, 0
        %403 = vmatprep.subr.mxu0 0.0
        %404 = vmatpush1.msra.mxu0 %v401
        %405 = vmatprep.subr.mxu0 0.0
        %406 = vmatpush1.msra.mxu0 0.0
        %407 = vmatprep.subr.mxu0 0.0
        %408 = vmatpush1.msra.mxu0 0.0
        %409 = vmatprep.subr.mxu0 0.0
        %410 = vmatpush1.msra.mxu0 0.0
        %411 = vmatprep.subr.mxu0 0.0
        %412 = vmatpush1.msra.mxu0 0.0
        %413 = vmatprep.subr.mxu0 0.0
        %414 = vmatpush1.msra.mxu0 0.0
        %415 = vmatprep.subr.mxu0 0.0
        %416 = vmatpush1.msra.mxu0 0.0
        %417 = vmatprep.subr.mxu0 0.0
        %418 = vmatpush1.msra.mxu0 0.0
        %419 = vmatprep.subr.mxu0 0.0
        %420 = vmatpush1.msra.mxu0 0.0
        %421 = vmatprep.subr.mxu0 0.0
        %422 = vmatpush1.msra.mxu0 0.0
        %423 = vmatprep.subr.mxu0 0.0
        %424 = vmatpush1.msra.mxu0 0.0
        %425 = vmatprep.subr.mxu0 0.0
        %426 = vmatpush1.msra.mxu0 0.0
        %427 = vmatprep.subr.mxu0 0.0
        %428 = vmatpush1.msra.mxu0 0.0
        %429 = vmatprep.subr.mxu0 0.0
        %430 = vmatpush1.msra.mxu0 0.0
        %431 = vmatprep.subr.mxu0 0.0
        %432 = vmatpush1.msra.mxu0 0.0
        %433 = vmatprep.subr.mxu0 0.0
        %434 = vmatpush1.msra.mxu0 0.0
        %435 = vmatprep.subr.mxu0 0.0
        %436 = vmatpush1.msra.mxu0 0.0
        %437 = vmatprep.subr.mxu0 0.0
        %438 = vmatpush1.msra.mxu0 0.0
        %439 = vmatprep.subr.mxu0 0.0
        %440 = vmatpush1.msra.mxu0 0.0
        %441 = vmatprep.subr.mxu0 0.0
        %442 = vmatpush1.msra.mxu0 0.0
        %443 = vmatprep.subr.mxu0 0.0
        %444 = vmatpush1.msra.mxu0 0.0
        %445 = vmatprep.subr.mxu0 0.0
        %446 = vmatpush1.msra.mxu0 0.0
        %447 = vmatprep.subr.mxu0 0.0
        %448 = vmatpush1.msra.mxu0 0.0
        %449 = vmatprep.subr.mxu0 0.0
        %450 = vmatpush1.msra.mxu0 0.0
        %451 = vmatprep.subr.mxu0 0.0
        %452 = vmatpush1.msra.mxu0 0.0
        %453 = vmatprep.subr.mxu0 0.0
        %454 = vmatpush1.msra.mxu0 0.0
        %455 = vmatprep.subr.mxu0 0.0
        %456 = vmatpush1.msra.mxu0 0.0
        %457 = vmatprep.subr.mxu0 0.0
        %458 = vmatpush1.msra.mxu0 0.0
        %459 = vmatprep.subr.mxu0 0.0
        %460 = vmatpush1.msra.mxu0 0.0
        %461 = vmatprep.subr.mxu0 0.0
        %462 = vmatpush1.msra.mxu0 0.0
        %463 = vmatprep.subr.mxu0 0.0
        %464 = vmatpush1.msra.mxu0 0.0
        %465 = vmatprep.subr.mxu0 0.0
        %466 = vmatpush1.msra.mxu0 0.0
        %467 = vmatprep.mubr.f32.mxu0 0.0
        %468 = vmatmul.mubr.f32.gmra.mrb[0].mxu0 %v391
        %v469 = vpop.f32.mrb[0].mxu0
        %v470 = vadd.f32 %v377, %v469
        %v471 = vpop.f32.mrb[0].mxu0
        %472 = vmatprep.mubr.f32.mxu0 0.0
        %473 = vmatmul.mubr.f32.gmra.mrb[0].mxu0 %v394
        %v474 = vpop.f32.mrb[0].mxu0
        %v475 = vadd.f32 %v382, %v474
        %v476 = vpop.f32.mrb[0].mxu0
        %477 = vmatprep.mubr.f32.mxu0 0.0
        %478 = vmatmul.mubr.f32.gmra.mrb[0].mxu0 %v397
        %v479 = vpop.f32.mrb[0].mxu0
        %v480 = vadd.f32 %v387, %v479
        %v481 = vpop.f32.mrb[0].mxu0
        %482 = vdwg.mxu0
        %v483 = vld [vmem:[%s5] sm:$0xff]
        %v484 = vld [vmem:[%s6] sm:$0xff]
        %486 = vset.pattern.permute.xlu0 0
        %487 = vperm.xlu0 %486, %v484
        %v488 = vpop.permute.xlu0 %487
        %v491 = vsel %vm389, %v483, 0
        %493 = vmatprep.subr.mxu0 0.0
        %494 = vmatpush1.msra.mxu0 %v401
        %495 = vmatprep.subr.mxu0 0.0
        %496 = vmatpush1.msra.mxu0 0.0
        %497 = vmatprep.subr.mxu0 0.0
        %498 = vmatpush1.msra.mxu0 0.0
        %499 = vmatprep.subr.mxu0 0.0
        %500 = vmatpush1.msra.mxu0 0.0
        %501 = vmatprep.subr.mxu0 0.0
        %502 = vmatpush1.msra.mxu0 0.0
        %503 = vmatprep.subr.mxu0 0.0
        %504 = vmatpush1.msra.mxu0 0.0
        %505 = vmatprep.subr.mxu0 0.0
        %506 = vmatpush1.msra.mxu0 0.0
        %507 = vmatprep.subr.mxu0 0.0
        %508 = vmatpush1.msra.mxu0 0.0
        %509 = vmatprep.subr.mxu0 0.0
        %510 = vmatpush1.msra.mxu0 0.0
        %511 = vmatprep.subr.mxu0 0.0
        %512 = vmatpush1.msra.mxu0 0.0
        %513 = vmatprep.subr.mxu0 0.0
        %514 = vmatpush1.msra.mxu0 0.0
        %515 = vmatprep.subr.mxu0 0.0
        %516 = vmatpush1.msra.mxu0 0.0
        %517 = vmatprep.subr.mxu0 0.0
        %518 = vmatpush1.msra.mxu0 0.0
        %519 = vmatprep.subr.mxu0 0.0
        %520 = vmatpush1.msra.mxu0 0.0
        %521 = vmatprep.subr.mxu0 0.0
        %522 = vmatpush1.msra.mxu0 0.0
        %523 = vmatprep.subr.mxu0 0.0
        %524 = vmatpush1.msra.mxu0 0.0
        %525 = vmatprep.subr.mxu0 0.0
        %526 = vmatpush1.msra.mxu0 0.0
        %527 = vmatprep.subr.mxu0 0.0
        %528 = vmatpush1.msra.mxu0 0.0
        %529 = vmatprep.subr.mxu0 0.0
        %530 = vmatpush1.msra.mxu0 0.0
        %531 = vmatprep.subr.mxu0 0.0
        %532 = vmatpush1.msra.mxu0 0.0
        %533 = vmatprep.subr.mxu0 0.0
        %534 = vmatpush1.msra.mxu0 0.0
        %535 = vmatprep.subr.mxu0 0.0
        %536 = vmatpush1.msra.mxu0 0.0
        %537 = vmatprep.subr.mxu0 0.0
        %538 = vmatpush1.msra.mxu0 0.0
        %539 = vmatprep.subr.mxu0 0.0
        %540 = vmatpush1.msra.mxu0 0.0
        %541 = vmatprep.subr.mxu0 0.0
        %542 = vmatpush1.msra.mxu0 0.0
        %543 = vmatprep.subr.mxu0 0.0
        %544 = vmatpush1.msra.mxu0 0.0
        %545 = vmatprep.subr.mxu0 0.0
        %546 = vmatpush1.msra.mxu0 0.0
        %547 = vmatprep.subr.mxu0 0.0
        %548 = vmatpush1.msra.mxu0 0.0
        %549 = vmatprep.subr.mxu0 0.0
        %550 = vmatpush1.msra.mxu0 0.0
        %551 = vmatprep.subr.mxu0 0.0
        %552 = vmatpush1.msra.mxu0 0.0
        %553 = vmatprep.subr.mxu0 0.0
        %554 = vmatpush1.msra.mxu0 0.0
        %555 = vmatprep.subr.mxu0 0.0
        %556 = vmatpush1.msra.mxu0 0.0
        %557 = vmatprep.mubr.f32.mxu0 0.0
        %558 = vmatmul.mubr.f32.gmra.mrb[0].mxu0 %v491
        %v559 = vpop.f32.mrb[0].mxu0
        %v560 = vadd.f32 %v488, %v559
        %v561 = vpop.f32.mrb[0].mxu0
        %562 = vdwg.mxu0
        %v563 = vlaneseq
        %v564 = vshrl.u32 %v563, 7
        %v565 = vadd.s32 %v564, 8
        %v566 = vlaneseq
        %v567 = vshrl.u32 %v566, 7
        %v568 = vsub.s32 0, %v567
        %v569 = vrot.slane %v364, %v568
        %vm570 = vcmp.eq.s32.totalorder %v564, %v569
        %vm571 = vcmp.eq.s32.totalorder %v565, %v569
        %v572 = vsel %vm570, 1, 0
        %v573 = vsel %vm571, 1, 0
        %v574 = vcvt.s32.f32 %v572
        %v575 = vcvt.s32.f32 %v573
        %vm576 = vcmask 130048
        %v578 = vsel %vm576, %v362, 0
        %580 = vmatprep.subr.mxu0 0.0
        %581 = vmatpush1.msra.mxu0 %v574
        %582 = vmatprep.subr.mxu0 0.0
        %583 = vmatpush1.msra.mxu0 %v575
        %584 = vmatprep.subr.mxu0 0.0
        %585 = vmatpush1.msra.mxu0 0.0
        %586 = vmatprep.subr.mxu0 0.0
        %587 = vmatpush1.msra.mxu0 0.0
        %588 = vmatprep.subr.mxu0 0.0
        %589 = vmatpush1.msra.mxu0 0.0
        %590 = vmatprep.subr.mxu0 0.0
        %591 = vmatpush1.msra.mxu0 0.0
        %592 = vmatprep.subr.mxu0 0.0
        %593 = vmatpush1.msra.mxu0 0.0
        %594 = vmatprep.subr.mxu0 0.0
        %595 = vmatpush1.msra.mxu0 0.0
        %596 = vmatprep.subr.mxu0 0.0
        %597 = vmatpush1.msra.mxu0 0.0
        %598 = vmatprep.subr.mxu0 0.0
        %599 = vmatpush1.msra.mxu0 0.0
        %600 = vmatprep.subr.mxu0 0.0
        %601 = vmatpush1.msra.mxu0 0.0
        %602 = vmatprep.subr.mxu0 0.0
        %603 = vmatpush1.msra.mxu0 0.0
        %604 = vmatprep.subr.mxu0 0.0
        %605 = vmatpush1.msra.mxu0 0.0
        %606 = vmatprep.subr.mxu0 0.0
        %607 = vmatpush1.msra.mxu0 0.0
        %608 = vmatprep.subr.mxu0 0.0
        %609 = vmatpush1.msra.mxu0 0.0
        %610 = vmatprep.subr.mxu0 0.0
        %611 = vmatpush1.msra.mxu0 0.0
        %612 = vmatprep.subr.mxu0 0.0
        %613 = vmatpush1.msra.mxu0 0.0
        %614 = vmatprep.subr.mxu0 0.0
        %615 = vmatpush1.msra.mxu0 0.0
        %616 = vmatprep.subr.mxu0 0.0
        %617 = vmatpush1.msra.mxu0 0.0
        %618 = vmatprep.subr.mxu0 0.0
        %619 = vmatpush1.msra.mxu0 0.0
        %620 = vmatprep.subr.mxu0 0.0
        %621 = vmatpush1.msra.mxu0 0.0
        %622 = vmatprep.subr.mxu0 0.0
        %623 = vmatpush1.msra.mxu0 0.0
        %624 = vmatprep.subr.mxu0 0.0
        %625 = vmatpush1.msra.mxu0 0.0
        %626 = vmatprep.subr.mxu0 0.0
        %627 = vmatpush1.msra.mxu0 0.0
        %628 = vmatprep.subr.mxu0 0.0
        %629 = vmatpush1.msra.mxu0 0.0
        %630 = vmatprep.subr.mxu0 0.0
        %631 = vmatpush1.msra.mxu0 0.0
        %632 = vmatprep.subr.mxu0 0.0
        %633 = vmatpush1.msra.mxu0 0.0
        %634 = vmatprep.subr.mxu0 0.0
        %635 = vmatpush1.msra.mxu0 0.0
        %636 = vmatprep.subr.mxu0 0.0
        %637 = vmatpush1.msra.mxu0 0.0
        %638 = vmatprep.subr.mxu0 0.0
        %639 = vmatpush1.msra.mxu0 0.0
        %640 = vmatprep.subr.mxu0 0.0
        %641 = vmatpush1.msra.mxu0 0.0
        %642 = vmatprep.subr.mxu0 0.0
        %643 = vmatpush1.msra.mxu0 0.0
        %644 = vmatprep.mubr.f32.mxu0 0.0
        %645 = vmatmul.mubr.f32.gmra.mrb[0].mxu0 %v578
        %v646 = vpop.f32.mrb[0].mxu0
        %v647 = vadd.f32 0.0, %v646
        %v648 = vpop.f32.mrb[0].mxu0
        %649 = vdwg.mxu0
        %v651 = vsel %vm576, %v470, 0
        %v654 = vsel %vm576, %v475, 0
        %v657 = vsel %vm576, %v480, 0
        %659 = vmatprep.subr.mxu0 0.0
        %660 = vmatpush1.msra.mxu0 %v574
        %661 = vmatprep.subr.mxu0 0.0
        %662 = vmatpush1.msra.mxu0 %v575
        %663 = vmatprep.subr.mxu0 0.0
        %664 = vmatpush1.msra.mxu0 0.0
        %665 = vmatprep.subr.mxu0 0.0
        %666 = vmatpush1.msra.mxu0 0.0
        %667 = vmatprep.subr.mxu0 0.0
        %668 = vmatpush1.msra.mxu0 0.0
        %669 = vmatprep.subr.mxu0 0.0
        %670 = vmatpush1.msra.mxu0 0.0
        %671 = vmatprep.subr.mxu0 0.0
        %672 = vmatpush1.msra.mxu0 0.0
        %673 = vmatprep.subr.mxu0 0.0
        %674 = vmatpush1.msra.mxu0 0.0
        %675 = vmatprep.subr.mxu0 0.0
        %676 = vmatpush1.msra.mxu0 0.0
        %677 = vmatprep.subr.mxu0 0.0
        %678 = vmatpush1.msra.mxu0 0.0
        %679 = vmatprep.subr.mxu0 0.0
        %680 = vmatpush1.msra.mxu0 0.0
        %681 = vmatprep.subr.mxu0 0.0
        %682 = vmatpush1.msra.mxu0 0.0
        %683 = vmatprep.subr.mxu0 0.0
        %684 = vmatpush1.msra.mxu0 0.0
        %685 = vmatprep.subr.mxu0 0.0
        %686 = vmatpush1.msra.mxu0 0.0
        %687 = vmatprep.subr.mxu0 0.0
        %688 = vmatpush1.msra.mxu0 0.0
        %689 = vmatprep.subr.mxu0 0.0
        %690 = vmatpush1.msra.mxu0 0.0
        %691 = vmatprep.subr.mxu0 0.0
        %692 = vmatpush1.msra.mxu0 0.0
        %693 = vmatprep.subr.mxu0 0.0
        %694 = vmatpush1.msra.mxu0 0.0
        %695 = vmatprep.subr.mxu0 0.0
        %696 = vmatpush1.msra.mxu0 0.0
        %697 = vmatprep.subr.mxu0 0.0
        %698 = vmatpush1.msra.mxu0 0.0
        %699 = vmatprep.subr.mxu0 0.0
        %700 = vmatpush1.msra.mxu0 0.0
        %701 = vmatprep.subr.mxu0 0.0
        %702 = vmatpush1.msra.mxu0 0.0
        %703 = vmatprep.subr.mxu0 0.0
        %704 = vmatpush1.msra.mxu0 0.0
        %705 = vmatprep.subr.mxu0 0.0
        %706 = vmatpush1.msra.mxu0 0.0
        %707 = vmatprep.subr.mxu0 0.0
        %708 = vmatpush1.msra.mxu0 0.0
        %709 = vmatprep.subr.mxu0 0.0
        %710 = vmatpush1.msra.mxu0 0.0
        %711 = vmatprep.subr.mxu0 0.0
        %712 = vmatpush1.msra.mxu0 0.0
        %713 = vmatprep.subr.mxu0 0.0
        %714 = vmatpush1.msra.mxu0 0.0
        %715 = vmatprep.subr.mxu0 0.0
        %716 = vmatpush1.msra.mxu0 0.0
        %717 = vmatprep.subr.mxu0 0.0
        %718 = vmatpush1.msra.mxu0 0.0
        %719 = vmatprep.subr.mxu0 0.0
        %720 = vmatpush1.msra.mxu0 0.0
        %721 = vmatprep.subr.mxu0 0.0
        %722 = vmatpush1.msra.mxu0 0.0
        %723 = vmatprep.mubr.f32.mxu0 0.0
        %724 = vmatmul.mubr.f32.gmra.mrb[0].mxu0 %v651
        %v725 = vpop.f32.mrb[0].mxu0
        %v726 = vadd.f32 0.0, %v725
        %v727 = vpop.f32.mrb[0].mxu0
        %728 = vmatprep.mubr.f32.mxu0 0.0
        %729 = vmatmul.mubr.f32.gmra.mrb[0].mxu0 %v654
        %v730 = vpop.f32.mrb[0].mxu0
        %v731 = vadd.f32 0.0, %v730
        %v732 = vpop.f32.mrb[0].mxu0
        %733 = vmatprep.mubr.f32.mxu0 0.0
        %734 = vmatmul.mubr.f32.gmra.mrb[0].mxu0 %v657
        %v735 = vpop.f32.mrb[0].mxu0
        %v736 = vadd.f32 0.0, %v735
        %v737 = vpop.f32.mrb[0].mxu0
        %738 = vdwg.mxu0
        %v739 = vsub.f32 %v647, %v362
        %v740 = vmul.f32 %v739, %v739
        %v742 = vrot.slane %v740, 1
        %v744 = vadd.f32 %v740, %v742
        %v745 = vrot.slane %v740, 2
        %v747 = vadd.f32 %v744, %v745
        %v748 = vmax.f32 %v747, 1e-24
        %v749 = vrsqrt.pop %v748
        %vm750 = vcmask 23552
        %v752 = vsel %vm750, %v365, 0
        %v755 = vsel %vm750, %v366, 0
        %v758 = vsel %vm750, %v367, 0
        %vm760 = vcmask 1042432
        %v762 = vsel %vm760, %v739, 0
        %764 = vmatprep.subr.mxu0 0.0
        %765 = vmatpush1.msra.mxu0 %v762
        %766 = vmatprep.subr.mxu0 0.0
        %767 = vmatpush1.msra.mxu0 0.0
        %768 = vmatprep.subr.mxu0 0.0
        %769 = vmatpush1.msra.mxu0 0.0
        %770 = vmatprep.subr.mxu0 0.0
        %771 = vmatpush1.msra.mxu0 0.0
        %772 = vmatprep.subr.mxu0 0.0
        %773 = vmatpush1.msra.mxu0 0.0
        %774 = vmatprep.subr.mxu0 0.0
        %775 = vmatpush1.msra.mxu0 0.0
        %776 = vmatprep.subr.mxu0 0.0
        %777 = vmatpush1.msra.mxu0 0.0
        %778 = vmatprep.subr.mxu0 0.0
        %779 = vmatpush1.msra.mxu0 0.0
        %780 = vmatprep.subr.mxu0 0.0
        %781 = vmatpush1.msra.mxu0 0.0
        %782 = vmatprep.subr.mxu0 0.0
        %783 = vmatpush1.msra.mxu0 0.0
        %784 = vmatprep.subr.mxu0 0.0
        %785 = vmatpush1.msra.mxu0 0.0
        %786 = vmatprep.subr.mxu0 0.0
        %787 = vmatpush1.msra.mxu0 0.0
        %788 = vmatprep.subr.mxu0 0.0
        %789 = vmatpush1.msra.mxu0 0.0
        %790 = vmatprep.subr.mxu0 0.0
        %791 = vmatpush1.msra.mxu0 0.0
        %792 = vmatprep.subr.mxu0 0.0
        %793 = vmatpush1.msra.mxu0 0.0
        %794 = vmatprep.subr.mxu0 0.0
        %795 = vmatpush1.msra.mxu0 0.0
        %796 = vmatprep.subr.mxu0 0.0
        %797 = vmatpush1.msra.mxu0 0.0
        %798 = vmatprep.subr.mxu0 0.0
        %799 = vmatpush1.msra.mxu0 0.0
        %800 = vmatprep.subr.mxu0 0.0
        %801 = vmatpush1.msra.mxu0 0.0
        %802 = vmatprep.subr.mxu0 0.0
        %803 = vmatpush1.msra.mxu0 0.0
        %804 = vmatprep.subr.mxu0 0.0
        %805 = vmatpush1.msra.mxu0 0.0
        %806 = vmatprep.subr.mxu0 0.0
        %807 = vmatpush1.msra.mxu0 0.0
        %808 = vmatprep.subr.mxu0 0.0
        %809 = vmatpush1.msra.mxu0 0.0
        %810 = vmatprep.subr.mxu0 0.0
        %811 = vmatpush1.msra.mxu0 0.0
        %812 = vmatprep.subr.mxu0 0.0
        %813 = vmatpush1.msra.mxu0 0.0
        %814 = vmatprep.subr.mxu0 0.0
        %815 = vmatpush1.msra.mxu0 0.0
        %816 = vmatprep.subr.mxu0 0.0
        %817 = vmatpush1.msra.mxu0 0.0
        %818 = vmatprep.subr.mxu0 0.0
        %819 = vmatpush1.msra.mxu0 0.0
        %820 = vmatprep.subr.mxu0 0.0
        %821 = vmatpush1.msra.mxu0 0.0
        %822 = vmatprep.subr.mxu0 0.0
        %823 = vmatpush1.msra.mxu0 0.0
        %824 = vmatprep.subr.mxu0 0.0
        %825 = vmatpush1.msra.mxu0 0.0
        %826 = vmatprep.subr.mxu0 0.0
        %827 = vmatpush1.msra.mxu0 0.0
        %828 = vmatprep.mubr.f32.mxu0 0.0
        %829 = vmatmul.mubr.f32.gmra.mrb[0].mxu0 %v752
        %v830 = vpop.f32.mrb[0].mxu0
        %v831 = vadd.f32 0.0, %v830
        %v832 = vpop.f32.mrb[0].mxu0
        %833 = vmatprep.mubr.f32.mxu0 0.0
        %834 = vmatmul.mubr.f32.gmra.mrb[0].mxu0 %v755
        %v835 = vpop.f32.mrb[0].mxu0
        %v836 = vadd.f32 0.0, %v835
        %v837 = vpop.f32.mrb[0].mxu0
        %838 = vmatprep.mubr.f32.mxu0 0.0
        %839 = vmatmul.mubr.f32.gmra.mrb[0].mxu0 %v758
        %v840 = vpop.f32.mrb[0].mxu0
        %v841 = vadd.f32 0.0, %v840
        %v842 = vpop.f32.mrb[0].mxu0
        %843 = vdwg.mxu0
        %v844 = vmax.f32 %v831, 0.0
        %v845 = vmax.f32 %v836, 0.0
        %v846 = vmax.f32 %v841, 0.0
        %v847 = vlaneseq
        %v848 = vshrl.u32 %v847, 7
        %v849 = vsub.s32 0, %v848
        %v850 = vrot.slane %v749, %v849
        %v851 = vmul.f32 %v844, %v850
        %v852 = vmul.f32 %v845, %v850
        %v853 = vmul.f32 %v846, %v850
        %v854 = vmul.f32 %v851, %v726
        %v855 = vmul.f32 %v852, %v731
        %v856 = vmul.f32 %v853, %v736
        %v857 = vlaneseq
        %v858 = vshrl.u32 %v857, 7
        %v859 = vsub.s32 1, %v858
        %v860 = vrot.slane %v364, %v859
        %vm861 = vcmp.eq.s32.totalorder %v564, %v860
        %vm862 = vcmp.eq.s32.totalorder %v565, %v860
        %v863 = vsel %vm861, 1, 0
        %v864 = vsel %vm862, 1, 0
        %v865 = vcvt.s32.f32 %v863
        %v866 = vcvt.s32.f32 %v864
        %867 = vmatprep.subr.mxu0 0.0
        %868 = vmatpush1.msra.mxu0 %v865
        %869 = vmatprep.subr.mxu0 0.0
        %870 = vmatpush1.msra.mxu0 %v866
        %871 = vmatprep.subr.mxu0 0.0
        %872 = vmatpush1.msra.mxu0 0.0
        %873 = vmatprep.subr.mxu0 0.0
        %874 = vmatpush1.msra.mxu0 0.0
        %875 = vmatprep.subr.mxu0 0.0
        %876 = vmatpush1.msra.mxu0 0.0
        %877 = vmatprep.subr.mxu0 0.0
        %878 = vmatpush1.msra.mxu0 0.0
        %879 = vmatprep.subr.mxu0 0.0
        %880 = vmatpush1.msra.mxu0 0.0
        %881 = vmatprep.subr.mxu0 0.0
        %882 = vmatpush1.msra.mxu0 0.0
        %883 = vmatprep.subr.mxu0 0.0
        %884 = vmatpush1.msra.mxu0 0.0
        %885 = vmatprep.subr.mxu0 0.0
        %886 = vmatpush1.msra.mxu0 0.0
        %887 = vmatprep.subr.mxu0 0.0
        %888 = vmatpush1.msra.mxu0 0.0
        %889 = vmatprep.subr.mxu0 0.0
        %890 = vmatpush1.msra.mxu0 0.0
        %891 = vmatprep.subr.mxu0 0.0
        %892 = vmatpush1.msra.mxu0 0.0
        %893 = vmatprep.subr.mxu0 0.0
        %894 = vmatpush1.msra.mxu0 0.0
        %895 = vmatprep.subr.mxu0 0.0
        %896 = vmatpush1.msra.mxu0 0.0
        %897 = vmatprep.subr.mxu0 0.0
        %898 = vmatpush1.msra.mxu0 0.0
        %899 = vmatprep.subr.mxu0 0.0
        %900 = vmatpush1.msra.mxu0 0.0
        %901 = vmatprep.subr.mxu0 0.0
        %902 = vmatpush1.msra.mxu0 0.0
        %903 = vmatprep.subr.mxu0 0.0
        %904 = vmatpush1.msra.mxu0 0.0
        %905 = vmatprep.subr.mxu0 0.0
        %906 = vmatpush1.msra.mxu0 0.0
        %907 = vmatprep.subr.mxu0 0.0
        %908 = vmatpush1.msra.mxu0 0.0
        %909 = vmatprep.subr.mxu0 0.0
        %910 = vmatpush1.msra.mxu0 0.0
        %911 = vmatprep.subr.mxu0 0.0
        %912 = vmatpush1.msra.mxu0 0.0
        %913 = vmatprep.subr.mxu0 0.0
        %914 = vmatpush1.msra.mxu0 0.0
        %915 = vmatprep.subr.mxu0 0.0
        %916 = vmatpush1.msra.mxu0 0.0
        %917 = vmatprep.subr.mxu0 0.0
        %918 = vmatpush1.msra.mxu0 0.0
        %919 = vmatprep.subr.mxu0 0.0
        %920 = vmatpush1.msra.mxu0 0.0
        %921 = vmatprep.subr.mxu0 0.0
        %922 = vmatpush1.msra.mxu0 0.0
        %923 = vmatprep.subr.mxu0 0.0
        %924 = vmatpush1.msra.mxu0 0.0
        %925 = vmatprep.subr.mxu0 0.0
        %926 = vmatpush1.msra.mxu0 0.0
        %927 = vmatprep.subr.mxu0 0.0
        %928 = vmatpush1.msra.mxu0 0.0
        %929 = vmatprep.subr.mxu0 0.0
        %930 = vmatpush1.msra.mxu0 0.0
        %931 = vmatprep.mubr.f32.mxu0 0.0
        %932 = vmatmul.mubr.f32.gmra.mrb[0].mxu0 %v578
        %v933 = vpop.f32.mrb[0].mxu0
        %v934 = vadd.f32 0.0, %v933
        %v935 = vpop.f32.mrb[0].mxu0
        %936 = vdwg.mxu0
        %937 = vmatprep.subr.mxu0 0.0
        %938 = vmatpush1.msra.mxu0 %v865
        %939 = vmatprep.subr.mxu0 0.0
        %940 = vmatpush1.msra.mxu0 %v866
        %941 = vmatprep.subr.mxu0 0.0
        %942 = vmatpush1.msra.mxu0 0.0
        %943 = vmatprep.subr.mxu0 0.0
        %944 = vmatpush1.msra.mxu0 0.0
        %945 = vmatprep.subr.mxu0 0.0
        %946 = vmatpush1.msra.mxu0 0.0
        %947 = vmatprep.subr.mxu0 0.0
        %948 = vmatpush1.msra.mxu0 0.0
        %949 = vmatprep.subr.mxu0 0.0
        %950 = vmatpush1.msra.mxu0 0.0
        %951 = vmatprep.subr.mxu0 0.0
        %952 = vmatpush1.msra.mxu0 0.0
        %953 = vmatprep.subr.mxu0 0.0
        %954 = vmatpush1.msra.mxu0 0.0
        %955 = vmatprep.subr.mxu0 0.0
        %956 = vmatpush1.msra.mxu0 0.0
        %957 = vmatprep.subr.mxu0 0.0
        %958 = vmatpush1.msra.mxu0 0.0
        %959 = vmatprep.subr.mxu0 0.0
        %960 = vmatpush1.msra.mxu0 0.0
        %961 = vmatprep.subr.mxu0 0.0
        %962 = vmatpush1.msra.mxu0 0.0
        %963 = vmatprep.subr.mxu0 0.0
        %964 = vmatpush1.msra.mxu0 0.0
        %965 = vmatprep.subr.mxu0 0.0
        %966 = vmatpush1.msra.mxu0 0.0
        %967 = vmatprep.subr.mxu0 0.0
        %968 = vmatpush1.msra.mxu0 0.0
        %969 = vmatprep.subr.mxu0 0.0
        %970 = vmatpush1.msra.mxu0 0.0
        %971 = vmatprep.subr.mxu0 0.0
        %972 = vmatpush1.msra.mxu0 0.0
        %973 = vmatprep.subr.mxu0 0.0
        %974 = vmatpush1.msra.mxu0 0.0
        %975 = vmatprep.subr.mxu0 0.0
        %976 = vmatpush1.msra.mxu0 0.0
        %977 = vmatprep.subr.mxu0 0.0
        %978 = vmatpush1.msra.mxu0 0.0
        %979 = vmatprep.subr.mxu0 0.0
        %980 = vmatpush1.msra.mxu0 0.0
        %981 = vmatprep.subr.mxu0 0.0
        %982 = vmatpush1.msra.mxu0 0.0
        %983 = vmatprep.subr.mxu0 0.0
        %984 = vmatpush1.msra.mxu0 0.0
        %985 = vmatprep.subr.mxu0 0.0
        %986 = vmatpush1.msra.mxu0 0.0
        %987 = vmatprep.subr.mxu0 0.0
        %988 = vmatpush1.msra.mxu0 0.0
        %989 = vmatprep.subr.mxu0 0.0
        %990 = vmatpush1.msra.mxu0 0.0
        %991 = vmatprep.subr.mxu0 0.0
        %992 = vmatpush1.msra.mxu0 0.0
        %993 = vmatprep.subr.mxu0 0.0
        %994 = vmatpush1.msra.mxu0 0.0
        %995 = vmatprep.subr.mxu0 0.0
        %996 = vmatpush1.msra.mxu0 0.0
        %997 = vmatprep.subr.mxu0 0.0
        %998 = vmatpush1.msra.mxu0 0.0
        %999 = vmatprep.subr.mxu0 0.0
        %1000 = vmatpush1.msra.mxu0 0.0
        %1001 = vmatprep.mubr.f32.mxu0 0.0
        %1002 = vmatmul.mubr.f32.gmra.mrb[0].mxu0 %v651
        %v1003 = vpop.f32.mrb[0].mxu0
        %v1004 = vadd.f32 0.0, %v1003
        %v1005 = vpop.f32.mrb[0].mxu0
        %1006 = vmatprep.mubr.f32.mxu0 0.0
        %1007 = vmatmul.mubr.f32.gmra.mrb[0].mxu0 %v654
        %v1008 = vpop.f32.mrb[0].mxu0
        %v1009 = vadd.f32 0.0, %v1008
        %v1010 = vpop.f32.mrb[0].mxu0
        %1011 = vmatprep.mubr.f32.mxu0 0.0
        %1012 = vmatmul.mubr.f32.gmra.mrb[0].mxu0 %v657
        %v1013 = vpop.f32.mrb[0].mxu0
        %v1014 = vadd.f32 0.0, %v1013
        %v1015 = vpop.f32.mrb[0].mxu0
        %1016 = vdwg.mxu0
        %v1017 = vsub.f32 %v934, %v362
        %v1018 = vmul.f32 %v1017, %v1017
        %v1020 = vrot.slane %v1018, 1
        %v1022 = vadd.f32 %v1018, %v1020
        %v1023 = vrot.slane %v1018, 2
        %v1025 = vadd.f32 %v1022, %v1023
        %v1026 = vmax.f32 %v1025, 1e-24
        %v1027 = vrsqrt.pop %v1026
        %v1029 = vsel %vm760, %v1017, 0
        %1031 = vmatprep.subr.mxu0 0.0
        %1032 = vmatpush1.msra.mxu0 %v1029
        %1033 = vmatprep.subr.mxu0 0.0
        %1034 = vmatpush1.msra.mxu0 0.0
        %1035 = vmatprep.subr.mxu0 0.0
        %1036 = vmatpush1.msra.mxu0 0.0
        %1037 = vmatprep.subr.mxu0 0.0
        %1038 = vmatpush1.msra.mxu0 0.0
        %1039 = vmatprep.subr.mxu0 0.0
        %1040 = vmatpush1.msra.mxu0 0.0
        %1041 = vmatprep.subr.mxu0 0.0
        %1042 = vmatpush1.msra.mxu0 0.0
        %1043 = vmatprep.subr.mxu0 0.0
        %1044 = vmatpush1.msra.mxu0 0.0
        %1045 = vmatprep.subr.mxu0 0.0
        %1046 = vmatpush1.msra.mxu0 0.0
        %1047 = vmatprep.subr.mxu0 0.0
        %1048 = vmatpush1.msra.mxu0 0.0
        %1049 = vmatprep.subr.mxu0 0.0
        %1050 = vmatpush1.msra.mxu0 0.0
        %1051 = vmatprep.subr.mxu0 0.0
        %1052 = vmatpush1.msra.mxu0 0.0
        %1053 = vmatprep.subr.mxu0 0.0
        %1054 = vmatpush1.msra.mxu0 0.0
        %1055 = vmatprep.subr.mxu0 0.0
        %1056 = vmatpush1.msra.mxu0 0.0
        %1057 = vmatprep.subr.mxu0 0.0
        %1058 = vmatpush1.msra.mxu0 0.0
        %1059 = vmatprep.subr.mxu0 0.0
        %1060 = vmatpush1.msra.mxu0 0.0
        %1061 = vmatprep.subr.mxu0 0.0
        %1062 = vmatpush1.msra.mxu0 0.0
        %1063 = vmatprep.subr.mxu0 0.0
        %1064 = vmatpush1.msra.mxu0 0.0
        %1065 = vmatprep.subr.mxu0 0.0
        %1066 = vmatpush1.msra.mxu0 0.0
        %1067 = vmatprep.subr.mxu0 0.0
        %1068 = vmatpush1.msra.mxu0 0.0
        %1069 = vmatprep.subr.mxu0 0.0
        %1070 = vmatpush1.msra.mxu0 0.0
        %1071 = vmatprep.subr.mxu0 0.0
        %1072 = vmatpush1.msra.mxu0 0.0
        %1073 = vmatprep.subr.mxu0 0.0
        %1074 = vmatpush1.msra.mxu0 0.0
        %1075 = vmatprep.subr.mxu0 0.0
        %1076 = vmatpush1.msra.mxu0 0.0
        %1077 = vmatprep.subr.mxu0 0.0
        %1078 = vmatpush1.msra.mxu0 0.0
        %1079 = vmatprep.subr.mxu0 0.0
        %1080 = vmatpush1.msra.mxu0 0.0
        %1081 = vmatprep.subr.mxu0 0.0
        %1082 = vmatpush1.msra.mxu0 0.0
        %1083 = vmatprep.subr.mxu0 0.0
        %1084 = vmatpush1.msra.mxu0 0.0
        %1085 = vmatprep.subr.mxu0 0.0
        %1086 = vmatpush1.msra.mxu0 0.0
        %1087 = vmatprep.subr.mxu0 0.0
        %1088 = vmatpush1.msra.mxu0 0.0
        %1089 = vmatprep.subr.mxu0 0.0
        %1090 = vmatpush1.msra.mxu0 0.0
        %1091 = vmatprep.subr.mxu0 0.0
        %1092 = vmatpush1.msra.mxu0 0.0
        %1093 = vmatprep.subr.mxu0 0.0
        %1094 = vmatpush1.msra.mxu0 0.0
        %1095 = vmatprep.mubr.f32.mxu0 0.0
        %1096 = vmatmul.mubr.f32.gmra.mrb[0].mxu0 %v752
        %v1097 = vpop.f32.mrb[0].mxu0
        %v1098 = vadd.f32 0.0, %v1097
        %v1099 = vpop.f32.mrb[0].mxu0
        %1100 = vmatprep.mubr.f32.mxu0 0.0
        %1101 = vmatmul.mubr.f32.gmra.mrb[0].mxu0 %v755
        %v1102 = vpop.f32.mrb[0].mxu0
        %v1103 = vadd.f32 0.0, %v1102
        %v1104 = vpop.f32.mrb[0].mxu0
        %1105 = vmatprep.mubr.f32.mxu0 0.0
        %1106 = vmatmul.mubr.f32.gmra.mrb[0].mxu0 %v758
        %v1107 = vpop.f32.mrb[0].mxu0
        %v1108 = vadd.f32 0.0, %v1107
        %v1109 = vpop.f32.mrb[0].mxu0
        %1110 = vdwg.mxu0
        %v1111 = vmax.f32 %v1098, 0.0
        %v1112 = vmax.f32 %v1103, 0.0
        %v1113 = vmax.f32 %v1108, 0.0
        %v1114 = vlaneseq
        %v1115 = vshrl.u32 %v1114, 7
        %v1116 = vsub.s32 0, %v1115
        %v1117 = vrot.slane %v1027, %v1116
        %v1118 = vmul.f32 %v1111, %v1117
        %v1119 = vmul.f32 %v1112, %v1117
        %v1120 = vmul.f32 %v1113, %v1117
        %v1121 = vmul.f32 %v1118, %v1004
        %v1122 = vmul.f32 %v1119, %v1009
        %v1123 = vmul.f32 %v1120, %v1014
        %v1124 = vmax.f32 %v854, %v1121
        %v1125 = vmax.f32 %v855, %v1122
        %v1126 = vmax.f32 %v856, %v1123
        %v1127 = vlaneseq
        %v1128 = vshrl.u32 %v1127, 7
        %v1129 = vsub.s32 2, %v1128
        %v1130 = vrot.slane %v364, %v1129
        %vm1131 = vcmp.eq.s32.totalorder %v564, %v1130
        %vm1132 = vcmp.eq.s32.totalorder %v565, %v1130
        %v1133 = vsel %vm1131, 1, 0
        %v1134 = vsel %vm1132, 1, 0
        %v1135 = vcvt.s32.f32 %v1133
        %v1136 = vcvt.s32.f32 %v1134
        %1137 = vmatprep.subr.mxu0 0.0
        %1138 = vmatpush1.msra.mxu0 %v1135
        %1139 = vmatprep.subr.mxu0 0.0
        %1140 = vmatpush1.msra.mxu0 %v1136
        %1141 = vmatprep.subr.mxu0 0.0
        %1142 = vmatpush1.msra.mxu0 0.0
        %1143 = vmatprep.subr.mxu0 0.0
        %1144 = vmatpush1.msra.mxu0 0.0
        %1145 = vmatprep.subr.mxu0 0.0
        %1146 = vmatpush1.msra.mxu0 0.0
        %1147 = vmatprep.subr.mxu0 0.0
        %1148 = vmatpush1.msra.mxu0 0.0
        %1149 = vmatprep.subr.mxu0 0.0
        %1150 = vmatpush1.msra.mxu0 0.0
        %1151 = vmatprep.subr.mxu0 0.0
        %1152 = vmatpush1.msra.mxu0 0.0
        %1153 = vmatprep.subr.mxu0 0.0
        %1154 = vmatpush1.msra.mxu0 0.0
        %1155 = vmatprep.subr.mxu0 0.0
        %1156 = vmatpush1.msra.mxu0 0.0
        %1157 = vmatprep.subr.mxu0 0.0
        %1158 = vmatpush1.msra.mxu0 0.0
        %1159 = vmatprep.subr.mxu0 0.0
        %1160 = vmatpush1.msra.mxu0 0.0
        %1161 = vmatprep.subr.mxu0 0.0
        %1162 = vmatpush1.msra.mxu0 0.0
        %1163 = vmatprep.subr.mxu0 0.0
        %1164 = vmatpush1.msra.mxu0 0.0
        %1165 = vmatprep.subr.mxu0 0.0
        %1166 = vmatpush1.msra.mxu0 0.0
        %1167 = vmatprep.subr.mxu0 0.0
        %1168 = vmatpush1.msra.mxu0 0.0
        %1169 = vmatprep.subr.mxu0 0.0
        %1170 = vmatpush1.msra.mxu0 0.0
        %1171 = vmatprep.subr.mxu0 0.0
        %1172 = vmatpush1.msra.mxu0 0.0
        %1173 = vmatprep.subr.mxu0 0.0
        %1174 = vmatpush1.msra.mxu0 0.0
        %1175 = vmatprep.subr.mxu0 0.0
        %1176 = vmatpush1.msra.mxu0 0.0
        %1177 = vmatprep.subr.mxu0 0.0
        %1178 = vmatpush1.msra.mxu0 0.0
        %1179 = vmatprep.subr.mxu0 0.0
        %1180 = vmatpush1.msra.mxu0 0.0
        %1181 = vmatprep.subr.mxu0 0.0
        %1182 = vmatpush1.msra.mxu0 0.0
        %1183 = vmatprep.subr.mxu0 0.0
        %1184 = vmatpush1.msra.mxu0 0.0
        %1185 = vmatprep.subr.mxu0 0.0
        %1186 = vmatpush1.msra.mxu0 0.0
        %1187 = vmatprep.subr.mxu0 0.0
        %1188 = vmatpush1.msra.mxu0 0.0
        %1189 = vmatprep.subr.mxu0 0.0
        %1190 = vmatpush1.msra.mxu0 0.0
        %1191 = vmatprep.subr.mxu0 0.0
        %1192 = vmatpush1.msra.mxu0 0.0
        %1193 = vmatprep.subr.mxu0 0.0
        %1194 = vmatpush1.msra.mxu0 0.0
        %1195 = vmatprep.subr.mxu0 0.0
        %1196 = vmatpush1.msra.mxu0 0.0
        %1197 = vmatprep.subr.mxu0 0.0
        %1198 = vmatpush1.msra.mxu0 0.0
        %1199 = vmatprep.subr.mxu0 0.0
        %1200 = vmatpush1.msra.mxu0 0.0
        %1201 = vmatprep.mubr.f32.mxu0 0.0
        %1202 = vmatmul.mubr.f32.gmra.mrb[0].mxu0 %v578
        %v1203 = vpop.f32.mrb[0].mxu0
        %v1204 = vadd.f32 0.0, %v1203
        %v1205 = vpop.f32.mrb[0].mxu0
        %1206 = vdwg.mxu0
        %1207 = vmatprep.subr.mxu0 0.0
        %1208 = vmatpush1.msra.mxu0 %v1135
        %1209 = vmatprep.subr.mxu0 0.0
        %1210 = vmatpush1.msra.mxu0 %v1136
        %1211 = vmatprep.subr.mxu0 0.0
        %1212 = vmatpush1.msra.mxu0 0.0
        %1213 = vmatprep.subr.mxu0 0.0
        %1214 = vmatpush1.msra.mxu0 0.0
        %1215 = vmatprep.subr.mxu0 0.0
        %1216 = vmatpush1.msra.mxu0 0.0
        %1217 = vmatprep.subr.mxu0 0.0
        %1218 = vmatpush1.msra.mxu0 0.0
        %1219 = vmatprep.subr.mxu0 0.0
        %1220 = vmatpush1.msra.mxu0 0.0
        %1221 = vmatprep.subr.mxu0 0.0
        %1222 = vmatpush1.msra.mxu0 0.0
        %1223 = vmatprep.subr.mxu0 0.0
        %1224 = vmatpush1.msra.mxu0 0.0
        %1225 = vmatprep.subr.mxu0 0.0
        %1226 = vmatpush1.msra.mxu0 0.0
        %1227 = vmatprep.subr.mxu0 0.0
        %1228 = vmatpush1.msra.mxu0 0.0
        %1229 = vmatprep.subr.mxu0 0.0
        %1230 = vmatpush1.msra.mxu0 0.0
        %1231 = vmatprep.subr.mxu0 0.0
        %1232 = vmatpush1.msra.mxu0 0.0
        %1233 = vmatprep.subr.mxu0 0.0
        %1234 = vmatpush1.msra.mxu0 0.0
        %1235 = vmatprep.subr.mxu0 0.0
        %1236 = vmatpush1.msra.mxu0 0.0
        %1237 = vmatprep.subr.mxu0 0.0
        %1238 = vmatpush1.msra.mxu0 0.0
        %1239 = vmatprep.subr.mxu0 0.0
        %1240 = vmatpush1.msra.mxu0 0.0
        %1241 = vmatprep.subr.mxu0 0.0
        %1242 = vmatpush1.msra.mxu0 0.0
        %1243 = vmatprep.subr.mxu0 0.0
        %1244 = vmatpush1.msra.mxu0 0.0
        %1245 = vmatprep.subr.mxu0 0.0
        %1246 = vmatpush1.msra.mxu0 0.0
        %1247 = vmatprep.subr.mxu0 0.0
        %1248 = vmatpush1.msra.mxu0 0.0
        %1249 = vmatprep.subr.mxu0 0.0
        %1250 = vmatpush1.msra.mxu0 0.0
        %1251 = vmatprep.subr.mxu0 0.0
        %1252 = vmatpush1.msra.mxu0 0.0
        %1253 = vmatprep.subr.mxu0 0.0
        %1254 = vmatpush1.msra.mxu0 0.0
        %1255 = vmatprep.subr.mxu0 0.0
        %1256 = vmatpush1.msra.mxu0 0.0
        %1257 = vmatprep.subr.mxu0 0.0
        %1258 = vmatpush1.msra.mxu0 0.0
        %1259 = vmatprep.subr.mxu0 0.0
        %1260 = vmatpush1.msra.mxu0 0.0
        %1261 = vmatprep.subr.mxu0 0.0
        %1262 = vmatpush1.msra.mxu0 0.0
        %1263 = vmatprep.subr.mxu0 0.0
        %1264 = vmatpush1.msra.mxu0 0.0
        %1265 = vmatprep.subr.mxu0 0.0
        %1266 = vmatpush1.msra.mxu0 0.0
        %1267 = vmatprep.subr.mxu0 0.0
        %1268 = vmatpush1.msra.mxu0 0.0
        %1269 = vmatprep.subr.mxu0 0.0
        %1270 = vmatpush1.msra.mxu0 0.0
        %1271 = vmatprep.mubr.f32.mxu0 0.0
        %1272 = vmatmul.mubr.f32.gmra.mrb[0].mxu0 %v651
        %v1273 = vpop.f32.mrb[0].mxu0
        %v1274 = vadd.f32 0.0, %v1273
        %v1275 = vpop.f32.mrb[0].mxu0
        %1276 = vmatprep.mubr.f32.mxu0 0.0
        %1277 = vmatmul.mubr.f32.gmra.mrb[0].mxu0 %v654
        %v1278 = vpop.f32.mrb[0].mxu0
        %v1279 = vadd.f32 0.0, %v1278
        %v1280 = vpop.f32.mrb[0].mxu0
        %1281 = vmatprep.mubr.f32.mxu0 0.0
        %1282 = vmatmul.mubr.f32.gmra.mrb[0].mxu0 %v657
        %v1283 = vpop.f32.mrb[0].mxu0
        %v1284 = vadd.f32 0.0, %v1283
        %v1285 = vpop.f32.mrb[0].mxu0
        %1286 = vdwg.mxu0
        %v1287 = vsub.f32 %v1204, %v362
        %v1288 = vmul.f32 %v1287, %v1287
        %v1290 = vrot.slane %v1288, 1
        %v1292 = vadd.f32 %v1288, %v1290
        %v1293 = vrot.slane %v1288, 2
        %v1295 = vadd.f32 %v1292, %v1293
        %v1296 = vmax.f32 %v1295, 1e-24
        %v1297 = vrsqrt.pop %v1296
        %v1299 = vsel %vm760, %v1287, 0
        %1301 = vmatprep.subr.mxu0 0.0
        %1302 = vmatpush1.msra.mxu0 %v1299
        %1303 = vmatprep.subr.mxu0 0.0
        %1304 = vmatpush1.msra.mxu0 0.0
        %1305 = vmatprep.subr.mxu0 0.0
        %1306 = vmatpush1.msra.mxu0 0.0
        %1307 = vmatprep.subr.mxu0 0.0
        %1308 = vmatpush1.msra.mxu0 0.0
        %1309 = vmatprep.subr.mxu0 0.0
        %1310 = vmatpush1.msra.mxu0 0.0
        %1311 = vmatprep.subr.mxu0 0.0
        %1312 = vmatpush1.msra.mxu0 0.0
        %1313 = vmatprep.subr.mxu0 0.0
        %1314 = vmatpush1.msra.mxu0 0.0
        %1315 = vmatprep.subr.mxu0 0.0
        %1316 = vmatpush1.msra.mxu0 0.0
        %1317 = vmatprep.subr.mxu0 0.0
        %1318 = vmatpush1.msra.mxu0 0.0
        %1319 = vmatprep.subr.mxu0 0.0
        %1320 = vmatpush1.msra.mxu0 0.0
        %1321 = vmatprep.subr.mxu0 0.0
        %1322 = vmatpush1.msra.mxu0 0.0
        %1323 = vmatprep.subr.mxu0 0.0
        %1324 = vmatpush1.msra.mxu0 0.0
        %1325 = vmatprep.subr.mxu0 0.0
        %1326 = vmatpush1.msra.mxu0 0.0
        %1327 = vmatprep.subr.mxu0 0.0
        %1328 = vmatpush1.msra.mxu0 0.0
        %1329 = vmatprep.subr.mxu0 0.0
        %1330 = vmatpush1.msra.mxu0 0.0
        %1331 = vmatprep.subr.mxu0 0.0
        %1332 = vmatpush1.msra.mxu0 0.0
        %1333 = vmatprep.subr.mxu0 0.0
        %1334 = vmatpush1.msra.mxu0 0.0
        %1335 = vmatprep.subr.mxu0 0.0
        %1336 = vmatpush1.msra.mxu0 0.0
        %1337 = vmatprep.subr.mxu0 0.0
        %1338 = vmatpush1.msra.mxu0 0.0
        %1339 = vmatprep.subr.mxu0 0.0
        %1340 = vmatpush1.msra.mxu0 0.0
        %1341 = vmatprep.subr.mxu0 0.0
        %1342 = vmatpush1.msra.mxu0 0.0
        %1343 = vmatprep.subr.mxu0 0.0
        %1344 = vmatpush1.msra.mxu0 0.0
        %1345 = vmatprep.subr.mxu0 0.0
        %1346 = vmatpush1.msra.mxu0 0.0
        %1347 = vmatprep.subr.mxu0 0.0
        %1348 = vmatpush1.msra.mxu0 0.0
        %1349 = vmatprep.subr.mxu0 0.0
        %1350 = vmatpush1.msra.mxu0 0.0
        %1351 = vmatprep.subr.mxu0 0.0
        %1352 = vmatpush1.msra.mxu0 0.0
        %1353 = vmatprep.subr.mxu0 0.0
        %1354 = vmatpush1.msra.mxu0 0.0
        %1355 = vmatprep.subr.mxu0 0.0
        %1356 = vmatpush1.msra.mxu0 0.0
        %1357 = vmatprep.subr.mxu0 0.0
        %1358 = vmatpush1.msra.mxu0 0.0
        %1359 = vmatprep.subr.mxu0 0.0
        %1360 = vmatpush1.msra.mxu0 0.0
        %1361 = vmatprep.subr.mxu0 0.0
        %1362 = vmatpush1.msra.mxu0 0.0
        %1363 = vmatprep.subr.mxu0 0.0
        %1364 = vmatpush1.msra.mxu0 0.0
        %1365 = vmatprep.mubr.f32.mxu0 0.0
        %1366 = vmatmul.mubr.f32.gmra.mrb[0].mxu0 %v752
        %v1367 = vpop.f32.mrb[0].mxu0
        %v1368 = vadd.f32 0.0, %v1367
        %v1369 = vpop.f32.mrb[0].mxu0
        %1370 = vmatprep.mubr.f32.mxu0 0.0
        %1371 = vmatmul.mubr.f32.gmra.mrb[0].mxu0 %v755
        %v1372 = vpop.f32.mrb[0].mxu0
        %v1373 = vadd.f32 0.0, %v1372
        %v1374 = vpop.f32.mrb[0].mxu0
        %1375 = vmatprep.mubr.f32.mxu0 0.0
        %1376 = vmatmul.mubr.f32.gmra.mrb[0].mxu0 %v758
        %v1377 = vpop.f32.mrb[0].mxu0
        %v1378 = vadd.f32 0.0, %v1377
        %v1379 = vpop.f32.mrb[0].mxu0
        %1380 = vdwg.mxu0
        %v1381 = vmax.f32 %v1368, 0.0
        %v1382 = vmax.f32 %v1373, 0.0
        %v1383 = vmax.f32 %v1378, 0.0
        %v1384 = vlaneseq
        %v1385 = vshrl.u32 %v1384, 7
        %v1386 = vsub.s32 0, %v1385
        %v1387 = vrot.slane %v1297, %v1386
        %v1388 = vmul.f32 %v1381, %v1387
        %v1389 = vmul.f32 %v1382, %v1387
        %v1390 = vmul.f32 %v1383, %v1387
        %v1391 = vmul.f32 %v1388, %v1274
        %v1392 = vmul.f32 %v1389, %v1279
        %v1393 = vmul.f32 %v1390, %v1284
        %v1394 = vmax.f32 %v1124, %v1391
        %v1395 = vmax.f32 %v1125, %v1392
        %v1396 = vmax.f32 %v1126, %v1393
        %v1397 = vlaneseq
        %v1398 = vshrl.u32 %v1397, 7
        %v1399 = vsub.s32 3, %v1398
        %v1400 = vrot.slane %v364, %v1399
        %vm1401 = vcmp.eq.s32.totalorder %v564, %v1400
        %vm1402 = vcmp.eq.s32.totalorder %v565, %v1400
        %v1403 = vsel %vm1401, 1, 0
        %v1404 = vsel %vm1402, 1, 0
        %v1405 = vcvt.s32.f32 %v1403
        %v1406 = vcvt.s32.f32 %v1404
        %1407 = vmatprep.subr.mxu0 0.0
        %1408 = vmatpush1.msra.mxu0 %v1405
        %1409 = vmatprep.subr.mxu0 0.0
        %1410 = vmatpush1.msra.mxu0 %v1406
        %1411 = vmatprep.subr.mxu0 0.0
        %1412 = vmatpush1.msra.mxu0 0.0
        %1413 = vmatprep.subr.mxu0 0.0
        %1414 = vmatpush1.msra.mxu0 0.0
        %1415 = vmatprep.subr.mxu0 0.0
        %1416 = vmatpush1.msra.mxu0 0.0
        %1417 = vmatprep.subr.mxu0 0.0
        %1418 = vmatpush1.msra.mxu0 0.0
        %1419 = vmatprep.subr.mxu0 0.0
        %1420 = vmatpush1.msra.mxu0 0.0
        %1421 = vmatprep.subr.mxu0 0.0
        %1422 = vmatpush1.msra.mxu0 0.0
        %1423 = vmatprep.subr.mxu0 0.0
        %1424 = vmatpush1.msra.mxu0 0.0
        %1425 = vmatprep.subr.mxu0 0.0
        %1426 = vmatpush1.msra.mxu0 0.0
        %1427 = vmatprep.subr.mxu0 0.0
        %1428 = vmatpush1.msra.mxu0 0.0
        %1429 = vmatprep.subr.mxu0 0.0
        %1430 = vmatpush1.msra.mxu0 0.0
        %1431 = vmatprep.subr.mxu0 0.0
        %1432 = vmatpush1.msra.mxu0 0.0
        %1433 = vmatprep.subr.mxu0 0.0
        %1434 = vmatpush1.msra.mxu0 0.0
        %1435 = vmatprep.subr.mxu0 0.0
        %1436 = vmatpush1.msra.mxu0 0.0
        %1437 = vmatprep.subr.mxu0 0.0
        %1438 = vmatpush1.msra.mxu0 0.0
        %1439 = vmatprep.subr.mxu0 0.0
        %1440 = vmatpush1.msra.mxu0 0.0
        %1441 = vmatprep.subr.mxu0 0.0
        %1442 = vmatpush1.msra.mxu0 0.0
        %1443 = vmatprep.subr.mxu0 0.0
        %1444 = vmatpush1.msra.mxu0 0.0
        %1445 = vmatprep.subr.mxu0 0.0
        %1446 = vmatpush1.msra.mxu0 0.0
        %1447 = vmatprep.subr.mxu0 0.0
        %1448 = vmatpush1.msra.mxu0 0.0
        %1449 = vmatprep.subr.mxu0 0.0
        %1450 = vmatpush1.msra.mxu0 0.0
        %1451 = vmatprep.subr.mxu0 0.0
        %1452 = vmatpush1.msra.mxu0 0.0
        %1453 = vmatprep.subr.mxu0 0.0
        %1454 = vmatpush1.msra.mxu0 0.0
        %1455 = vmatprep.subr.mxu0 0.0
        %1456 = vmatpush1.msra.mxu0 0.0
        %1457 = vmatprep.subr.mxu0 0.0
        %1458 = vmatpush1.msra.mxu0 0.0
        %1459 = vmatprep.subr.mxu0 0.0
        %1460 = vmatpush1.msra.mxu0 0.0
        %1461 = vmatprep.subr.mxu0 0.0
        %1462 = vmatpush1.msra.mxu0 0.0
        %1463 = vmatprep.subr.mxu0 0.0
        %1464 = vmatpush1.msra.mxu0 0.0
        %1465 = vmatprep.subr.mxu0 0.0
        %1466 = vmatpush1.msra.mxu0 0.0
        %1467 = vmatprep.subr.mxu0 0.0
        %1468 = vmatpush1.msra.mxu0 0.0
        %1469 = vmatprep.subr.mxu0 0.0
        %1470 = vmatpush1.msra.mxu0 0.0
        %1471 = vmatprep.mubr.f32.mxu0 0.0
        %1472 = vmatmul.mubr.f32.gmra.mrb[0].mxu0 %v578
        %v1473 = vpop.f32.mrb[0].mxu0
        %v1474 = vadd.f32 0.0, %v1473
        %v1475 = vpop.f32.mrb[0].mxu0
        %1476 = vdwg.mxu0
        %1477 = vmatprep.subr.mxu0 0.0
        %1478 = vmatpush1.msra.mxu0 %v1405
        %1479 = vmatprep.subr.mxu0 0.0
        %1480 = vmatpush1.msra.mxu0 %v1406
        %1481 = vmatprep.subr.mxu0 0.0
        %1482 = vmatpush1.msra.mxu0 0.0
        %1483 = vmatprep.subr.mxu0 0.0
        %1484 = vmatpush1.msra.mxu0 0.0
        %1485 = vmatprep.subr.mxu0 0.0
        %1486 = vmatpush1.msra.mxu0 0.0
        %1487 = vmatprep.subr.mxu0 0.0
        %1488 = vmatpush1.msra.mxu0 0.0
        %1489 = vmatprep.subr.mxu0 0.0
        %1490 = vmatpush1.msra.mxu0 0.0
        %1491 = vmatprep.subr.mxu0 0.0
        %1492 = vmatpush1.msra.mxu0 0.0
        %1493 = vmatprep.subr.mxu0 0.0
        %1494 = vmatpush1.msra.mxu0 0.0
        %1495 = vmatprep.subr.mxu0 0.0
        %1496 = vmatpush1.msra.mxu0 0.0
        %1497 = vmatprep.subr.mxu0 0.0
        %1498 = vmatpush1.msra.mxu0 0.0
        %1499 = vmatprep.subr.mxu0 0.0
        %1500 = vmatpush1.msra.mxu0 0.0
        %1501 = vmatprep.subr.mxu0 0.0
        %1502 = vmatpush1.msra.mxu0 0.0
        %1503 = vmatprep.subr.mxu0 0.0
        %1504 = vmatpush1.msra.mxu0 0.0
        %1505 = vmatprep.subr.mxu0 0.0
        %1506 = vmatpush1.msra.mxu0 0.0
        %1507 = vmatprep.subr.mxu0 0.0
        %1508 = vmatpush1.msra.mxu0 0.0
        %1509 = vmatprep.subr.mxu0 0.0
        %1510 = vmatpush1.msra.mxu0 0.0
        %1511 = vmatprep.subr.mxu0 0.0
        %1512 = vmatpush1.msra.mxu0 0.0
        %1513 = vmatprep.subr.mxu0 0.0
        %1514 = vmatpush1.msra.mxu0 0.0
        %1515 = vmatprep.subr.mxu0 0.0
        %1516 = vmatpush1.msra.mxu0 0.0
        %1517 = vmatprep.subr.mxu0 0.0
        %1518 = vmatpush1.msra.mxu0 0.0
        %1519 = vmatprep.subr.mxu0 0.0
        %1520 = vmatpush1.msra.mxu0 0.0
        %1521 = vmatprep.subr.mxu0 0.0
        %1522 = vmatpush1.msra.mxu0 0.0
        %1523 = vmatprep.subr.mxu0 0.0
        %1524 = vmatpush1.msra.mxu0 0.0
        %1525 = vmatprep.subr.mxu0 0.0
        %1526 = vmatpush1.msra.mxu0 0.0
        %1527 = vmatprep.subr.mxu0 0.0
        %1528 = vmatpush1.msra.mxu0 0.0
        %1529 = vmatprep.subr.mxu0 0.0
        %1530 = vmatpush1.msra.mxu0 0.0
        %1531 = vmatprep.subr.mxu0 0.0
        %1532 = vmatpush1.msra.mxu0 0.0
        %1533 = vmatprep.subr.mxu0 0.0
        %1534 = vmatpush1.msra.mxu0 0.0
        %1535 = vmatprep.subr.mxu0 0.0
        %1536 = vmatpush1.msra.mxu0 0.0
        %1537 = vmatprep.subr.mxu0 0.0
        %1538 = vmatpush1.msra.mxu0 0.0
        %1539 = vmatprep.subr.mxu0 0.0
        %1540 = vmatpush1.msra.mxu0 0.0
        %1541 = vmatprep.mubr.f32.mxu0 0.0
        %1542 = vmatmul.mubr.f32.gmra.mrb[0].mxu0 %v651
        %v1543 = vpop.f32.mrb[0].mxu0
        %v1544 = vadd.f32 0.0, %v1543
        %v1545 = vpop.f32.mrb[0].mxu0
        %1546 = vmatprep.mubr.f32.mxu0 0.0
        %1547 = vmatmul.mubr.f32.gmra.mrb[0].mxu0 %v654
        %v1548 = vpop.f32.mrb[0].mxu0
        %v1549 = vadd.f32 0.0, %v1548
        %v1550 = vpop.f32.mrb[0].mxu0
        %1551 = vmatprep.mubr.f32.mxu0 0.0
        %1552 = vmatmul.mubr.f32.gmra.mrb[0].mxu0 %v657
        %v1553 = vpop.f32.mrb[0].mxu0
        %v1554 = vadd.f32 0.0, %v1553
        %v1555 = vpop.f32.mrb[0].mxu0
        %1556 = vdwg.mxu0
        %v1557 = vsub.f32 %v1474, %v362
        %v1558 = vmul.f32 %v1557, %v1557
        %v1560 = vrot.slane %v1558, 1
        %v1562 = vadd.f32 %v1558, %v1560
        %v1563 = vrot.slane %v1558, 2
        %v1565 = vadd.f32 %v1562, %v1563
        %v1566 = vmax.f32 %v1565, 1e-24
        %v1567 = vrsqrt.pop %v1566
        %v1569 = vsel %vm760, %v1557, 0
        %1571 = vmatprep.subr.mxu0 0.0
        %1572 = vmatpush1.msra.mxu0 %v1569
        %1573 = vmatprep.subr.mxu0 0.0
        %1574 = vmatpush1.msra.mxu0 0.0
        %1575 = vmatprep.subr.mxu0 0.0
        %1576 = vmatpush1.msra.mxu0 0.0
        %1577 = vmatprep.subr.mxu0 0.0
        %1578 = vmatpush1.msra.mxu0 0.0
        %1579 = vmatprep.subr.mxu0 0.0
        %1580 = vmatpush1.msra.mxu0 0.0
        %1581 = vmatprep.subr.mxu0 0.0
        %1582 = vmatpush1.msra.mxu0 0.0
        %1583 = vmatprep.subr.mxu0 0.0
        %1584 = vmatpush1.msra.mxu0 0.0
        %1585 = vmatprep.subr.mxu0 0.0
        %1586 = vmatpush1.msra.mxu0 0.0
        %1587 = vmatprep.subr.mxu0 0.0
        %1588 = vmatpush1.msra.mxu0 0.0
        %1589 = vmatprep.subr.mxu0 0.0
        %1590 = vmatpush1.msra.mxu0 0.0
        %1591 = vmatprep.subr.mxu0 0.0
        %1592 = vmatpush1.msra.mxu0 0.0
        %1593 = vmatprep.subr.mxu0 0.0
        %1594 = vmatpush1.msra.mxu0 0.0
        %1595 = vmatprep.subr.mxu0 0.0
        %1596 = vmatpush1.msra.mxu0 0.0
        %1597 = vmatprep.subr.mxu0 0.0
        %1598 = vmatpush1.msra.mxu0 0.0
        %1599 = vmatprep.subr.mxu0 0.0
        %1600 = vmatpush1.msra.mxu0 0.0
        %1601 = vmatprep.subr.mxu0 0.0
        %1602 = vmatpush1.msra.mxu0 0.0
        %1603 = vmatprep.subr.mxu0 0.0
        %1604 = vmatpush1.msra.mxu0 0.0
        %1605 = vmatprep.subr.mxu0 0.0
        %1606 = vmatpush1.msra.mxu0 0.0
        %1607 = vmatprep.subr.mxu0 0.0
        %1608 = vmatpush1.msra.mxu0 0.0
        %1609 = vmatprep.subr.mxu0 0.0
        %1610 = vmatpush1.msra.mxu0 0.0
        %1611 = vmatprep.subr.mxu0 0.0
        %1612 = vmatpush1.msra.mxu0 0.0
        %1613 = vmatprep.subr.mxu0 0.0
        %1614 = vmatpush1.msra.mxu0 0.0
        %1615 = vmatprep.subr.mxu0 0.0
        %1616 = vmatpush1.msra.mxu0 0.0
        %1617 = vmatprep.subr.mxu0 0.0
        %1618 = vmatpush1.msra.mxu0 0.0
        %1619 = vmatprep.subr.mxu0 0.0
        %1620 = vmatpush1.msra.mxu0 0.0
        %1621 = vmatprep.subr.mxu0 0.0
        %1622 = vmatpush1.msra.mxu0 0.0
        %1623 = vmatprep.subr.mxu0 0.0
        %1624 = vmatpush1.msra.mxu0 0.0
        %1625 = vmatprep.subr.mxu0 0.0
        %1626 = vmatpush1.msra.mxu0 0.0
        %1627 = vmatprep.subr.mxu0 0.0
        %1628 = vmatpush1.msra.mxu0 0.0
        %1629 = vmatprep.subr.mxu0 0.0
        %1630 = vmatpush1.msra.mxu0 0.0
        %1631 = vmatprep.subr.mxu0 0.0
        %1632 = vmatpush1.msra.mxu0 0.0
        %1633 = vmatprep.subr.mxu0 0.0
        %1634 = vmatpush1.msra.mxu0 0.0
        %1635 = vmatprep.mubr.f32.mxu0 0.0
        %1636 = vmatmul.mubr.f32.gmra.mrb[0].mxu0 %v752
        %v1637 = vpop.f32.mrb[0].mxu0
        %v1638 = vadd.f32 0.0, %v1637
        %v1639 = vpop.f32.mrb[0].mxu0
        %1640 = vmatprep.mubr.f32.mxu0 0.0
        %1641 = vmatmul.mubr.f32.gmra.mrb[0].mxu0 %v755
        %v1642 = vpop.f32.mrb[0].mxu0
        %v1643 = vadd.f32 0.0, %v1642
        %v1644 = vpop.f32.mrb[0].mxu0
        %1645 = vmatprep.mubr.f32.mxu0 0.0
        %1646 = vmatmul.mubr.f32.gmra.mrb[0].mxu0 %v758
        %v1647 = vpop.f32.mrb[0].mxu0
        %v1648 = vadd.f32 0.0, %v1647
        %v1649 = vpop.f32.mrb[0].mxu0
        %1650 = vdwg.mxu0
        %v1651 = vmax.f32 %v1638, 0.0
        %v1652 = vmax.f32 %v1643, 0.0
        %v1653 = vmax.f32 %v1648, 0.0
        %v1654 = vlaneseq
        %v1655 = vshrl.u32 %v1654, 7
        %v1656 = vsub.s32 0, %v1655
        %v1657 = vrot.slane %v1567, %v1656
        %v1658 = vmul.f32 %v1651, %v1657
        %v1659 = vmul.f32 %v1652, %v1657
        %v1660 = vmul.f32 %v1653, %v1657
        %v1661 = vmul.f32 %v1658, %v1544
        %v1662 = vmul.f32 %v1659, %v1549
        %v1663 = vmul.f32 %v1660, %v1554
        %v1664 = vmax.f32 %v1394, %v1661
        %v1665 = vmax.f32 %v1395, %v1662
        %v1666 = vmax.f32 %v1396, %v1663
        %v1667 = vlaneseq
        %v1668 = vshrl.u32 %v1667, 7
        %v1669 = vsub.s32 4, %v1668
        %v1670 = vrot.slane %v364, %v1669
        %vm1671 = vcmp.eq.s32.totalorder %v564, %v1670
        %vm1672 = vcmp.eq.s32.totalorder %v565, %v1670
        %v1673 = vsel %vm1671, 1, 0
        %v1674 = vsel %vm1672, 1, 0
        %v1675 = vcvt.s32.f32 %v1673
        %v1676 = vcvt.s32.f32 %v1674
        %1677 = vmatprep.subr.mxu0 0.0
        %1678 = vmatpush1.msra.mxu0 %v1675
        %1679 = vmatprep.subr.mxu0 0.0
        %1680 = vmatpush1.msra.mxu0 %v1676
        %1681 = vmatprep.subr.mxu0 0.0
        %1682 = vmatpush1.msra.mxu0 0.0
        %1683 = vmatprep.subr.mxu0 0.0
        %1684 = vmatpush1.msra.mxu0 0.0
        %1685 = vmatprep.subr.mxu0 0.0
        %1686 = vmatpush1.msra.mxu0 0.0
        %1687 = vmatprep.subr.mxu0 0.0
        %1688 = vmatpush1.msra.mxu0 0.0
        %1689 = vmatprep.subr.mxu0 0.0
        %1690 = vmatpush1.msra.mxu0 0.0
        %1691 = vmatprep.subr.mxu0 0.0
        %1692 = vmatpush1.msra.mxu0 0.0
        %1693 = vmatprep.subr.mxu0 0.0
        %1694 = vmatpush1.msra.mxu0 0.0
        %1695 = vmatprep.subr.mxu0 0.0
        %1696 = vmatpush1.msra.mxu0 0.0
        %1697 = vmatprep.subr.mxu0 0.0
        %1698 = vmatpush1.msra.mxu0 0.0
        %1699 = vmatprep.subr.mxu0 0.0
        %1700 = vmatpush1.msra.mxu0 0.0
        %1701 = vmatprep.subr.mxu0 0.0
        %1702 = vmatpush1.msra.mxu0 0.0
        %1703 = vmatprep.subr.mxu0 0.0
        %1704 = vmatpush1.msra.mxu0 0.0
        %1705 = vmatprep.subr.mxu0 0.0
        %1706 = vmatpush1.msra.mxu0 0.0
        %1707 = vmatprep.subr.mxu0 0.0
        %1708 = vmatpush1.msra.mxu0 0.0
        %1709 = vmatprep.subr.mxu0 0.0
        %1710 = vmatpush1.msra.mxu0 0.0
        %1711 = vmatprep.subr.mxu0 0.0
        %1712 = vmatpush1.msra.mxu0 0.0
        %1713 = vmatprep.subr.mxu0 0.0
        %1714 = vmatpush1.msra.mxu0 0.0
        %1715 = vmatprep.subr.mxu0 0.0
        %1716 = vmatpush1.msra.mxu0 0.0
        %1717 = vmatprep.subr.mxu0 0.0
        %1718 = vmatpush1.msra.mxu0 0.0
        %1719 = vmatprep.subr.mxu0 0.0
        %1720 = vmatpush1.msra.mxu0 0.0
        %1721 = vmatprep.subr.mxu0 0.0
        %1722 = vmatpush1.msra.mxu0 0.0
        %1723 = vmatprep.subr.mxu0 0.0
        %1724 = vmatpush1.msra.mxu0 0.0
        %1725 = vmatprep.subr.mxu0 0.0
        %1726 = vmatpush1.msra.mxu0 0.0
        %1727 = vmatprep.subr.mxu0 0.0
        %1728 = vmatpush1.msra.mxu0 0.0
        %1729 = vmatprep.subr.mxu0 0.0
        %1730 = vmatpush1.msra.mxu0 0.0
        %1731 = vmatprep.subr.mxu0 0.0
        %1732 = vmatpush1.msra.mxu0 0.0
        %1733 = vmatprep.subr.mxu0 0.0
        %1734 = vmatpush1.msra.mxu0 0.0
        %1735 = vmatprep.subr.mxu0 0.0
        %1736 = vmatpush1.msra.mxu0 0.0
        %1737 = vmatprep.subr.mxu0 0.0
        %1738 = vmatpush1.msra.mxu0 0.0
        %1739 = vmatprep.subr.mxu0 0.0
        %1740 = vmatpush1.msra.mxu0 0.0
        %1741 = vmatprep.mubr.f32.mxu0 0.0
        %1742 = vmatmul.mubr.f32.gmra.mrb[0].mxu0 %v578
        %v1743 = vpop.f32.mrb[0].mxu0
        %v1744 = vadd.f32 0.0, %v1743
        %v1745 = vpop.f32.mrb[0].mxu0
        %1746 = vdwg.mxu0
        %1747 = vmatprep.subr.mxu0 0.0
        %1748 = vmatpush1.msra.mxu0 %v1675
        %1749 = vmatprep.subr.mxu0 0.0
        %1750 = vmatpush1.msra.mxu0 %v1676
        %1751 = vmatprep.subr.mxu0 0.0
        %1752 = vmatpush1.msra.mxu0 0.0
        %1753 = vmatprep.subr.mxu0 0.0
        %1754 = vmatpush1.msra.mxu0 0.0
        %1755 = vmatprep.subr.mxu0 0.0
        %1756 = vmatpush1.msra.mxu0 0.0
        %1757 = vmatprep.subr.mxu0 0.0
        %1758 = vmatpush1.msra.mxu0 0.0
        %1759 = vmatprep.subr.mxu0 0.0
        %1760 = vmatpush1.msra.mxu0 0.0
        %1761 = vmatprep.subr.mxu0 0.0
        %1762 = vmatpush1.msra.mxu0 0.0
        %1763 = vmatprep.subr.mxu0 0.0
        %1764 = vmatpush1.msra.mxu0 0.0
        %1765 = vmatprep.subr.mxu0 0.0
        %1766 = vmatpush1.msra.mxu0 0.0
        %1767 = vmatprep.subr.mxu0 0.0
        %1768 = vmatpush1.msra.mxu0 0.0
        %1769 = vmatprep.subr.mxu0 0.0
        %1770 = vmatpush1.msra.mxu0 0.0
        %1771 = vmatprep.subr.mxu0 0.0
        %1772 = vmatpush1.msra.mxu0 0.0
        %1773 = vmatprep.subr.mxu0 0.0
        %1774 = vmatpush1.msra.mxu0 0.0
        %1775 = vmatprep.subr.mxu0 0.0
        %1776 = vmatpush1.msra.mxu0 0.0
        %1777 = vmatprep.subr.mxu0 0.0
        %1778 = vmatpush1.msra.mxu0 0.0
        %1779 = vmatprep.subr.mxu0 0.0
        %1780 = vmatpush1.msra.mxu0 0.0
        %1781 = vmatprep.subr.mxu0 0.0
        %1782 = vmatpush1.msra.mxu0 0.0
        %1783 = vmatprep.subr.mxu0 0.0
        %1784 = vmatpush1.msra.mxu0 0.0
        %1785 = vmatprep.subr.mxu0 0.0
        %1786 = vmatpush1.msra.mxu0 0.0
        %1787 = vmatprep.subr.mxu0 0.0
        %1788 = vmatpush1.msra.mxu0 0.0
        %1789 = vmatprep.subr.mxu0 0.0
        %1790 = vmatpush1.msra.mxu0 0.0
        %1791 = vmatprep.subr.mxu0 0.0
        %1792 = vmatpush1.msra.mxu0 0.0
        %1793 = vmatprep.subr.mxu0 0.0
        %1794 = vmatpush1.msra.mxu0 0.0
        %1795 = vmatprep.subr.mxu0 0.0
        %1796 = vmatpush1.msra.mxu0 0.0
        %1797 = vmatprep.subr.mxu0 0.0
        %1798 = vmatpush1.msra.mxu0 0.0
        %1799 = vmatprep.subr.mxu0 0.0
        %1800 = vmatpush1.msra.mxu0 0.0
        %1801 = vmatprep.subr.mxu0 0.0
        %1802 = vmatpush1.msra.mxu0 0.0
        %1803 = vmatprep.subr.mxu0 0.0
        %1804 = vmatpush1.msra.mxu0 0.0
        %1805 = vmatprep.subr.mxu0 0.0
        %1806 = vmatpush1.msra.mxu0 0.0
        %1807 = vmatprep.subr.mxu0 0.0
        %1808 = vmatpush1.msra.mxu0 0.0
        %1809 = vmatprep.subr.mxu0 0.0
        %1810 = vmatpush1.msra.mxu0 0.0
        %1811 = vmatprep.mubr.f32.mxu0 0.0
        %1812 = vmatmul.mubr.f32.gmra.mrb[0].mxu0 %v651
        %v1813 = vpop.f32.mrb[0].mxu0
        %v1814 = vadd.f32 0.0, %v1813
        %v1815 = vpop.f32.mrb[0].mxu0
        %1816 = vmatprep.mubr.f32.mxu0 0.0
        %1817 = vmatmul.mubr.f32.gmra.mrb[0].mxu0 %v654
        %v1818 = vpop.f32.mrb[0].mxu0
        %v1819 = vadd.f32 0.0, %v1818
        %v1820 = vpop.f32.mrb[0].mxu0
        %1821 = vmatprep.mubr.f32.mxu0 0.0
        %1822 = vmatmul.mubr.f32.gmra.mrb[0].mxu0 %v657
        %v1823 = vpop.f32.mrb[0].mxu0
        %v1824 = vadd.f32 0.0, %v1823
        %v1825 = vpop.f32.mrb[0].mxu0
        %1826 = vdwg.mxu0
        %v1827 = vsub.f32 %v1744, %v362
        %v1828 = vmul.f32 %v1827, %v1827
        %v1830 = vrot.slane %v1828, 1
        %v1832 = vadd.f32 %v1828, %v1830
        %v1833 = vrot.slane %v1828, 2
        %v1835 = vadd.f32 %v1832, %v1833
        %v1836 = vmax.f32 %v1835, 1e-24
        %v1837 = vrsqrt.pop %v1836
        %v1839 = vsel %vm760, %v1827, 0
        %1841 = vmatprep.subr.mxu0 0.0
        %1842 = vmatpush1.msra.mxu0 %v1839
        %1843 = vmatprep.subr.mxu0 0.0
        %1844 = vmatpush1.msra.mxu0 0.0
        %1845 = vmatprep.subr.mxu0 0.0
        %1846 = vmatpush1.msra.mxu0 0.0
        %1847 = vmatprep.subr.mxu0 0.0
        %1848 = vmatpush1.msra.mxu0 0.0
        %1849 = vmatprep.subr.mxu0 0.0
        %1850 = vmatpush1.msra.mxu0 0.0
        %1851 = vmatprep.subr.mxu0 0.0
        %1852 = vmatpush1.msra.mxu0 0.0
        %1853 = vmatprep.subr.mxu0 0.0
        %1854 = vmatpush1.msra.mxu0 0.0
        %1855 = vmatprep.subr.mxu0 0.0
        %1856 = vmatpush1.msra.mxu0 0.0
        %1857 = vmatprep.subr.mxu0 0.0
        %1858 = vmatpush1.msra.mxu0 0.0
        %1859 = vmatprep.subr.mxu0 0.0
        %1860 = vmatpush1.msra.mxu0 0.0
        %1861 = vmatprep.subr.mxu0 0.0
        %1862 = vmatpush1.msra.mxu0 0.0
        %1863 = vmatprep.subr.mxu0 0.0
        %1864 = vmatpush1.msra.mxu0 0.0
        %1865 = vmatprep.subr.mxu0 0.0
        %1866 = vmatpush1.msra.mxu0 0.0
        %1867 = vmatprep.subr.mxu0 0.0
        %1868 = vmatpush1.msra.mxu0 0.0
        %1869 = vmatprep.subr.mxu0 0.0
        %1870 = vmatpush1.msra.mxu0 0.0
        %1871 = vmatprep.subr.mxu0 0.0
        %1872 = vmatpush1.msra.mxu0 0.0
        %1873 = vmatprep.subr.mxu0 0.0
        %1874 = vmatpush1.msra.mxu0 0.0
        %1875 = vmatprep.subr.mxu0 0.0
        %1876 = vmatpush1.msra.mxu0 0.0
        %1877 = vmatprep.subr.mxu0 0.0
        %1878 = vmatpush1.msra.mxu0 0.0
        %1879 = vmatprep.subr.mxu0 0.0
        %1880 = vmatpush1.msra.mxu0 0.0
        %1881 = vmatprep.subr.mxu0 0.0
        %1882 = vmatpush1.msra.mxu0 0.0
        %1883 = vmatprep.subr.mxu0 0.0
        %1884 = vmatpush1.msra.mxu0 0.0
        %1885 = vmatprep.subr.mxu0 0.0
        %1886 = vmatpush1.msra.mxu0 0.0
        %1887 = vmatprep.subr.mxu0 0.0
        %1888 = vmatpush1.msra.mxu0 0.0
        %1889 = vmatprep.subr.mxu0 0.0
        %1890 = vmatpush1.msra.mxu0 0.0
        %1891 = vmatprep.subr.mxu0 0.0
        %1892 = vmatpush1.msra.mxu0 0.0
        %1893 = vmatprep.subr.mxu0 0.0
        %1894 = vmatpush1.msra.mxu0 0.0
        %1895 = vmatprep.subr.mxu0 0.0
        %1896 = vmatpush1.msra.mxu0 0.0
        %1897 = vmatprep.subr.mxu0 0.0
        %1898 = vmatpush1.msra.mxu0 0.0
        %1899 = vmatprep.subr.mxu0 0.0
        %1900 = vmatpush1.msra.mxu0 0.0
        %1901 = vmatprep.subr.mxu0 0.0
        %1902 = vmatpush1.msra.mxu0 0.0
        %1903 = vmatprep.subr.mxu0 0.0
        %1904 = vmatpush1.msra.mxu0 0.0
        %1905 = vmatprep.mubr.f32.mxu0 0.0
        %1906 = vmatmul.mubr.f32.gmra.mrb[0].mxu0 %v752
        %v1907 = vpop.f32.mrb[0].mxu0
        %v1908 = vadd.f32 0.0, %v1907
        %v1909 = vpop.f32.mrb[0].mxu0
        %1910 = vmatprep.mubr.f32.mxu0 0.0
        %1911 = vmatmul.mubr.f32.gmra.mrb[0].mxu0 %v755
        %v1912 = vpop.f32.mrb[0].mxu0
        %v1913 = vadd.f32 0.0, %v1912
        %v1914 = vpop.f32.mrb[0].mxu0
        %1915 = vmatprep.mubr.f32.mxu0 0.0
        %1916 = vmatmul.mubr.f32.gmra.mrb[0].mxu0 %v758
        %v1917 = vpop.f32.mrb[0].mxu0
        %v1918 = vadd.f32 0.0, %v1917
        %v1919 = vpop.f32.mrb[0].mxu0
        %1920 = vdwg.mxu0
        %v1921 = vmax.f32 %v1908, 0.0
        %v1922 = vmax.f32 %v1913, 0.0
        %v1923 = vmax.f32 %v1918, 0.0
        %v1924 = vlaneseq
        %v1925 = vshrl.u32 %v1924, 7
        %v1926 = vsub.s32 0, %v1925
        %v1927 = vrot.slane %v1837, %v1926
        %v1928 = vmul.f32 %v1921, %v1927
        %v1929 = vmul.f32 %v1922, %v1927
        %v1930 = vmul.f32 %v1923, %v1927
        %v1931 = vmul.f32 %v1928, %v1814
        %v1932 = vmul.f32 %v1929, %v1819
        %v1933 = vmul.f32 %v1930, %v1824
        %v1934 = vmax.f32 %v1664, %v1931
        %v1935 = vmax.f32 %v1665, %v1932
        %v1936 = vmax.f32 %v1666, %v1933
        %v1937 = vlaneseq
        %v1938 = vshrl.u32 %v1937, 7
        %v1939 = vsub.s32 5, %v1938
        %v1940 = vrot.slane %v364, %v1939
        %vm1941 = vcmp.eq.s32.totalorder %v564, %v1940
        %vm1942 = vcmp.eq.s32.totalorder %v565, %v1940
        %v1943 = vsel %vm1941, 1, 0
        %v1944 = vsel %vm1942, 1, 0
        %v1945 = vcvt.s32.f32 %v1943
        %v1946 = vcvt.s32.f32 %v1944
        %1947 = vmatprep.subr.mxu0 0.0
        %1948 = vmatpush1.msra.mxu0 %v1945
        %1949 = vmatprep.subr.mxu0 0.0
        %1950 = vmatpush1.msra.mxu0 %v1946
        %1951 = vmatprep.subr.mxu0 0.0
        %1952 = vmatpush1.msra.mxu0 0.0
        %1953 = vmatprep.subr.mxu0 0.0
        %1954 = vmatpush1.msra.mxu0 0.0
        %1955 = vmatprep.subr.mxu0 0.0
        %1956 = vmatpush1.msra.mxu0 0.0
        %1957 = vmatprep.subr.mxu0 0.0
        %1958 = vmatpush1.msra.mxu0 0.0
        %1959 = vmatprep.subr.mxu0 0.0
        %1960 = vmatpush1.msra.mxu0 0.0
        %1961 = vmatprep.subr.mxu0 0.0
        %1962 = vmatpush1.msra.mxu0 0.0
        %1963 = vmatprep.subr.mxu0 0.0
        %1964 = vmatpush1.msra.mxu0 0.0
        %1965 = vmatprep.subr.mxu0 0.0
        %1966 = vmatpush1.msra.mxu0 0.0
        %1967 = vmatprep.subr.mxu0 0.0
        %1968 = vmatpush1.msra.mxu0 0.0
        %1969 = vmatprep.subr.mxu0 0.0
        %1970 = vmatpush1.msra.mxu0 0.0
        %1971 = vmatprep.subr.mxu0 0.0
        %1972 = vmatpush1.msra.mxu0 0.0
        %1973 = vmatprep.subr.mxu0 0.0
        %1974 = vmatpush1.msra.mxu0 0.0
        %1975 = vmatprep.subr.mxu0 0.0
        %1976 = vmatpush1.msra.mxu0 0.0
        %1977 = vmatprep.subr.mxu0 0.0
        %1978 = vmatpush1.msra.mxu0 0.0
        %1979 = vmatprep.subr.mxu0 0.0
        %1980 = vmatpush1.msra.mxu0 0.0
        %1981 = vmatprep.subr.mxu0 0.0
        %1982 = vmatpush1.msra.mxu0 0.0
        %1983 = vmatprep.subr.mxu0 0.0
        %1984 = vmatpush1.msra.mxu0 0.0
        %1985 = vmatprep.subr.mxu0 0.0
        %1986 = vmatpush1.msra.mxu0 0.0
        %1987 = vmatprep.subr.mxu0 0.0
        %1988 = vmatpush1.msra.mxu0 0.0
        %1989 = vmatprep.subr.mxu0 0.0
        %1990 = vmatpush1.msra.mxu0 0.0
        %1991 = vmatprep.subr.mxu0 0.0
        %1992 = vmatpush1.msra.mxu0 0.0
        %1993 = vmatprep.subr.mxu0 0.0
        %1994 = vmatpush1.msra.mxu0 0.0
        %1995 = vmatprep.subr.mxu0 0.0
        %1996 = vmatpush1.msra.mxu0 0.0
        %1997 = vmatprep.subr.mxu0 0.0
        %1998 = vmatpush1.msra.mxu0 0.0
        %1999 = vmatprep.subr.mxu0 0.0
        %2000 = vmatpush1.msra.mxu0 0.0
        %2001 = vmatprep.subr.mxu0 0.0
        %2002 = vmatpush1.msra.mxu0 0.0
        %2003 = vmatprep.subr.mxu0 0.0
        %2004 = vmatpush1.msra.mxu0 0.0
        %2005 = vmatprep.subr.mxu0 0.0
        %2006 = vmatpush1.msra.mxu0 0.0
        %2007 = vmatprep.subr.mxu0 0.0
        %2008 = vmatpush1.msra.mxu0 0.0
        %2009 = vmatprep.subr.mxu0 0.0
        %2010 = vmatpush1.msra.mxu0 0.0
        %2011 = vmatprep.mubr.f32.mxu0 0.0
        %2012 = vmatmul.mubr.f32.gmra.mrb[0].mxu0 %v578
        %v2013 = vpop.f32.mrb[0].mxu0
        %v2014 = vadd.f32 0.0, %v2013
        %v2015 = vpop.f32.mrb[0].mxu0
        %2016 = vdwg.mxu0
        %2017 = vmatprep.subr.mxu0 0.0
        %2018 = vmatpush1.msra.mxu0 %v1945
        %2019 = vmatprep.subr.mxu0 0.0
        %2020 = vmatpush1.msra.mxu0 %v1946
        %2021 = vmatprep.subr.mxu0 0.0
        %2022 = vmatpush1.msra.mxu0 0.0
        %2023 = vmatprep.subr.mxu0 0.0
        %2024 = vmatpush1.msra.mxu0 0.0
        %2025 = vmatprep.subr.mxu0 0.0
        %2026 = vmatpush1.msra.mxu0 0.0
        %2027 = vmatprep.subr.mxu0 0.0
        %2028 = vmatpush1.msra.mxu0 0.0
        %2029 = vmatprep.subr.mxu0 0.0
        %2030 = vmatpush1.msra.mxu0 0.0
        %2031 = vmatprep.subr.mxu0 0.0
        %2032 = vmatpush1.msra.mxu0 0.0
        %2033 = vmatprep.subr.mxu0 0.0
        %2034 = vmatpush1.msra.mxu0 0.0
        %2035 = vmatprep.subr.mxu0 0.0
        %2036 = vmatpush1.msra.mxu0 0.0
        %2037 = vmatprep.subr.mxu0 0.0
        %2038 = vmatpush1.msra.mxu0 0.0
        %2039 = vmatprep.subr.mxu0 0.0
        %2040 = vmatpush1.msra.mxu0 0.0
        %2041 = vmatprep.subr.mxu0 0.0
        %2042 = vmatpush1.msra.mxu0 0.0
        %2043 = vmatprep.subr.mxu0 0.0
        %2044 = vmatpush1.msra.mxu0 0.0
        %2045 = vmatprep.subr.mxu0 0.0
        %2046 = vmatpush1.msra.mxu0 0.0
        %2047 = vmatprep.subr.mxu0 0.0
        %2048 = vmatpush1.msra.mxu0 0.0
        %2049 = vmatprep.subr.mxu0 0.0
        %2050 = vmatpush1.msra.mxu0 0.0
        %2051 = vmatprep.subr.mxu0 0.0
        %2052 = vmatpush1.msra.mxu0 0.0
        %2053 = vmatprep.subr.mxu0 0.0
        %2054 = vmatpush1.msra.mxu0 0.0
        %2055 = vmatprep.subr.mxu0 0.0
        %2056 = vmatpush1.msra.mxu0 0.0
        %2057 = vmatprep.subr.mxu0 0.0
        %2058 = vmatpush1.msra.mxu0 0.0
        %2059 = vmatprep.subr.mxu0 0.0
        %2060 = vmatpush1.msra.mxu0 0.0
        %2061 = vmatprep.subr.mxu0 0.0
        %2062 = vmatpush1.msra.mxu0 0.0
        %2063 = vmatprep.subr.mxu0 0.0
        %2064 = vmatpush1.msra.mxu0 0.0
        %2065 = vmatprep.subr.mxu0 0.0
        %2066 = vmatpush1.msra.mxu0 0.0
        %2067 = vmatprep.subr.mxu0 0.0
        %2068 = vmatpush1.msra.mxu0 0.0
        %2069 = vmatprep.subr.mxu0 0.0
        %2070 = vmatpush1.msra.mxu0 0.0
        %2071 = vmatprep.subr.mxu0 0.0
        %2072 = vmatpush1.msra.mxu0 0.0
        %2073 = vmatprep.subr.mxu0 0.0
        %2074 = vmatpush1.msra.mxu0 0.0
        %2075 = vmatprep.subr.mxu0 0.0
        %2076 = vmatpush1.msra.mxu0 0.0
        %2077 = vmatprep.subr.mxu0 0.0
        %2078 = vmatpush1.msra.mxu0 0.0
        %2079 = vmatprep.subr.mxu0 0.0
        %2080 = vmatpush1.msra.mxu0 0.0
        %2081 = vmatprep.mubr.f32.mxu0 0.0
        %2082 = vmatmul.mubr.f32.gmra.mrb[0].mxu0 %v651
        %v2083 = vpop.f32.mrb[0].mxu0
        %v2084 = vadd.f32 0.0, %v2083
        %v2085 = vpop.f32.mrb[0].mxu0
        %2086 = vmatprep.mubr.f32.mxu0 0.0
        %2087 = vmatmul.mubr.f32.gmra.mrb[0].mxu0 %v654
        %v2088 = vpop.f32.mrb[0].mxu0
        %v2089 = vadd.f32 0.0, %v2088
        %v2090 = vpop.f32.mrb[0].mxu0
        %2091 = vmatprep.mubr.f32.mxu0 0.0
        %2092 = vmatmul.mubr.f32.gmra.mrb[0].mxu0 %v657
        %v2093 = vpop.f32.mrb[0].mxu0
        %v2094 = vadd.f32 0.0, %v2093
        %v2095 = vpop.f32.mrb[0].mxu0
        %2096 = vdwg.mxu0
        %v2097 = vsub.f32 %v2014, %v362
        %v2098 = vmul.f32 %v2097, %v2097
        %v2100 = vrot.slane %v2098, 1
        %v2102 = vadd.f32 %v2098, %v2100
        %v2103 = vrot.slane %v2098, 2
        %v2105 = vadd.f32 %v2102, %v2103
        %v2106 = vmax.f32 %v2105, 1e-24
        %v2107 = vrsqrt.pop %v2106
        %v2109 = vsel %vm760, %v2097, 0
        %2111 = vmatprep.subr.mxu0 0.0
        %2112 = vmatpush1.msra.mxu0 %v2109
        %2113 = vmatprep.subr.mxu0 0.0
        %2114 = vmatpush1.msra.mxu0 0.0
        %2115 = vmatprep.subr.mxu0 0.0
        %2116 = vmatpush1.msra.mxu0 0.0
        %2117 = vmatprep.subr.mxu0 0.0
        %2118 = vmatpush1.msra.mxu0 0.0
        %2119 = vmatprep.subr.mxu0 0.0
        %2120 = vmatpush1.msra.mxu0 0.0
        %2121 = vmatprep.subr.mxu0 0.0
        %2122 = vmatpush1.msra.mxu0 0.0
        %2123 = vmatprep.subr.mxu0 0.0
        %2124 = vmatpush1.msra.mxu0 0.0
        %2125 = vmatprep.subr.mxu0 0.0
        %2126 = vmatpush1.msra.mxu0 0.0
        %2127 = vmatprep.subr.mxu0 0.0
        %2128 = vmatpush1.msra.mxu0 0.0
        %2129 = vmatprep.subr.mxu0 0.0
        %2130 = vmatpush1.msra.mxu0 0.0
        %2131 = vmatprep.subr.mxu0 0.0
        %2132 = vmatpush1.msra.mxu0 0.0
        %2133 = vmatprep.subr.mxu0 0.0
        %2134 = vmatpush1.msra.mxu0 0.0
        %2135 = vmatprep.subr.mxu0 0.0
        %2136 = vmatpush1.msra.mxu0 0.0
        %2137 = vmatprep.subr.mxu0 0.0
        %2138 = vmatpush1.msra.mxu0 0.0
        %2139 = vmatprep.subr.mxu0 0.0
        %2140 = vmatpush1.msra.mxu0 0.0
        %2141 = vmatprep.subr.mxu0 0.0
        %2142 = vmatpush1.msra.mxu0 0.0
        %2143 = vmatprep.subr.mxu0 0.0
        %2144 = vmatpush1.msra.mxu0 0.0
        %2145 = vmatprep.subr.mxu0 0.0
        %2146 = vmatpush1.msra.mxu0 0.0
        %2147 = vmatprep.subr.mxu0 0.0
        %2148 = vmatpush1.msra.mxu0 0.0
        %2149 = vmatprep.subr.mxu0 0.0
        %2150 = vmatpush1.msra.mxu0 0.0
        %2151 = vmatprep.subr.mxu0 0.0
        %2152 = vmatpush1.msra.mxu0 0.0
        %2153 = vmatprep.subr.mxu0 0.0
        %2154 = vmatpush1.msra.mxu0 0.0
        %2155 = vmatprep.subr.mxu0 0.0
        %2156 = vmatpush1.msra.mxu0 0.0
        %2157 = vmatprep.subr.mxu0 0.0
        %2158 = vmatpush1.msra.mxu0 0.0
        %2159 = vmatprep.subr.mxu0 0.0
        %2160 = vmatpush1.msra.mxu0 0.0
        %2161 = vmatprep.subr.mxu0 0.0
        %2162 = vmatpush1.msra.mxu0 0.0
        %2163 = vmatprep.subr.mxu0 0.0
        %2164 = vmatpush1.msra.mxu0 0.0
        %2165 = vmatprep.subr.mxu0 0.0
        %2166 = vmatpush1.msra.mxu0 0.0
        %2167 = vmatprep.subr.mxu0 0.0
        %2168 = vmatpush1.msra.mxu0 0.0
        %2169 = vmatprep.subr.mxu0 0.0
        %2170 = vmatpush1.msra.mxu0 0.0
        %2171 = vmatprep.subr.mxu0 0.0
        %2172 = vmatpush1.msra.mxu0 0.0
        %2173 = vmatprep.subr.mxu0 0.0
        %2174 = vmatpush1.msra.mxu0 0.0
        %2175 = vmatprep.mubr.f32.mxu0 0.0
        %2176 = vmatmul.mubr.f32.gmra.mrb[0].mxu0 %v752
        %v2177 = vpop.f32.mrb[0].mxu0
        %v2178 = vadd.f32 0.0, %v2177
        %v2179 = vpop.f32.mrb[0].mxu0
        %2180 = vmatprep.mubr.f32.mxu0 0.0
        %2181 = vmatmul.mubr.f32.gmra.mrb[0].mxu0 %v755
        %v2182 = vpop.f32.mrb[0].mxu0
        %v2183 = vadd.f32 0.0, %v2182
        %v2184 = vpop.f32.mrb[0].mxu0
        %2185 = vmatprep.mubr.f32.mxu0 0.0
        %2186 = vmatmul.mubr.f32.gmra.mrb[0].mxu0 %v758
        %v2187 = vpop.f32.mrb[0].mxu0
        %v2188 = vadd.f32 0.0, %v2187
        %v2189 = vpop.f32.mrb[0].mxu0
        %2190 = vdwg.mxu0
        %v2191 = vmax.f32 %v2178, 0.0
        %v2192 = vmax.f32 %v2183, 0.0
        %v2193 = vmax.f32 %v2188, 0.0
        %v2194 = vlaneseq
        %v2195 = vshrl.u32 %v2194, 7
        %v2196 = vsub.s32 0, %v2195
        %v2197 = vrot.slane %v2107, %v2196
        %v2198 = vmul.f32 %v2191, %v2197
        %v2199 = vmul.f32 %v2192, %v2197
        %v2200 = vmul.f32 %v2193, %v2197
        %v2201 = vmul.f32 %v2198, %v2084
        %v2202 = vmul.f32 %v2199, %v2089
        %v2203 = vmul.f32 %v2200, %v2094
        %v2204 = vmax.f32 %v1934, %v2201
        %v2205 = vmax.f32 %v1935, %v2202
        %v2206 = vmax.f32 %v1936, %v2203
        %v2207 = vlaneseq
        %v2208 = vshrl.u32 %v2207, 7
        %v2209 = vsub.s32 6, %v2208
        %v2210 = vrot.slane %v364, %v2209
        %vm2211 = vcmp.eq.s32.totalorder %v564, %v2210
        %vm2212 = vcmp.eq.s32.totalorder %v565, %v2210
        %v2213 = vsel %vm2211, 1, 0
        %v2214 = vsel %vm2212, 1, 0
        %v2215 = vcvt.s32.f32 %v2213
        %v2216 = vcvt.s32.f32 %v2214
        %2217 = vmatprep.subr.mxu0 0.0
        %2218 = vmatpush1.msra.mxu0 %v2215
        %2219 = vmatprep.subr.mxu0 0.0
        %2220 = vmatpush1.msra.mxu0 %v2216
        %2221 = vmatprep.subr.mxu0 0.0
        %2222 = vmatpush1.msra.mxu0 0.0
        %2223 = vmatprep.subr.mxu0 0.0
        %2224 = vmatpush1.msra.mxu0 0.0
        %2225 = vmatprep.subr.mxu0 0.0
        %2226 = vmatpush1.msra.mxu0 0.0
        %2227 = vmatprep.subr.mxu0 0.0
        %2228 = vmatpush1.msra.mxu0 0.0
        %2229 = vmatprep.subr.mxu0 0.0
        %2230 = vmatpush1.msra.mxu0 0.0
        %2231 = vmatprep.subr.mxu0 0.0
        %2232 = vmatpush1.msra.mxu0 0.0
        %2233 = vmatprep.subr.mxu0 0.0
        %2234 = vmatpush1.msra.mxu0 0.0
        %2235 = vmatprep.subr.mxu0 0.0
        %2236 = vmatpush1.msra.mxu0 0.0
        %2237 = vmatprep.subr.mxu0 0.0
        %2238 = vmatpush1.msra.mxu0 0.0
        %2239 = vmatprep.subr.mxu0 0.0
        %2240 = vmatpush1.msra.mxu0 0.0
        %2241 = vmatprep.subr.mxu0 0.0
        %2242 = vmatpush1.msra.mxu0 0.0
        %2243 = vmatprep.subr.mxu0 0.0
        %2244 = vmatpush1.msra.mxu0 0.0
        %2245 = vmatprep.subr.mxu0 0.0
        %2246 = vmatpush1.msra.mxu0 0.0
        %2247 = vmatprep.subr.mxu0 0.0
        %2248 = vmatpush1.msra.mxu0 0.0
        %2249 = vmatprep.subr.mxu0 0.0
        %2250 = vmatpush1.msra.mxu0 0.0
        %2251 = vmatprep.subr.mxu0 0.0
        %2252 = vmatpush1.msra.mxu0 0.0
        %2253 = vmatprep.subr.mxu0 0.0
        %2254 = vmatpush1.msra.mxu0 0.0
        %2255 = vmatprep.subr.mxu0 0.0
        %2256 = vmatpush1.msra.mxu0 0.0
        %2257 = vmatprep.subr.mxu0 0.0
        %2258 = vmatpush1.msra.mxu0 0.0
        %2259 = vmatprep.subr.mxu0 0.0
        %2260 = vmatpush1.msra.mxu0 0.0
        %2261 = vmatprep.subr.mxu0 0.0
        %2262 = vmatpush1.msra.mxu0 0.0
        %2263 = vmatprep.subr.mxu0 0.0
        %2264 = vmatpush1.msra.mxu0 0.0
        %2265 = vmatprep.subr.mxu0 0.0
        %2266 = vmatpush1.msra.mxu0 0.0
        %2267 = vmatprep.subr.mxu0 0.0
        %2268 = vmatpush1.msra.mxu0 0.0
        %2269 = vmatprep.subr.mxu0 0.0
        %2270 = vmatpush1.msra.mxu0 0.0
        %2271 = vmatprep.subr.mxu0 0.0
        %2272 = vmatpush1.msra.mxu0 0.0
        %2273 = vmatprep.subr.mxu0 0.0
        %2274 = vmatpush1.msra.mxu0 0.0
        %2275 = vmatprep.subr.mxu0 0.0
        %2276 = vmatpush1.msra.mxu0 0.0
        %2277 = vmatprep.subr.mxu0 0.0
        %2278 = vmatpush1.msra.mxu0 0.0
        %2279 = vmatprep.subr.mxu0 0.0
        %2280 = vmatpush1.msra.mxu0 0.0
        %2281 = vmatprep.mubr.f32.mxu0 0.0
        %2282 = vmatmul.mubr.f32.gmra.mrb[0].mxu0 %v578
        %v2283 = vpop.f32.mrb[0].mxu0
        %v2284 = vadd.f32 0.0, %v2283
        %v2285 = vpop.f32.mrb[0].mxu0
        %2286 = vdwg.mxu0
        %2287 = vmatprep.subr.mxu0 0.0
        %2288 = vmatpush1.msra.mxu0 %v2215
        %2289 = vmatprep.subr.mxu0 0.0
        %2290 = vmatpush1.msra.mxu0 %v2216
        %2291 = vmatprep.subr.mxu0 0.0
        %2292 = vmatpush1.msra.mxu0 0.0
        %2293 = vmatprep.subr.mxu0 0.0
        %2294 = vmatpush1.msra.mxu0 0.0
        %2295 = vmatprep.subr.mxu0 0.0
        %2296 = vmatpush1.msra.mxu0 0.0
        %2297 = vmatprep.subr.mxu0 0.0
        %2298 = vmatpush1.msra.mxu0 0.0
        %2299 = vmatprep.subr.mxu0 0.0
        %2300 = vmatpush1.msra.mxu0 0.0
        %2301 = vmatprep.subr.mxu0 0.0
        %2302 = vmatpush1.msra.mxu0 0.0
        %2303 = vmatprep.subr.mxu0 0.0
        %2304 = vmatpush1.msra.mxu0 0.0
        %2305 = vmatprep.subr.mxu0 0.0
        %2306 = vmatpush1.msra.mxu0 0.0
        %2307 = vmatprep.subr.mxu0 0.0
        %2308 = vmatpush1.msra.mxu0 0.0
        %2309 = vmatprep.subr.mxu0 0.0
        %2310 = vmatpush1.msra.mxu0 0.0
        %2311 = vmatprep.subr.mxu0 0.0
        %2312 = vmatpush1.msra.mxu0 0.0
        %2313 = vmatprep.subr.mxu0 0.0
        %2314 = vmatpush1.msra.mxu0 0.0
        %2315 = vmatprep.subr.mxu0 0.0
        %2316 = vmatpush1.msra.mxu0 0.0
        %2317 = vmatprep.subr.mxu0 0.0
        %2318 = vmatpush1.msra.mxu0 0.0
        %2319 = vmatprep.subr.mxu0 0.0
        %2320 = vmatpush1.msra.mxu0 0.0
        %2321 = vmatprep.subr.mxu0 0.0
        %2322 = vmatpush1.msra.mxu0 0.0
        %2323 = vmatprep.subr.mxu0 0.0
        %2324 = vmatpush1.msra.mxu0 0.0
        %2325 = vmatprep.subr.mxu0 0.0
        %2326 = vmatpush1.msra.mxu0 0.0
        %2327 = vmatprep.subr.mxu0 0.0
        %2328 = vmatpush1.msra.mxu0 0.0
        %2329 = vmatprep.subr.mxu0 0.0
        %2330 = vmatpush1.msra.mxu0 0.0
        %2331 = vmatprep.subr.mxu0 0.0
        %2332 = vmatpush1.msra.mxu0 0.0
        %2333 = vmatprep.subr.mxu0 0.0
        %2334 = vmatpush1.msra.mxu0 0.0
        %2335 = vmatprep.subr.mxu0 0.0
        %2336 = vmatpush1.msra.mxu0 0.0
        %2337 = vmatprep.subr.mxu0 0.0
        %2338 = vmatpush1.msra.mxu0 0.0
        %2339 = vmatprep.subr.mxu0 0.0
        %2340 = vmatpush1.msra.mxu0 0.0
        %2341 = vmatprep.subr.mxu0 0.0
        %2342 = vmatpush1.msra.mxu0 0.0
        %2343 = vmatprep.subr.mxu0 0.0
        %2344 = vmatpush1.msra.mxu0 0.0
        %2345 = vmatprep.subr.mxu0 0.0
        %2346 = vmatpush1.msra.mxu0 0.0
        %2347 = vmatprep.subr.mxu0 0.0
        %2348 = vmatpush1.msra.mxu0 0.0
        %2349 = vmatprep.subr.mxu0 0.0
        %2350 = vmatpush1.msra.mxu0 0.0
        %2351 = vmatprep.mubr.f32.mxu0 0.0
        %2352 = vmatmul.mubr.f32.gmra.mrb[0].mxu0 %v651
        %v2353 = vpop.f32.mrb[0].mxu0
        %v2354 = vadd.f32 0.0, %v2353
        %v2355 = vpop.f32.mrb[0].mxu0
        %2356 = vmatprep.mubr.f32.mxu0 0.0
        %2357 = vmatmul.mubr.f32.gmra.mrb[0].mxu0 %v654
        %v2358 = vpop.f32.mrb[0].mxu0
        %v2359 = vadd.f32 0.0, %v2358
        %v2360 = vpop.f32.mrb[0].mxu0
        %2361 = vmatprep.mubr.f32.mxu0 0.0
        %2362 = vmatmul.mubr.f32.gmra.mrb[0].mxu0 %v657
        %v2363 = vpop.f32.mrb[0].mxu0
        %v2364 = vadd.f32 0.0, %v2363
        %v2365 = vpop.f32.mrb[0].mxu0
        %2366 = vdwg.mxu0
        %v2367 = vsub.f32 %v2284, %v362
        %v2368 = vmul.f32 %v2367, %v2367
        %v2370 = vrot.slane %v2368, 1
        %v2372 = vadd.f32 %v2368, %v2370
        %v2373 = vrot.slane %v2368, 2
        %v2375 = vadd.f32 %v2372, %v2373
        %v2376 = vmax.f32 %v2375, 1e-24
        %v2377 = vrsqrt.pop %v2376
        %v2379 = vsel %vm760, %v2367, 0
        %2381 = vmatprep.subr.mxu0 0.0
        %2382 = vmatpush1.msra.mxu0 %v2379
        %2383 = vmatprep.subr.mxu0 0.0
        %2384 = vmatpush1.msra.mxu0 0.0
        %2385 = vmatprep.subr.mxu0 0.0
        %2386 = vmatpush1.msra.mxu0 0.0
        %2387 = vmatprep.subr.mxu0 0.0
        %2388 = vmatpush1.msra.mxu0 0.0
        %2389 = vmatprep.subr.mxu0 0.0
        %2390 = vmatpush1.msra.mxu0 0.0
        %2391 = vmatprep.subr.mxu0 0.0
        %2392 = vmatpush1.msra.mxu0 0.0
        %2393 = vmatprep.subr.mxu0 0.0
        %2394 = vmatpush1.msra.mxu0 0.0
        %2395 = vmatprep.subr.mxu0 0.0
        %2396 = vmatpush1.msra.mxu0 0.0
        %2397 = vmatprep.subr.mxu0 0.0
        %2398 = vmatpush1.msra.mxu0 0.0
        %2399 = vmatprep.subr.mxu0 0.0
        %2400 = vmatpush1.msra.mxu0 0.0
        %2401 = vmatprep.subr.mxu0 0.0
        %2402 = vmatpush1.msra.mxu0 0.0
        %2403 = vmatprep.subr.mxu0 0.0
        %2404 = vmatpush1.msra.mxu0 0.0
        %2405 = vmatprep.subr.mxu0 0.0
        %2406 = vmatpush1.msra.mxu0 0.0
        %2407 = vmatprep.subr.mxu0 0.0
        %2408 = vmatpush1.msra.mxu0 0.0
        %2409 = vmatprep.subr.mxu0 0.0
        %2410 = vmatpush1.msra.mxu0 0.0
        %2411 = vmatprep.subr.mxu0 0.0
        %2412 = vmatpush1.msra.mxu0 0.0
        %2413 = vmatprep.subr.mxu0 0.0
        %2414 = vmatpush1.msra.mxu0 0.0
        %2415 = vmatprep.subr.mxu0 0.0
        %2416 = vmatpush1.msra.mxu0 0.0
        %2417 = vmatprep.subr.mxu0 0.0
        %2418 = vmatpush1.msra.mxu0 0.0
        %2419 = vmatprep.subr.mxu0 0.0
        %2420 = vmatpush1.msra.mxu0 0.0
        %2421 = vmatprep.subr.mxu0 0.0
        %2422 = vmatpush1.msra.mxu0 0.0
        %2423 = vmatprep.subr.mxu0 0.0
        %2424 = vmatpush1.msra.mxu0 0.0
        %2425 = vmatprep.subr.mxu0 0.0
        %2426 = vmatpush1.msra.mxu0 0.0
        %2427 = vmatprep.subr.mxu0 0.0
        %2428 = vmatpush1.msra.mxu0 0.0
        %2429 = vmatprep.subr.mxu0 0.0
        %2430 = vmatpush1.msra.mxu0 0.0
        %2431 = vmatprep.subr.mxu0 0.0
        %2432 = vmatpush1.msra.mxu0 0.0
        %2433 = vmatprep.subr.mxu0 0.0
        %2434 = vmatpush1.msra.mxu0 0.0
        %2435 = vmatprep.subr.mxu0 0.0
        %2436 = vmatpush1.msra.mxu0 0.0
        %2437 = vmatprep.subr.mxu0 0.0
        %2438 = vmatpush1.msra.mxu0 0.0
        %2439 = vmatprep.subr.mxu0 0.0
        %2440 = vmatpush1.msra.mxu0 0.0
        %2441 = vmatprep.subr.mxu0 0.0
        %2442 = vmatpush1.msra.mxu0 0.0
        %2443 = vmatprep.subr.mxu0 0.0
        %2444 = vmatpush1.msra.mxu0 0.0
        %2445 = vmatprep.mubr.f32.mxu0 0.0
        %2446 = vmatmul.mubr.f32.gmra.mrb[0].mxu0 %v752
        %v2447 = vpop.f32.mrb[0].mxu0
        %v2448 = vadd.f32 0.0, %v2447
        %v2449 = vpop.f32.mrb[0].mxu0
        %2450 = vmatprep.mubr.f32.mxu0 0.0
        %2451 = vmatmul.mubr.f32.gmra.mrb[0].mxu0 %v755
        %v2452 = vpop.f32.mrb[0].mxu0
        %v2453 = vadd.f32 0.0, %v2452
        %v2454 = vpop.f32.mrb[0].mxu0
        %2455 = vmatprep.mubr.f32.mxu0 0.0
        %2456 = vmatmul.mubr.f32.gmra.mrb[0].mxu0 %v758
        %v2457 = vpop.f32.mrb[0].mxu0
        %v2458 = vadd.f32 0.0, %v2457
        %v2459 = vpop.f32.mrb[0].mxu0
        %2460 = vdwg.mxu0
        %v2461 = vmax.f32 %v2448, 0.0
        %v2462 = vmax.f32 %v2453, 0.0
        %v2463 = vmax.f32 %v2458, 0.0
        %v2464 = vlaneseq
        %v2465 = vshrl.u32 %v2464, 7
        %v2466 = vsub.s32 0, %v2465
        %v2467 = vrot.slane %v2377, %v2466
        %v2468 = vmul.f32 %v2461, %v2467
        %v2469 = vmul.f32 %v2462, %v2467
        %v2470 = vmul.f32 %v2463, %v2467
        %v2471 = vmul.f32 %v2468, %v2354
        %v2472 = vmul.f32 %v2469, %v2359
        %v2473 = vmul.f32 %v2470, %v2364
        %v2474 = vmax.f32 %v2204, %v2471
        %v2475 = vmax.f32 %v2205, %v2472
        %v2476 = vmax.f32 %v2206, %v2473
        %v2477 = vlaneseq
        %v2478 = vshrl.u32 %v2477, 7
        %v2479 = vsub.s32 7, %v2478
        %v2480 = vrot.slane %v364, %v2479
        %vm2481 = vcmp.eq.s32.totalorder %v564, %v2480
        %vm2482 = vcmp.eq.s32.totalorder %v565, %v2480
        %v2483 = vsel %vm2481, 1, 0
        %v2484 = vsel %vm2482, 1, 0
        %v2485 = vcvt.s32.f32 %v2483
        %v2486 = vcvt.s32.f32 %v2484
        %2487 = vmatprep.subr.mxu0 0.0
        %2488 = vmatpush1.msra.mxu0 %v2485
        %2489 = vmatprep.subr.mxu0 0.0
        %2490 = vmatpush1.msra.mxu0 %v2486
        %2491 = vmatprep.subr.mxu0 0.0
        %2492 = vmatpush1.msra.mxu0 0.0
        %2493 = vmatprep.subr.mxu0 0.0
        %2494 = vmatpush1.msra.mxu0 0.0
        %2495 = vmatprep.subr.mxu0 0.0
        %2496 = vmatpush1.msra.mxu0 0.0
        %2497 = vmatprep.subr.mxu0 0.0
        %2498 = vmatpush1.msra.mxu0 0.0
        %2499 = vmatprep.subr.mxu0 0.0
        %2500 = vmatpush1.msra.mxu0 0.0
        %2501 = vmatprep.subr.mxu0 0.0
        %2502 = vmatpush1.msra.mxu0 0.0
        %2503 = vmatprep.subr.mxu0 0.0
        %2504 = vmatpush1.msra.mxu0 0.0
        %2505 = vmatprep.subr.mxu0 0.0
        %2506 = vmatpush1.msra.mxu0 0.0
        %2507 = vmatprep.subr.mxu0 0.0
        %2508 = vmatpush1.msra.mxu0 0.0
        %2509 = vmatprep.subr.mxu0 0.0
        %2510 = vmatpush1.msra.mxu0 0.0
        %2511 = vmatprep.subr.mxu0 0.0
        %2512 = vmatpush1.msra.mxu0 0.0
        %2513 = vmatprep.subr.mxu0 0.0
        %2514 = vmatpush1.msra.mxu0 0.0
        %2515 = vmatprep.subr.mxu0 0.0
        %2516 = vmatpush1.msra.mxu0 0.0
        %2517 = vmatprep.subr.mxu0 0.0
        %2518 = vmatpush1.msra.mxu0 0.0
        %2519 = vmatprep.subr.mxu0 0.0
        %2520 = vmatpush1.msra.mxu0 0.0
        %2521 = vmatprep.subr.mxu0 0.0
        %2522 = vmatpush1.msra.mxu0 0.0
        %2523 = vmatprep.subr.mxu0 0.0
        %2524 = vmatpush1.msra.mxu0 0.0
        %2525 = vmatprep.subr.mxu0 0.0
        %2526 = vmatpush1.msra.mxu0 0.0
        %2527 = vmatprep.subr.mxu0 0.0
        %2528 = vmatpush1.msra.mxu0 0.0
        %2529 = vmatprep.subr.mxu0 0.0
        %2530 = vmatpush1.msra.mxu0 0.0
        %2531 = vmatprep.subr.mxu0 0.0
        %2532 = vmatpush1.msra.mxu0 0.0
        %2533 = vmatprep.subr.mxu0 0.0
        %2534 = vmatpush1.msra.mxu0 0.0
        %2535 = vmatprep.subr.mxu0 0.0
        %2536 = vmatpush1.msra.mxu0 0.0
        %2537 = vmatprep.subr.mxu0 0.0
        %2538 = vmatpush1.msra.mxu0 0.0
        %2539 = vmatprep.subr.mxu0 0.0
        %2540 = vmatpush1.msra.mxu0 0.0
        %2541 = vmatprep.subr.mxu0 0.0
        %2542 = vmatpush1.msra.mxu0 0.0
        %2543 = vmatprep.subr.mxu0 0.0
        %2544 = vmatpush1.msra.mxu0 0.0
        %2545 = vmatprep.subr.mxu0 0.0
        %2546 = vmatpush1.msra.mxu0 0.0
        %2547 = vmatprep.subr.mxu0 0.0
        %2548 = vmatpush1.msra.mxu0 0.0
        %2549 = vmatprep.subr.mxu0 0.0
        %2550 = vmatpush1.msra.mxu0 0.0
        %2551 = vmatprep.mubr.f32.mxu0 0.0
        %2552 = vmatmul.mubr.f32.gmra.mrb[0].mxu0 %v578
        %v2553 = vpop.f32.mrb[0].mxu0
        %v2554 = vadd.f32 0.0, %v2553
        %v2555 = vpop.f32.mrb[0].mxu0
        %2556 = vdwg.mxu0
        %2557 = vmatprep.subr.mxu0 0.0
        %2558 = vmatpush1.msra.mxu0 %v2485
        %2559 = vmatprep.subr.mxu0 0.0
        %2560 = vmatpush1.msra.mxu0 %v2486
        %2561 = vmatprep.subr.mxu0 0.0
        %2562 = vmatpush1.msra.mxu0 0.0
        %2563 = vmatprep.subr.mxu0 0.0
        %2564 = vmatpush1.msra.mxu0 0.0
        %2565 = vmatprep.subr.mxu0 0.0
        %2566 = vmatpush1.msra.mxu0 0.0
        %2567 = vmatprep.subr.mxu0 0.0
        %2568 = vmatpush1.msra.mxu0 0.0
        %2569 = vmatprep.subr.mxu0 0.0
        %2570 = vmatpush1.msra.mxu0 0.0
        %2571 = vmatprep.subr.mxu0 0.0
        %2572 = vmatpush1.msra.mxu0 0.0
        %2573 = vmatprep.subr.mxu0 0.0
        %2574 = vmatpush1.msra.mxu0 0.0
        %2575 = vmatprep.subr.mxu0 0.0
        %2576 = vmatpush1.msra.mxu0 0.0
        %2577 = vmatprep.subr.mxu0 0.0
        %2578 = vmatpush1.msra.mxu0 0.0
        %2579 = vmatprep.subr.mxu0 0.0
        %2580 = vmatpush1.msra.mxu0 0.0
        %2581 = vmatprep.subr.mxu0 0.0
        %2582 = vmatpush1.msra.mxu0 0.0
        %2583 = vmatprep.subr.mxu0 0.0
        %2584 = vmatpush1.msra.mxu0 0.0
        %2585 = vmatprep.subr.mxu0 0.0
        %2586 = vmatpush1.msra.mxu0 0.0
        %2587 = vmatprep.subr.mxu0 0.0
        %2588 = vmatpush1.msra.mxu0 0.0
        %2589 = vmatprep.subr.mxu0 0.0
        %2590 = vmatpush1.msra.mxu0 0.0
        %2591 = vmatprep.subr.mxu0 0.0
        %2592 = vmatpush1.msra.mxu0 0.0
        %2593 = vmatprep.subr.mxu0 0.0
        %2594 = vmatpush1.msra.mxu0 0.0
        %2595 = vmatprep.subr.mxu0 0.0
        %2596 = vmatpush1.msra.mxu0 0.0
        %2597 = vmatprep.subr.mxu0 0.0
        %2598 = vmatpush1.msra.mxu0 0.0
        %2599 = vmatprep.subr.mxu0 0.0
        %2600 = vmatpush1.msra.mxu0 0.0
        %2601 = vmatprep.subr.mxu0 0.0
        %2602 = vmatpush1.msra.mxu0 0.0
        %2603 = vmatprep.subr.mxu0 0.0
        %2604 = vmatpush1.msra.mxu0 0.0
        %2605 = vmatprep.subr.mxu0 0.0
        %2606 = vmatpush1.msra.mxu0 0.0
        %2607 = vmatprep.subr.mxu0 0.0
        %2608 = vmatpush1.msra.mxu0 0.0
        %2609 = vmatprep.subr.mxu0 0.0
        %2610 = vmatpush1.msra.mxu0 0.0
        %2611 = vmatprep.subr.mxu0 0.0
        %2612 = vmatpush1.msra.mxu0 0.0
        %2613 = vmatprep.subr.mxu0 0.0
        %2614 = vmatpush1.msra.mxu0 0.0
        %2615 = vmatprep.subr.mxu0 0.0
        %2616 = vmatpush1.msra.mxu0 0.0
        %2617 = vmatprep.subr.mxu0 0.0
        %2618 = vmatpush1.msra.mxu0 0.0
        %2619 = vmatprep.subr.mxu0 0.0
        %2620 = vmatpush1.msra.mxu0 0.0
        %2621 = vmatprep.mubr.f32.mxu0 0.0
        %2622 = vmatmul.mubr.f32.gmra.mrb[0].mxu0 %v651
        %v2623 = vpop.f32.mrb[0].mxu0
        %v2624 = vadd.f32 0.0, %v2623
        %v2625 = vpop.f32.mrb[0].mxu0
        %2626 = vmatprep.mubr.f32.mxu0 0.0
        %2627 = vmatmul.mubr.f32.gmra.mrb[0].mxu0 %v654
        %v2628 = vpop.f32.mrb[0].mxu0
        %v2629 = vadd.f32 0.0, %v2628
        %v2630 = vpop.f32.mrb[0].mxu0
        %2631 = vmatprep.mubr.f32.mxu0 0.0
        %2632 = vmatmul.mubr.f32.gmra.mrb[0].mxu0 %v657
        %v2633 = vpop.f32.mrb[0].mxu0
        %v2634 = vadd.f32 0.0, %v2633
        %v2635 = vpop.f32.mrb[0].mxu0
        %2636 = vdwg.mxu0
        %v2637 = vsub.f32 %v2554, %v362
        %v2638 = vmul.f32 %v2637, %v2637
        %v2640 = vrot.slane %v2638, 1
        %v2642 = vadd.f32 %v2638, %v2640
        %v2643 = vrot.slane %v2638, 2
        %v2645 = vadd.f32 %v2642, %v2643
        %v2646 = vmax.f32 %v2645, 1e-24
        %v2647 = vrsqrt.pop %v2646
        %v2649 = vsel %vm760, %v2637, 0
        %2651 = vmatprep.subr.mxu0 0.0
        %2652 = vmatpush1.msra.mxu0 %v2649
        %2653 = vmatprep.subr.mxu0 0.0
        %2654 = vmatpush1.msra.mxu0 0.0
        %2655 = vmatprep.subr.mxu0 0.0
        %2656 = vmatpush1.msra.mxu0 0.0
        %2657 = vmatprep.subr.mxu0 0.0
        %2658 = vmatpush1.msra.mxu0 0.0
        %2659 = vmatprep.subr.mxu0 0.0
        %2660 = vmatpush1.msra.mxu0 0.0
        %2661 = vmatprep.subr.mxu0 0.0
        %2662 = vmatpush1.msra.mxu0 0.0
        %2663 = vmatprep.subr.mxu0 0.0
        %2664 = vmatpush1.msra.mxu0 0.0
        %2665 = vmatprep.subr.mxu0 0.0
        %2666 = vmatpush1.msra.mxu0 0.0
        %2667 = vmatprep.subr.mxu0 0.0
        %2668 = vmatpush1.msra.mxu0 0.0
        %2669 = vmatprep.subr.mxu0 0.0
        %2670 = vmatpush1.msra.mxu0 0.0
        %2671 = vmatprep.subr.mxu0 0.0
        %2672 = vmatpush1.msra.mxu0 0.0
        %2673 = vmatprep.subr.mxu0 0.0
        %2674 = vmatpush1.msra.mxu0 0.0
        %2675 = vmatprep.subr.mxu0 0.0
        %2676 = vmatpush1.msra.mxu0 0.0
        %2677 = vmatprep.subr.mxu0 0.0
        %2678 = vmatpush1.msra.mxu0 0.0
        %2679 = vmatprep.subr.mxu0 0.0
        %2680 = vmatpush1.msra.mxu0 0.0
        %2681 = vmatprep.subr.mxu0 0.0
        %2682 = vmatpush1.msra.mxu0 0.0
        %2683 = vmatprep.subr.mxu0 0.0
        %2684 = vmatpush1.msra.mxu0 0.0
        %2685 = vmatprep.subr.mxu0 0.0
        %2686 = vmatpush1.msra.mxu0 0.0
        %2687 = vmatprep.subr.mxu0 0.0
        %2688 = vmatpush1.msra.mxu0 0.0
        %2689 = vmatprep.subr.mxu0 0.0
        %2690 = vmatpush1.msra.mxu0 0.0
        %2691 = vmatprep.subr.mxu0 0.0
        %2692 = vmatpush1.msra.mxu0 0.0
        %2693 = vmatprep.subr.mxu0 0.0
        %2694 = vmatpush1.msra.mxu0 0.0
        %2695 = vmatprep.subr.mxu0 0.0
        %2696 = vmatpush1.msra.mxu0 0.0
        %2697 = vmatprep.subr.mxu0 0.0
        %2698 = vmatpush1.msra.mxu0 0.0
        %2699 = vmatprep.subr.mxu0 0.0
        %2700 = vmatpush1.msra.mxu0 0.0
        %2701 = vmatprep.subr.mxu0 0.0
        %2702 = vmatpush1.msra.mxu0 0.0
        %2703 = vmatprep.subr.mxu0 0.0
        %2704 = vmatpush1.msra.mxu0 0.0
        %2705 = vmatprep.subr.mxu0 0.0
        %2706 = vmatpush1.msra.mxu0 0.0
        %2707 = vmatprep.subr.mxu0 0.0
        %2708 = vmatpush1.msra.mxu0 0.0
        %2709 = vmatprep.subr.mxu0 0.0
        %2710 = vmatpush1.msra.mxu0 0.0
        %2711 = vmatprep.subr.mxu0 0.0
        %2712 = vmatpush1.msra.mxu0 0.0
        %2713 = vmatprep.subr.mxu0 0.0
        %2714 = vmatpush1.msra.mxu0 0.0
        %2715 = vmatprep.mubr.f32.mxu0 0.0
        %2716 = vmatmul.mubr.f32.gmra.mrb[0].mxu0 %v752
        %v2717 = vpop.f32.mrb[0].mxu0
        %v2718 = vadd.f32 0.0, %v2717
        %v2719 = vpop.f32.mrb[0].mxu0
        %2720 = vmatprep.mubr.f32.mxu0 0.0
        %2721 = vmatmul.mubr.f32.gmra.mrb[0].mxu0 %v755
        %v2722 = vpop.f32.mrb[0].mxu0
        %v2723 = vadd.f32 0.0, %v2722
        %v2724 = vpop.f32.mrb[0].mxu0
        %2725 = vmatprep.mubr.f32.mxu0 0.0
        %2726 = vmatmul.mubr.f32.gmra.mrb[0].mxu0 %v758
        %v2727 = vpop.f32.mrb[0].mxu0
        %v2728 = vadd.f32 0.0, %v2727
        %v2729 = vpop.f32.mrb[0].mxu0
        %2730 = vdwg.mxu0
        %v2731 = vmax.f32 %v2718, 0.0
        %v2732 = vmax.f32 %v2723, 0.0
        %v2733 = vmax.f32 %v2728, 0.0
        %v2734 = vlaneseq
        %v2735 = vshrl.u32 %v2734, 7
        %v2736 = vsub.s32 0, %v2735
        %v2737 = vrot.slane %v2647, %v2736
        %v2738 = vmul.f32 %v2731, %v2737
        %v2739 = vmul.f32 %v2732, %v2737
        %v2740 = vmul.f32 %v2733, %v2737
        %v2741 = vmul.f32 %v2738, %v2624
        %v2742 = vmul.f32 %v2739, %v2629
        %v2743 = vmul.f32 %v2740, %v2634
        %v2744 = vmax.f32 %v2474, %v2741
        %v2745 = vmax.f32 %v2475, %v2742
        %v2746 = vmax.f32 %v2476, %v2743
        %v2747 = vld [vmem:[%s8] sm:$0xff]
        %vm2748 = vcmask 195584
        %v2750 = vsel %vm2748, %v2747, 0
        %2752 = vmatprep.subr.mxu0 0.0
        %2753 = vmatpush1.msra.mxu0 %v2744
        %2754 = vmatprep.subr.mxu0 0.0
        %2755 = vmatpush1.msra.mxu0 %v2745
        %2756 = vmatprep.subr.mxu0 0.0
        %2757 = vmatpush1.msra.mxu0 %v2746
        %2758 = vmatprep.subr.mxu0 0.0
        %2759 = vmatpush1.msra.mxu0 0.0
        %2760 = vmatprep.subr.mxu0 0.0
        %2761 = vmatpush1.msra.mxu0 0.0
        %2762 = vmatprep.subr.mxu0 0.0
        %2763 = vmatpush1.msra.mxu0 0.0
        %2764 = vmatprep.subr.mxu0 0.0
        %2765 = vmatpush1.msra.mxu0 0.0
        %2766 = vmatprep.subr.mxu0 0.0
        %2767 = vmatpush1.msra.mxu0 0.0
        %2768 = vmatprep.subr.mxu0 0.0
        %2769 = vmatpush1.msra.mxu0 0.0
        %2770 = vmatprep.subr.mxu0 0.0
        %2771 = vmatpush1.msra.mxu0 0.0
        %2772 = vmatprep.subr.mxu0 0.0
        %2773 = vmatpush1.msra.mxu0 0.0
        %2774 = vmatprep.subr.mxu0 0.0
        %2775 = vmatpush1.msra.mxu0 0.0
        %2776 = vmatprep.subr.mxu0 0.0
        %2777 = vmatpush1.msra.mxu0 0.0
        %2778 = vmatprep.subr.mxu0 0.0
        %2779 = vmatpush1.msra.mxu0 0.0
        %2780 = vmatprep.subr.mxu0 0.0
        %2781 = vmatpush1.msra.mxu0 0.0
        %2782 = vmatprep.subr.mxu0 0.0
        %2783 = vmatpush1.msra.mxu0 0.0
        %2784 = vmatprep.subr.mxu0 0.0
        %2785 = vmatpush1.msra.mxu0 0.0
        %2786 = vmatprep.subr.mxu0 0.0
        %2787 = vmatpush1.msra.mxu0 0.0
        %2788 = vmatprep.subr.mxu0 0.0
        %2789 = vmatpush1.msra.mxu0 0.0
        %2790 = vmatprep.subr.mxu0 0.0
        %2791 = vmatpush1.msra.mxu0 0.0
        %2792 = vmatprep.subr.mxu0 0.0
        %2793 = vmatpush1.msra.mxu0 0.0
        %2794 = vmatprep.subr.mxu0 0.0
        %2795 = vmatpush1.msra.mxu0 0.0
        %2796 = vmatprep.subr.mxu0 0.0
        %2797 = vmatpush1.msra.mxu0 0.0
        %2798 = vmatprep.subr.mxu0 0.0
        %2799 = vmatpush1.msra.mxu0 0.0
        %2800 = vmatprep.subr.mxu0 0.0
        %2801 = vmatpush1.msra.mxu0 0.0
        %2802 = vmatprep.subr.mxu0 0.0
        %2803 = vmatpush1.msra.mxu0 0.0
        %2804 = vmatprep.subr.mxu0 0.0
        %2805 = vmatpush1.msra.mxu0 0.0
        %2806 = vmatprep.subr.mxu0 0.0
        %2807 = vmatpush1.msra.mxu0 0.0
        %2808 = vmatprep.subr.mxu0 0.0
        %2809 = vmatpush1.msra.mxu0 0.0
        %2810 = vmatprep.subr.mxu0 0.0
        %2811 = vmatpush1.msra.mxu0 0.0
        %2812 = vmatprep.subr.mxu0 0.0
        %2813 = vmatpush1.msra.mxu0 0.0
        %2814 = vmatprep.subr.mxu0 0.0
        %2815 = vmatpush1.msra.mxu0 0.0
        %2816 = vmatprep.mubr.f32.mxu0 0.0
        %2817 = vmatmul.mubr.f32.gmra.mrb[0].mxu0 %v2750
        %v2818 = vpop.f32.mrb[0].mxu0
        %v2819 = vadd.f32 0.0, %v2818
        %v2820 = vpop.f32.mrb[0].mxu0
        %2821 = vdwg.mxu0
        %v2822 = vadd.f32 %v560, %v2819
        %2823 = vst.msk [vmem:[%s349] sm:$0xff] %vm576, %v2822
        %s2824 = sand.u32 %s235, 1
        %s2825 = scalar_lea.sflag [#allocation3], %s2824
        %s2826 = sand.u32 %s235, 1
        %s2827 = smul.addr %s2826, 8
        %s2828 = scalar_lea.vmem [#allocation2], %s2827
        // Predicated region
        $region57: #{tpu_custom_call.1} parent=55 // pred_check
          %p2829 = pneg %p245
        $region58: #{tpu_custom_call.1} parent=55 // pred_check_branch
          %2831 = sbr.rel (%p2829) target = $region60
        $region59: #{tpu_custom_call.1} parent=55 // pred_region
          %s2833 = ssub.s32 128, 128
          %2834 = vsyncadd %s2825, %s2833
          %s2835 = smul.addr %s23, 128
          %s2836 = scalar_lea.hbm %s9, %s2835
          %s2838 = sshll.u32 %s2828, 4
          %s2839 = int_to_ptr.vmem [resolvable:$true] %s2838
          %2841 = dma.vmem_to_hbm [thread:$0]  %s2839, 128, %s2836, %s2825
        $region60: #{tpu_custom_call.1} parent=55 // pred_fallthru
          _
      $region56: #{tpu_custom_call.1} parent=5 // pred_fallthru
        _
      %p2842 = scmp.le.s32.totalorder 2, %s18
      // Predicated region
      $region61: #{tpu_custom_call.1} parent=5 // pred_check
        %p2843 = pneg %p2842
      $region62: #{tpu_custom_call.1} parent=5 // pred_check_branch
        %2845 = sbr.rel (%p2843) target = $region64
      $region63: #{tpu_custom_call.1} parent=5 // pred_region
        %s2846 = ssub.s32 %s18, 2
        // Predicated region
        $region65: #{tpu_custom_call.1} parent=63 // pred_check
          %p2847 = pneg %p251
        $region66: #{tpu_custom_call.1} parent=63 // pred_check_branch
          %2849 = sbr.rel (%p2847) target = $region68
        $region67: #{tpu_custom_call.1} parent=63 // pred_region
          %s2850 = sand.u32 %s236, 1
          %s2851 = scalar_lea.sflag [#allocation3], %s2850
          %s2852 = sand.u32 %s236, 1
          %s2853 = smul.addr %s2852, 8
          %s2854 = scalar_lea.vmem [#allocation2], %s2853
          %2855 = dma.done %s2851, 128
        $region68: #{tpu_custom_call.1} parent=63 // pred_fallthru
          _
      $region64: #{tpu_custom_call.1} parent=5 // pred_fallthru
        _
    $region6: #{tpu_custom_call.1} parent=1 // loop_footer
      %s22 = sadd.s32 1, %s18
    $region7: #{tpu_custom_call.1} parent=1 // loop_footer_branch
      %17 = sbr.rel target = $region3
    $region8: #{tpu_custom_call.1} parent=1 // loop_exit
      _
    %2856 = vsyncpa [#allocation3], 1
    %s2857 = scalar_lea.sflag [#allocation3], 1
    %2858 = vsyncpa %s2857, 1

</llo_original>
